<compile_context>
chip_gen: v6e
topology: v6e:2x2x1
jax: 0.10.0
libtpu: 0.0.40
codegen_flags: <defaults>
</compile_context>

<pallas_src>
import math

import jax
import jax.numpy as jnp
from jax.experimental import pallas as pl
from jax.experimental.pallas import tpu as pltpu


# -----------------------------------------------------------------------------
# Fused kernel: pos-embedding + modal Linear + L x TransformerEncoderLayer,
# grid = (modal, layer)
# -----------------------------------------------------------------------------
def _fused_kernel(x_ref, pos_ref, head_ref,
                  map_w_ref, map_b_ref,
                  in_w_ref, in_b_ref, out_w_ref, out_b_ref,
                  ln1_w_ref, ln1_b_ref,
                  ff1_w_ref, ff1_b_ref, ff2_w_ref, ff2_b_ref,
                  ln2_w_ref, ln2_b_ref,
                  o_ref):
    l = pl.program_id(1)
    _, B, F, D = o_ref.shape
    N = B * F
    bf16 = jnp.bfloat16

    # ---- layer-0 prologue: additive positional embedding + Linear (W -> D) ----
    @pl.when(l == 0)
    def _():
        xw = x_ref[0] + pos_ref[0][None]                     # (B, F, W)
        W = xw.shape[-1]
        y = jnp.dot(xw.reshape(N, W).astype(bf16), map_w_ref[0],
                    preferred_element_type=jnp.float32) + map_b_ref[0]
        o_ref[...] = y.reshape(1, B, F, D).astype(o_ref.dtype)

    x = o_ref[0]                                             # (B, F, D) resident f32
    x2d = x.reshape(N, D)

    # ---- multi-head self-attention over axis 0 (B), batched over (F, heads) ----
    qkv = jnp.dot(x2d.astype(bf16), in_w_ref[0, 0],
                  preferred_element_type=jnp.float32) + in_b_ref[0, 0]   # (N, 3D)
    qkv = qkv.reshape(B, F, 3 * D)
    q = qkv[:, :, 0:D]
    k = qkv[:, :, D:2 * D]
    v = qkv[:, :, 2 * D:3 * D]

    # NOTE(vmem): qk/s/p are O(B^2*F*D) f32 and h1 below is O(B*F*Dff) f32.
    # At these shapes (B=2, F<=8, D=32, Dff=2048) that's a few KiB .. 128 KiB;
    # if B, F or Dff scale, switch scores to a per-head (B,B,F,H) layout and/or
    # tile the Dff axis before v7x's 64 MiB VMEM becomes the limit.
    qk = q[:, None, :, :] * k[None, :, :, :]                 # (B, B, F, D) = q[b]*k[c]
    s = jnp.dot(qk.reshape(B * B * F, D).astype(bf16), head_ref[...],
                preferred_element_type=jnp.float32).reshape(B, B, F, D)
    # s[b, c, f, d] = per-head scaled score, replicated across that head's lanes.
    s = s - jnp.max(s, axis=1, keepdims=True)                # softmax over keys (axis 1)
    p = jnp.exp(s)
    p = p * pl.reciprocal(jnp.sum(p, axis=1, keepdims=True), approx=True)
    ctx = jnp.sum(p * v[None, :, :, :], axis=1)              # (B, F, D)

    attn = jnp.dot(ctx.reshape(N, D).astype(bf16), out_w_ref[0, 0],
                   preferred_element_type=jnp.float32) + out_b_ref[0, 0]  # (N, D)

    def layer_norm(y, w, b):
        mu = jnp.mean(y, axis=-1, keepdims=True)
        var = jnp.mean((y - mu) ** 2, axis=-1, keepdims=True)
        return (y - mu) * jax.lax.rsqrt(var + 1e-5) * w + b

    x1 = layer_norm(x2d + attn, ln1_w_ref[0, 0], ln1_b_ref[0, 0])         # (N, D)

    # ---- feed-forward (relu) + residual + layernorm (post-norm) ----
    h1 = jnp.dot(x1.astype(bf16), ff1_w_ref[0, 0],
                 preferred_element_type=jnp.float32) + ff1_b_ref[0, 0]    # (N, Dff)
    h1 = jnp.maximum(h1, 0.0)
    h2 = jnp.dot(h1.astype(bf16), ff2_w_ref[0, 0],
                 preferred_element_type=jnp.float32) + ff2_b_ref[0, 0]    # (N, D)
    x2 = layer_norm(x1 + h2, ln2_w_ref[0, 0], ln2_b_ref[0, 0])            # (N, D)

    o_ref[...] = x2.reshape(1, B, F, D).astype(o_ref.dtype)


def fused_forward(x_stack, packed):
    M, B, F, W = x_stack.shape
    D = packed['map_w'].shape[-1]
    Dff = packed['ff1_w'].shape[-1]
    L = packed['in_w'].shape[1]

    grid_spec = pltpu.PrefetchScalarGridSpec(
        num_scalar_prefetch=0,
        grid=(M, L),
        in_specs=[
            pl.BlockSpec((1, B, F, W), lambda m, l: (m, 0, 0, 0)),       # x (read at l==0)
            pl.BlockSpec((1, F, W), lambda m, l: (m, 0, 0)),             # pos
            pl.BlockSpec((D, D), lambda m, l: (0, 0)),                   # head_mat (bf16)
            pl.BlockSpec((1, W, D), lambda m, l: (m, 0, 0)),             # map_w (bf16)
            pl.BlockSpec((1, 1, D), lambda m, l: (m, 0, 0)),             # map_b
            pl.BlockSpec((1, 1, D, 3 * D), lambda m, l: (m, l, 0, 0)),   # in_w (bf16)
            pl.BlockSpec((1, 1, 1, 3 * D), lambda m, l: (m, l, 0, 0)),   # in_b
            pl.BlockSpec((1, 1, D, D), lambda m, l: (m, l, 0, 0)),       # out_w (bf16)
            pl.BlockSpec((1, 1, 1, D), lambda m, l: (m, l, 0, 0)),       # out_b
            pl.BlockSpec((1, 1, 1, D), lambda m, l: (m, l, 0, 0)),       # ln1_w
            pl.BlockSpec((1, 1, 1, D), lambda m, l: (m, l, 0, 0)),       # ln1_b
            pl.BlockSpec((1, 1, D, Dff), lambda m, l: (m, l, 0, 0)),     # ff1_w (bf16)
            pl.BlockSpec((1, 1, 1, Dff), lambda m, l: (m, l, 0, 0)),     # ff1_b
            pl.BlockSpec((1, 1, Dff, D), lambda m, l: (m, l, 0, 0)),     # ff2_w (bf16)
            pl.BlockSpec((1, 1, 1, D), lambda m, l: (m, l, 0, 0)),       # ff2_b
            pl.BlockSpec((1, 1, 1, D), lambda m, l: (m, l, 0, 0)),       # ln2_w
            pl.BlockSpec((1, 1, 1, D), lambda m, l: (m, l, 0, 0)),       # ln2_b
        ],
        out_specs=pl.BlockSpec((1, B, F, D), lambda m, l: (m, 0, 0, 0)),  # resident over l
    )
    return pl.pallas_call(
        _fused_kernel,
        out_shape=jax.ShapeDtypeStruct((M, B, F, D), jnp.float32),
        grid_spec=grid_spec,
        compiler_params=pltpu.CompilerParams(
            dimension_semantics=("parallel", "arbitrary")),
    )(
        x_stack, packed['pos'], packed['head_mat'],
        packed['map_w'], packed['map_b'],
        packed['in_w'], packed['in_b'], packed['out_w'], packed['out_b'],
        packed['ln1_w'], packed['ln1_b'],
        packed['ff1_w'], packed['ff1_b'], packed['ff2_w'], packed['ff2_b'],
        packed['ln2_w'], packed['ln2_b'],
    )


# -----------------------------------------------------------------------------
# One-time parameter packing: stack modals, pad F, cast matmul weights to bf16,
# precompute the scaled block-diagonal head-sum matrix.
# -----------------------------------------------------------------------------
def pack_params(params, meta_data, param_dict):
    modals = meta_data['modal_types']
    F_list = [params[m]['pos'].shape[0] for m in modals]
    F_max = max(F_list)
    D = param_dict['orl_te_in_channels']
    H = param_dict['orl_te_heads']
    hd = D // H
    bf16 = jnp.bfloat16

    def stack(name, dtype=jnp.float32):
        return jnp.stack([params[m][name] for m in modals]).astype(dtype)

    packed = {
        'pos': jnp.stack([
            jnp.pad(params[m]['pos'],
                    ((0, F_max - params[m]['pos'].shape[0]), (0, 0)))
            for m in modals]),
        'map_w': stack('map_w', bf16), 'map_b': stack('map_b'),
        'in_w': stack('in_w', bf16), 'in_b': stack('in_b'),
        'out_w': stack('out_w', bf16), 'out_b': stack('out_b'),
        'ln1_w': stack('ln1_w'), 'ln1_b': stack('ln1_b'),
        'ff1_w': stack('ff1_w', bf16), 'ff1_b': stack('ff1_b'),
        'ff2_w': stack('ff2_w', bf16), 'ff2_b': stack('ff2_b'),
        'ln2_w': stack('ln2_w'), 'ln2_b': stack('ln2_b'),
    }
    # Scaled block-diagonal head-sum matrix: HS[d', d] = 1/sqrt(hd) iff same head.
    r = jax.lax.broadcasted_iota(jnp.int32, (D, D), 0) // hd
    c = jax.lax.broadcasted_iota(jnp.int32, (D, D), 1) // hd
    packed['head_mat'] = jnp.where(
        r == c, jnp.float32(1.0 / math.sqrt(hd)), jnp.float32(0.0)).astype(bf16)
    packed['F_list'] = F_list
    packed['F_max'] = F_max
    return packed


# -----------------------------------------------------------------------------
# Module-level forward (mirrors RepresentationLearning.forward)
# -----------------------------------------------------------------------------
def representation_learning_forward(batch_data, packed, meta_data):
    modals = meta_data['modal_types']
    F_max = packed['F_max']
    xs = []
    for modal, Fm in zip(modals, packed['F_list']):
        x = batch_data[f'x_{modal}']
        if Fm < F_max:
            x = jnp.pad(x, ((0, 0), (0, F_max - Fm), (0, 0)))
        xs.append(x)
    x_stack = jnp.stack(xs)                                   # (M, B, F_max, W)
    out = fused_forward(x_stack, packed)                      # (M, B, F_max, D)
    result = dict(batch_data)
    for i, (modal, Fm) in enumerate(zip(modals, packed['F_list'])):
        result[f'x_{modal}'] = out[i, :, :Fm, :]
    return result


# -----------------------------------------------------------------------------
# Pure-JAX f32 reference (standard MHA formulation) for validation
# -----------------------------------------------------------------------------
def _ref_encoder_layer(x, p, l, num_heads):
    B, F, D = x.shape
    hd = D // num_heads
    qkv = x @ p['in_w'][l] + p['in_b'][l]
    q = qkv[..., :D] * (1.0 / math.sqrt(hd))
    k = qkv[..., D:2 * D]
    v = qkv[..., 2 * D:]
    qh = q.reshape(B, F, num_heads, hd)
    kh = k.reshape(B, F, num_heads, hd)
    vh = v.reshape(B, F, num_heads, hd)
    s = jnp.einsum('bfhd,cfhd->fhbc', qh, kh)
    pattn = jax.nn.softmax(s, axis=-1)
    ctx = jnp.einsum('fhbc,cfhd->bfhd', pattn, vh).reshape(B, F, D)
    attn = ctx @ p['out_w'][l] + p['out_b'][l]

    def ln(y, w, b):
        mu = y.mean(-1, keepdims=True)
        var = ((y - mu) ** 2).mean(-1, keepdims=True)
        return (y - mu) / jnp.sqrt(var + 1e-5) * w + b

    x1 = ln(x + attn, p['ln1_w'][l], p['ln1_b'][l])
    h = jax.nn.relu(x1 @ p['ff1_w'][l] + p['ff1_b'][l])
    h2 = h @ p['ff2_w'][l] + p['ff2_b'][l]
    return ln(x1 + h2, p['ln2_w'][l], p['ln2_b'][l])


def _ref_forward(batch_data, params, meta_data, param_dict):
    out = dict(batch_data)
    for modal in meta_data['modal_types']:
        p = params[modal]
        x = out[f'x_{modal}']
        x = (x + p['pos'][None]) @ p['map_w'] + p['map_b']
        for l in range(p['in_w'].shape[0]):
            x = _ref_encoder_layer(x, p, l, param_dict['orl_te_heads'])
        out[f'x_{modal}'] = x
    return out


# -----------------------------------------------------------------------------
# Deterministic parameter construction (per-layer weights stacked along axis 0)
# -----------------------------------------------------------------------------
def _uniform(key, fan_in, shape):
    bound = 1.0 / math.sqrt(fan_in)
    return jax.random.uniform(key, shape, jnp.float32, -bound, bound)


def _num_o11y_features(meta_data, modal):
    n = 0
    for ent in meta_data['ent_types']:
        lo, hi = meta_data['ent_type_index'][ent]
        n += meta_data['ent_feature_num'][ent][modal] * (hi - lo)
    return n


def init_params(key, meta_data, param_dict):
    W = param_dict['window_size']
    D = param_dict['orl_te_in_channels']
    Dff = param_dict['orl_te_dim_feedforward']       # nn.TransformerEncoderLayer default 2048
    L = param_dict['orl_te_layers']
    params = {}
    modal_keys = jax.random.split(key, len(meta_data['modal_types']))
    for mk, modal in zip(modal_keys, meta_data['modal_types']):
        F = _num_o11y_features(meta_data, modal)
        ks = iter(jax.random.split(mk, 3 + 8 * L))
        mp = {
            'pos': 0.02 * jax.random.normal(next(ks), (F, W), jnp.float32),
            'map_w': _uniform(next(ks), W, (W, D)),
            'map_b': _uniform(next(ks), W, (1, D)),
        }
        stacks = {k: [] for k in ['in_w', 'in_b', 'out_w', 'out_b',
                                  'ff1_w', 'ff1_b', 'ff2_w', 'ff2_b']}
        for _ in range(L):
            stacks['in_w'].append(_uniform(next(ks), D, (D, 3 * D)))
            stacks['in_b'].append(_uniform(next(ks), D, (1, 3 * D)))
            stacks['out_w'].append(_uniform(next(ks), D, (D, D)))
            stacks['out_b'].append(_uniform(next(ks), D, (1, D)))
            stacks['ff1_w'].append(_uniform(next(ks), D, (D, Dff)))
            stacks['ff1_b'].append(_uniform(next(ks), D, (1, Dff)))
            stacks['ff2_w'].append(_uniform(next(ks), Dff, (Dff, D)))
            stacks['ff2_b'].append(_uniform(next(ks), Dff, (1, D)))
        mp.update({k: jnp.stack(v) for k, v in stacks.items()})
        mp['ln1_w'] = jnp.ones((L, 1, D), jnp.float32)
        mp['ln1_b'] = jnp.zeros((L, 1, D), jnp.float32)
        mp['ln2_w'] = jnp.ones((L, 1, D), jnp.float32)
        mp['ln2_b'] = jnp.zeros((L, 1, D), jnp.float32)
        params[modal] = mp
    return params


if __name__ == "__main__":
    param_dict = {
        'window_size': 16,
        'orl_te_in_channels': 32,
        'orl_te_heads': 4,
        'orl_te_layers': 2,
        'orl_te_dim_feedforward': 2048,   # PyTorch TransformerEncoderLayer default
    }
    meta_data = {
        'modal_types': ['metric', 'log'],
        'ent_types': ['service', 'pod'],
        'ent_type_index': {'service': (0, 2), 'pod': (2, 4)},
        'ent_feature_num': {
            'service': {'metric': 2, 'log': 1},
            'pod': {'metric': 2, 'log': 1},
        },
    }
    B = 2
    root = jax.random.PRNGKey(0)
    k_param, k_metric, k_log = jax.random.split(root, 3)
    params = init_params(k_param, meta_data, param_dict)
    packed = pack_params(params, meta_data, param_dict)   # one-time bf16 cast + stacking

    batch_data = {
        'x_metric': jax.random.normal(
            k_metric, (B, _num_o11y_features(meta_data, 'metric'),
                       param_dict['window_size']), jnp.float32),
        'x_log': jax.random.normal(
            k_log, (B, _num_o11y_features(meta_data, 'log'),
                    param_dict['window_size']), jnp.float32),
    }

    out = representation_learning_forward(batch_data, packed, meta_data)
    out = jax.tree_util.tree_map(jax.block_until_ready, out)

    ref = _ref_forward(batch_data, params, meta_data, param_dict)
    for modal in meta_data['modal_types']:
        a, b = out[f'x_{modal}'], ref[f'x_{modal}']
        assert a.shape == b.shape, f"{modal}: {a.shape} vs {b.shape}"
        err = float(jnp.max(jnp.abs(a - b)))
        # bound covers bf16 matmul operands/weights + approx softmax reciprocal vs f32 ref
        assert err < 5e-2, f"mismatch for {modal}: max abs err {err}"

    print("KERNEL_OK")
</pallas_src>

<mosaic_0001>
module attributes {stable_mosaic.version = 11 : i64} {
  func.func @_fused_kernel(%arg0: i32, %arg1: i32, %arg2: memref<1x2x8x16xf32, #tpu.memory_space<vmem>>, %arg3: memref<1x8x16xf32, #tpu.memory_space<vmem>>, %arg4: memref<32x32xbf16, #tpu.memory_space<vmem>>, %arg5: memref<1x16x32xbf16, #tpu.memory_space<vmem>>, %arg6: memref<1x1x32xf32, #tpu.memory_space<vmem>>, %arg7: memref<1x1x32x96xbf16, #tpu.memory_space<vmem>>, %arg8: memref<1x1x1x96xf32, #tpu.memory_space<vmem>>, %arg9: memref<1x1x32x32xbf16, #tpu.memory_space<vmem>>, %arg10: memref<1x1x1x32xf32, #tpu.memory_space<vmem>>, %arg11: memref<1x1x1x32xf32, #tpu.memory_space<vmem>>, %arg12: memref<1x1x1x32xf32, #tpu.memory_space<vmem>>, %arg13: memref<1x1x32x2048xbf16, #tpu.memory_space<vmem>>, %arg14: memref<1x1x1x2048xf32, #tpu.memory_space<vmem>>, %arg15: memref<1x1x2048x32xbf16, #tpu.memory_space<vmem>>, %arg16: memref<1x1x1x32xf32, #tpu.memory_space<vmem>>, %arg17: memref<1x1x1x32xf32, #tpu.memory_space<vmem>>, %arg18: memref<1x1x1x32xf32, #tpu.memory_space<vmem>>, %arg19: memref<1x2x8x32xf32, #tpu.memory_space<vmem>>) attributes {dimension_semantics = [#tpu.dimension_semantics<parallel>, #tpu.dimension_semantics<arbitrary>], iteration_bounds = array<i64: 2, 2>, scalar_prefetch = 0 : i64, scratch_operands = 0 : i64, tpu.core_type = #tpu.core_type<tc>, window_params = [{transform_indices = @transform_0, window_bounds = array<i64: 1, 2, 8, 16>}, {transform_indices = @transform_1, window_bounds = array<i64: 1, 8, 16>}, {pipeline_mode = #tpu.pipeline_mode<synchronous>, transform_indices = @transform_2, window_bounds = array<i64: 32, 32>}, {transform_indices = @transform_3, window_bounds = array<i64: 1, 16, 32>}, {transform_indices = @transform_4, window_bounds = array<i64: 1, 1, 32>}, {transform_indices = @transform_5, window_bounds = array<i64: 1, 1, 32, 96>}, {transform_indices = @transform_6, window_bounds = array<i64: 1, 1, 1, 96>}, {transform_indices = @transform_7, window_bounds = array<i64: 1, 1, 32, 32>}, {transform_indices = @transform_8, window_bounds = array<i64: 1, 1, 1, 32>}, {transform_indices = @transform_9, window_bounds = array<i64: 1, 1, 1, 32>}, {transform_indices = @transform_10, window_bounds = array<i64: 1, 1, 1, 32>}, {transform_indices = @transform_11, window_bounds = array<i64: 1, 1, 32, 2048>}, {transform_indices = @transform_12, window_bounds = array<i64: 1, 1, 1, 2048>}, {transform_indices = @transform_13, window_bounds = array<i64: 1, 1, 2048, 32>}, {transform_indices = @transform_14, window_bounds = array<i64: 1, 1, 1, 32>}, {transform_indices = @transform_15, window_bounds = array<i64: 1, 1, 1, 32>}, {transform_indices = @transform_16, window_bounds = array<i64: 1, 1, 1, 32>}, {transform_indices = @transform_17, window_bounds = array<i64: 1, 2, 8, 32>}]} {
    %c0_i32 = arith.constant 0 : i32
    %0 = arith.cmpi eq, %arg1, %c0_i32 : i32
    %1 = arith.extui %0 : i1 to i32
    %c0_i32_0 = arith.constant 0 : i32
    %2 = arith.cmpi ne, %1, %c0_i32_0 : i32
    scf.if %2 {
      %c0_76 = arith.constant 0 : index
      %c0_77 = arith.constant 0 : index
      %c0_78 = arith.constant 0 : index
      %c0_79 = arith.constant 0 : index
      %125 = vector.load %arg2[%c0_76, %c0_77, %c0_78, %c0_79] : memref<1x2x8x16xf32, #tpu.memory_space<vmem>>, vector<1x2x8x16xf32>
      %126 = vector.shape_cast %125 : vector<1x2x8x16xf32> to vector<2x8x16xf32>
      %c0_80 = arith.constant 0 : index
      %c0_81 = arith.constant 0 : index
      %c0_82 = arith.constant 0 : index
      %127 = vector.load %arg3[%c0_80, %c0_81, %c0_82] : memref<1x8x16xf32, #tpu.memory_space<vmem>>, vector<1x8x16xf32>
      %128 = vector.shape_cast %127 : vector<1x8x16xf32> to vector<8x16xf32>
      %129 = vector.shape_cast %128 : vector<8x16xf32> to vector<1x8x16xf32>
      %130 = vector.broadcast %129 : vector<1x8x16xf32> to vector<2x8x16xf32>
      %131 = arith.addf %126, %130 : vector<2x8x16xf32>
      %132 = vector.shape_cast %131 : vector<2x8x16xf32> to vector<16x16xf32>
      %133 = arith.truncf %132 : vector<16x16xf32> to vector<16x16xbf16>
      %c0_83 = arith.constant 0 : index
      %c0_84 = arith.constant 0 : index
      %c0_85 = arith.constant 0 : index
      %134 = vector.load %arg5[%c0_83, %c0_84, %c0_85] : memref<1x16x32xbf16, #tpu.memory_space<vmem>>, vector<1x16x32xbf16>
      %135 = vector.shape_cast %134 : vector<1x16x32xbf16> to vector<16x32xbf16>
      %cst_86 = arith.constant dense<0.000000e+00> : vector<16x32xf32>
      %136 = tpu.matmul %133, %135, %cst_86 {dimension_numbers = #tpu.dot_dimension_numbers<[1], [0], [0], [1], [0, 0, 1, 1], [], []>} : vector<16x16xbf16>, vector<16x32xbf16>, vector<16x32xf32> -> vector<16x32xf32>
      %c0_87 = arith.constant 0 : index
      %c0_88 = arith.constant 0 : index
      %c0_89 = arith.constant 0 : index
      %137 = vector.load %arg6[%c0_87, %c0_88, %c0_89] : memref<1x1x32xf32, #tpu.memory_space<vmem>>, vector<1x1x32xf32>
      %138 = vector.shape_cast %137 : vector<1x1x32xf32> to vector<1x32xf32>
      %139 = vector.broadcast %138 : vector<1x32xf32> to vector<16x32xf32>
      %140 = arith.addf %136, %139 : vector<16x32xf32>
      %141 = vector.shape_cast %140 : vector<16x32xf32> to vector<1x2x8x32xf32>
      %c0_90 = arith.constant 0 : index
      %c0_91 = arith.constant 0 : index
      %c0_92 = arith.constant 0 : index
      %c0_93 = arith.constant 0 : index
      %142 = vector.load %arg19[%c0_90, %c0_91, %c0_92, %c0_93] : memref<1x2x8x32xf32, #tpu.memory_space<vmem>>, vector<1x2x8x32xf32>
      tpu.vector_store %arg19[%c0_90, %c0_91, %c0_92, %c0_93], %141 {strides = array<i32>} : memref<1x2x8x32xf32, #tpu.memory_space<vmem>>, vector<1x2x8x32xf32>,
    } else {
    }
    %c0 = arith.constant 0 : index
    %c0_1 = arith.constant 0 : index
    %c0_2 = arith.constant 0 : index
    %c0_3 = arith.constant 0 : index
    %3 = vector.load %arg19[%c0, %c0_1, %c0_2, %c0_3] : memref<1x2x8x32xf32, #tpu.memory_space<vmem>>, vector<1x2x8x32xf32>
    %4 = vector.shape_cast %3 : vector<1x2x8x32xf32> to vector<2x8x32xf32>
    %5 = vector.shape_cast %4 : vector<2x8x32xf32> to vector<16x32xf32>
    %6 = arith.truncf %5 : vector<16x32xf32> to vector<16x32xbf16>
    %c0_4 = arith.constant 0 : index
    %c0_5 = arith.constant 0 : index
    %c0_6 = arith.constant 0 : index
    %c0_7 = arith.constant 0 : index
    %7 = vector.load %arg7[%c0_4, %c0_5, %c0_6, %c0_7] : memref<1x1x32x96xbf16, #tpu.memory_space<vmem>>, vector<1x1x32x96xbf16>
    %8 = vector.shape_cast %7 : vector<1x1x32x96xbf16> to vector<32x96xbf16>
    %cst = arith.constant dense<0.000000e+00> : vector<16x96xf32>
    %9 = tpu.matmul %6, %8, %cst {dimension_numbers = #tpu.dot_dimension_numbers<[1], [0], [0], [1], [0, 0, 1, 1], [], []>} : vector<16x32xbf16>, vector<32x96xbf16>, vector<16x96xf32> -> vector<16x96xf32>
    %c0_8 = arith.constant 0 : index
    %c0_9 = arith.constant 0 : index
    %c0_10 = arith.constant 0 : index
    %c0_11 = arith.constant 0 : index
    %10 = vector.load %arg8[%c0_8, %c0_9, %c0_10, %c0_11] : memref<1x1x1x96xf32, #tpu.memory_space<vmem>>, vector<1x1x1x96xf32>
    %11 = vector.shape_cast %10 : vector<1x1x1x96xf32> to vector<1x96xf32>
    %12 = vector.broadcast %11 : vector<1x96xf32> to vector<16x96xf32>
    %13 = arith.addf %9, %12 : vector<16x96xf32>
    %14 = vector.shape_cast %13 : vector<16x96xf32> to vector<2x8x96xf32>
    %15 = vector.extract_strided_slice %14 {offsets = [0, 0, 0], sizes = [2, 8, 32], strides = [1, 1, 1]} : vector<2x8x96xf32> to vector<2x8x32xf32>
    %16 = vector.extract_strided_slice %14 {offsets = [0, 0, 32], sizes = [2, 8, 32], strides = [1, 1, 1]} : vector<2x8x96xf32> to vector<2x8x32xf32>
    %17 = vector.extract_strided_slice %14 {offsets = [0, 0, 64], sizes = [2, 8, 32], strides = [1, 1, 1]} : vector<2x8x96xf32> to vector<2x8x32xf32>
    %18 = vector.shape_cast %15 : vector<2x8x32xf32> to vector<2x1x8x32xf32>
    %19 = vector.shape_cast %16 : vector<2x8x32xf32> to vector<1x2x8x32xf32>
    %20 = vector.broadcast %18 : vector<2x1x8x32xf32> to vector<2x2x8x32xf32>
    %21 = vector.broadcast %19 : vector<1x2x8x32xf32> to vector<2x2x8x32xf32>
    %22 = arith.mulf %20, %21 : vector<2x2x8x32xf32>
    %23 = vector.shape_cast %22 : vector<2x2x8x32xf32> to vector<32x32xf32>
    %24 = arith.truncf %23 : vector<32x32xf32> to vector<32x32xbf16>
    %c0_12 = arith.constant 0 : index
    %c0_13 = arith.constant 0 : index
    %25 = vector.load %arg4[%c0_12, %c0_13] : memref<32x32xbf16, #tpu.memory_space<vmem>>, vector<32x32xbf16>
    %cst_14 = arith.constant dense<0.000000e+00> : vector<32x32xf32>
    %26 = tpu.matmul %24, %25, %cst_14 {dimension_numbers = #tpu.dot_dimension_numbers<[1], [0], [0], [1], [0, 0, 1, 1], [], []>} : vector<32x32xbf16>, vector<32x32xbf16>, vector<32x32xf32> -> vector<32x32xf32>
    %27 = vector.shape_cast %26 : vector<32x32xf32> to vector<2x2x8x32xf32>
    %cst_15 = arith.constant dense<0xFF800000> : vector<2x8x32xf32>
    %28 = vector.multi_reduction <maximumf>, %27, %cst_15 [1] : vector<2x2x8x32xf32> to vector<2x8x32xf32>
    %29 = vector.shape_cast %28 : vector<2x8x32xf32> to vector<2x1x8x32xf32>
    %30 = vector.broadcast %29 : vector<2x1x8x32xf32> to vector<2x2x8x32xf32>
    %31 = arith.subf %27, %30 : vector<2x2x8x32xf32>
    %32 = math.exp %31 : vector<2x2x8x32xf32>
    %cst_16 = arith.constant dense<0.000000e+00> : vector<2x8x32xf32>
    %33 = vector.multi_reduction <add>, %32, %cst_16 [1] : vector<2x2x8x32xf32> to vector<2x8x32xf32>
    %34 = vector.shape_cast %33 : vector<2x8x32xf32> to vector<2x1x8x32xf32>
    %35 = tpu.reciprocal %34 {approx = true} : vector<2x1x8x32xf32> -> vector<2x1x8x32xf32>
    %36 = vector.broadcast %35 : vector<2x1x8x32xf32> to vector<2x2x8x32xf32>
    %37 = arith.mulf %32, %36 : vector<2x2x8x32xf32>
    %38 = vector.shape_cast %17 : vector<2x8x32xf32> to vector<1x2x8x32xf32>
    %39 = vector.broadcast %38 : vector<1x2x8x32xf32> to vector<2x2x8x32xf32>
    %40 = arith.mulf %37, %39 : vector<2x2x8x32xf32>
    %cst_17 = arith.constant dense<0.000000e+00> : vector<2x8x32xf32>
    %41 = vector.multi_reduction <add>, %40, %cst_17 [1] : vector<2x2x8x32xf32> to vector<2x8x32xf32>
    %42 = vector.shape_cast %41 : vector<2x8x32xf32> to vector<16x32xf32>
    %43 = arith.truncf %42 : vector<16x32xf32> to vector<16x32xbf16>
    %c0_18 = arith.constant 0 : index
    %c0_19 = arith.constant 0 : index
    %c0_20 = arith.constant 0 : index
    %c0_21 = arith.constant 0 : index
    %44 = vector.load %arg9[%c0_18, %c0_19, %c0_20, %c0_21] : memref<1x1x32x32xbf16, #tpu.memory_space<vmem>>, vector<1x1x32x32xbf16>
    %45 = vector.shape_cast %44 : vector<1x1x32x32xbf16> to vector<32x32xbf16>
    %cst_22 = arith.constant dense<0.000000e+00> : vector<16x32xf32>
    %46 = tpu.matmul %43, %45, %cst_22 {dimension_numbers = #tpu.dot_dimension_numbers<[1], [0], [0], [1], [0, 0, 1, 1], [], []>} : vector<16x32xbf16>, vector<32x32xbf16>, vector<16x32xf32> -> vector<16x32xf32>
    %c0_23 = arith.constant 0 : index
    %c0_24 = arith.constant 0 : index
    %c0_25 = arith.constant 0 : index
    %c0_26 = arith.constant 0 : index
    %47 = vector.load %arg10[%c0_23, %c0_24, %c0_25, %c0_26] : memref<1x1x1x32xf32, #tpu.memory_space<vmem>>, vector<1x1x1x32xf32>
    %48 = vector.shape_cast %47 : vector<1x1x1x32xf32> to vector<1x32xf32>
    %49 = vector.broadcast %48 : vector<1x32xf32> to vector<16x32xf32>
    %50 = arith.addf %46, %49 : vector<16x32xf32>
    %51 = arith.addf %5, %50 : vector<16x32xf32>
    %c0_27 = arith.constant 0 : index
    %c0_28 = arith.constant 0 : index
    %c0_29 = arith.constant 0 : index
    %c0_30 = arith.constant 0 : index
    %52 = vector.load %arg11[%c0_27, %c0_28, %c0_29, %c0_30] : memref<1x1x1x32xf32, #tpu.memory_space<vmem>>, vector<1x1x1x32xf32>
    %53 = vector.shape_cast %52 : vector<1x1x1x32xf32> to vector<1x32xf32>
    %c0_31 = arith.constant 0 : index
    %c0_32 = arith.constant 0 : index
    %c0_33 = arith.constant 0 : index
    %c0_34 = arith.constant 0 : index
    %54 = vector.load %arg12[%c0_31, %c0_32, %c0_33, %c0_34] : memref<1x1x1x32xf32, #tpu.memory_space<vmem>>, vector<1x1x1x32xf32>
    %55 = vector.shape_cast %54 : vector<1x1x1x32xf32> to vector<1x32xf32>
    %cst_35 = arith.constant dense<0.000000e+00> : vector<16xf32>
    %56 = vector.multi_reduction <add>, %51, %cst_35 [1] : vector<16x32xf32> to vector<16xf32>
    %57 = vector.shape_cast %56 : vector<16xf32> to vector<16x1xf32>
    %cst_36 = arith.constant 3.200000e+01 : f32
    %58 = vector.broadcast %cst_36 : f32 to vector<16x1xf32>
    %59 = arith.divf %57, %58 : vector<16x1xf32>
    %60 = vector.broadcast %59 : vector<16x1xf32> to vector<16x32xf32>
    %61 = arith.subf %51, %60 : vector<16x32xf32>
    %62 = arith.mulf %61, %61 : vector<16x32xf32>
    %cst_37 = arith.constant dense<0.000000e+00> : vector<16xf32>
    %63 = vector.multi_reduction <add>, %62, %cst_37 [1] : vector<16x32xf32> to vector<16xf32>
    %64 = vector.shape_cast %63 : vector<16xf32> to vector<16x1xf32>
    %cst_38 = arith.constant 3.200000e+01 : f32
    %65 = vector.broadcast %cst_38 : f32 to vector<16x1xf32>
    %66 = arith.divf %64, %65 : vector<16x1xf32>
    %67 = vector.broadcast %59 : vector<16x1xf32> to vector<16x32xf32>
    %68 = arith.subf %51, %67 : vector<16x32xf32>
    %cst_39 = arith.constant 9.99999974E-6 : f32
    %69 = vector.broadcast %cst_39 : f32 to vector<16x1xf32>
    %70 = arith.addf %66, %69 : vector<16x1xf32>
    %71 = math.rsqrt %70 : vector<16x1xf32>
    %72 = vector.broadcast %71 : vector<16x1xf32> to vector<16x32xf32>
    %73 = arith.mulf %68, %72 : vector<16x32xf32>
    %74 = vector.broadcast %53 : vector<1x32xf32> to vector<16x32xf32>
    %75 = arith.mulf %73, %74 : vector<16x32xf32>
    %76 = vector.broadcast %55 : vector<1x32xf32> to vector<16x32xf32>
    %77 = arith.addf %75, %76 : vector<16x32xf32>
    %78 = arith.truncf %77 : vector<16x32xf32> to vector<16x32xbf16>
    %c0_40 = arith.constant 0 : index
    %c0_41 = arith.constant 0 : index
    %c0_42 = arith.constant 0 : index
    %c0_43 = arith.constant 0 : index
    %79 = vector.load %arg13[%c0_40, %c0_41, %c0_42, %c0_43] : memref<1x1x32x2048xbf16, #tpu.memory_space<vmem>>, vector<1x1x32x2048xbf16>
    %80 = vector.shape_cast %79 : vector<1x1x32x2048xbf16> to vector<32x2048xbf16>
    %cst_44 = arith.constant dense<0.000000e+00> : vector<16x2048xf32>
    %81 = tpu.matmul %78, %80, %cst_44 {dimension_numbers = #tpu.dot_dimension_numbers<[1], [0], [0], [1], [0, 0, 1, 1], [], []>} : vector<16x32xbf16>, vector<32x2048xbf16>, vector<16x2048xf32> -> vector<16x2048xf32>
    %c0_45 = arith.constant 0 : index
    %c0_46 = arith.constant 0 : index
    %c0_47 = arith.constant 0 : index
    %c0_48 = arith.constant 0 : index
    %82 = vector.load %arg14[%c0_45, %c0_46, %c0_47, %c0_48] : memref<1x1x1x2048xf32, #tpu.memory_space<vmem>>, vector<1x1x1x2048xf32>
    %83 = vector.shape_cast %82 : vector<1x1x1x2048xf32> to vector<1x2048xf32>
    %84 = vector.broadcast %83 : vector<1x2048xf32> to vector<16x2048xf32>
    %85 = arith.addf %81, %84 : vector<16x2048xf32>
    %cst_49 = arith.constant 0.000000e+00 : f32
    %86 = vector.broadcast %cst_49 : f32 to vector<16x2048xf32>
    %87 = arith.maximumf %85, %86 : vector<16x2048xf32>
    %88 = arith.truncf %87 : vector<16x2048xf32> to vector<16x2048xbf16>
    %c0_50 = arith.constant 0 : index
    %c0_51 = arith.constant 0 : index
    %c0_52 = arith.constant 0 : index
    %c0_53 = arith.constant 0 : index
    %89 = vector.load %arg15[%c0_50, %c0_51, %c0_52, %c0_53] : memref<1x1x2048x32xbf16, #tpu.memory_space<vmem>>, vector<1x1x2048x32xbf16>
    %90 = vector.shape_cast %89 : vector<1x1x2048x32xbf16> to vector<2048x32xbf16>
    %cst_54 = arith.constant dense<0.000000e+00> : vector<16x32xf32>
    %91 = tpu.matmul %88, %90, %cst_54 {dimension_numbers = #tpu.dot_dimension_numbers<[1], [0], [0], [1], [0, 0, 1, 1], [], []>} : vector<16x2048xbf16>, vector<2048x32xbf16>, vector<16x32xf32> -> vector<16x32xf32>
    %c0_55 = arith.constant 0 : index
    %c0_56 = arith.constant 0 : index
    %c0_57 = arith.constant 0 : index
    %c0_58 = arith.constant 0 : index
    %92 = vector.load %arg16[%c0_55, %c0_56, %c0_57, %c0_58] : memref<1x1x1x32xf32, #tpu.memory_space<vmem>>, vector<1x1x1x32xf32>
    %93 = vector.shape_cast %92 : vector<1x1x1x32xf32> to vector<1x32xf32>
    %94 = vector.broadcast %93 : vector<1x32xf32> to vector<16x32xf32>
    %95 = arith.addf %91, %94 : vector<16x32xf32>
    %96 = arith.addf %77, %95 : vector<16x32xf32>
    %c0_59 = arith.constant 0 : index
    %c0_60 = arith.constant 0 : index
    %c0_61 = arith.constant 0 : index
    %c0_62 = arith.constant 0 : index
    %97 = vector.load %arg17[%c0_59, %c0_60, %c0_61, %c0_62] : memref<1x1x1x32xf32, #tpu.memory_space<vmem>>, vector<1x1x1x32xf32>
    %98 = vector.shape_cast %97 : vector<1x1x1x32xf32> to vector<1x32xf32>
    %c0_63 = arith.constant 0 : index
    %c0_64 = arith.constant 0 : index
    %c0_65 = arith.constant 0 : index
    %c0_66 = arith.constant 0 : index
    %99 = vector.load %arg18[%c0_63, %c0_64, %c0_65, %c0_66] : memref<1x1x1x32xf32, #tpu.memory_space<vmem>>, vector<1x1x1x32xf32>
    %100 = vector.shape_cast %99 : vector<1x1x1x32xf32> to vector<1x32xf32>
    %cst_67 = arith.constant dense<0.000000e+00> : vector<16xf32>
    %101 = vector.multi_reduction <add>, %96, %cst_67 [1] : vector<16x32xf32> to vector<16xf32>
    %102 = vector.shape_cast %101 : vector<16xf32> to vector<16x1xf32>
    %cst_68 = arith.constant 3.200000e+01 : f32
    %103 = vector.broadcast %cst_68 : f32 to vector<16x1xf32>
    %104 = arith.divf %102, %103 : vector<16x1xf32>
    %105 = vector.broadcast %104 : vector<16x1xf32> to vector<16x32xf32>
    %106 = arith.subf %96, %105 : vector<16x32xf32>
    %107 = arith.mulf %106, %106 : vector<16x32xf32>
    %cst_69 = arith.constant dense<0.000000e+00> : vector<16xf32>
    %108 = vector.multi_reduction <add>, %107, %cst_69 [1] : vector<16x32xf32> to vector<16xf32>
    %109 = vector.shape_cast %108 : vector<16xf32> to vector<16x1xf32>
    %cst_70 = arith.constant 3.200000e+01 : f32
    %110 = vector.broadcast %cst_70 : f32 to vector<16x1xf32>
    %111 = arith.divf %109, %110 : vector<16x1xf32>
    %112 = vector.broadcast %104 : vector<16x1xf32> to vector<16x32xf32>
    %113 = arith.subf %96, %112 : vector<16x32xf32>
    %cst_71 = arith.constant 9.99999974E-6 : f32
    %114 = vector.broadcast %cst_71 : f32 to vector<16x1xf32>
    %115 = arith.addf %111, %114 : vector<16x1xf32>
    %116 = math.rsqrt %115 : vector<16x1xf32>
    %117 = vector.broadcast %116 : vector<16x1xf32> to vector<16x32xf32>
    %118 = arith.mulf %113, %117 : vector<16x32xf32>
    %119 = vector.broadcast %98 : vector<1x32xf32> to vector<16x32xf32>
    %120 = arith.mulf %118, %119 : vector<16x32xf32>
    %121 = vector.broadcast %100 : vector<1x32xf32> to vector<16x32xf32>
    %122 = arith.addf %120, %121 : vector<16x32xf32>
    %123 = vector.shape_cast %122 : vector<16x32xf32> to vector<1x2x8x32xf32>
    %c0_72 = arith.constant 0 : index
    %c0_73 = arith.constant 0 : index
    %c0_74 = arith.constant 0 : index
    %c0_75 = arith.constant 0 : index
    %124 = vector.load %arg19[%c0_72, %c0_73, %c0_74, %c0_75] : memref<1x2x8x32xf32, #tpu.memory_space<vmem>>, vector<1x2x8x32xf32>
    tpu.vector_store %arg19[%c0_72, %c0_73, %c0_74, %c0_75], %123 {strides = array<i32>} : memref<1x2x8x32xf32, #tpu.memory_space<vmem>>, vector<1x2x8x32xf32>,
    return
  }
  func.func @transform_0(%arg0: i32, %arg1: i32) -> (i32, i32, i32, i32) {
    %c0_i32 = arith.constant 0 : i32
    %c0_i32_0 = arith.constant 0 : i32
    %c0_i32_1 = arith.constant 0 : i32
    %c0_i32_2 = arith.constant 0 : i32
    return %arg0, %c0_i32, %c0_i32_0, %c0_i32_1 : i32, i32, i32, i32
  }
  func.func @transform_1(%arg0: i32, %arg1: i32) -> (i32, i32, i32) {
    %c0_i32 = arith.constant 0 : i32
    %c0_i32_0 = arith.constant 0 : i32
    %c0_i32_1 = arith.constant 0 : i32
    return %arg0, %c0_i32, %c0_i32_0 : i32, i32, i32
  }
  func.func @transform_2(%arg0: i32, %arg1: i32) -> (i32, i32) {
    %c0_i32 = arith.constant 0 : i32
    %c0_i32_0 = arith.constant 0 : i32
    %c0_i32_1 = arith.constant 0 : i32
    return %c0_i32, %c0_i32_0 : i32, i32
  }
  func.func @transform_3(%arg0: i32, %arg1: i32) -> (i32, i32, i32) {
    %c0_i32 = arith.constant 0 : i32
    %c0_i32_0 = arith.constant 0 : i32
    %c0_i32_1 = arith.constant 0 : i32
    return %arg0, %c0_i32, %c0_i32_0 : i32, i32, i32
  }
  func.func @transform_4(%arg0: i32, %arg1: i32) -> (i32, i32, i32) {
    %c0_i32 = arith.constant 0 : i32
    %c0_i32_0 = arith.constant 0 : i32
    %c0_i32_1 = arith.constant 0 : i32
    return %arg0, %c0_i32, %c0_i32_0 : i32, i32, i32
  }
  func.func @transform_5(%arg0: i32, %arg1: i32) -> (i32, i32, i32, i32) {
    %c0_i32 = arith.constant 0 : i32
    %c0_i32_0 = arith.constant 0 : i32
    %c0_i32_1 = arith.constant 0 : i32
    return %arg0, %arg1, %c0_i32, %c0_i32_0 : i32, i32, i32, i32
  }
  func.func @transform_6(%arg0: i32, %arg1: i32) -> (i32, i32, i32, i32) {
    %c0_i32 = arith.constant 0 : i32
    %c0_i32_0 = arith.constant 0 : i32
    %c0_i32_1 = arith.constant 0 : i32
    return %arg0, %arg1, %c0_i32, %c0_i32_0 : i32, i32, i32, i32
  }
  func.func @transform_7(%arg0: i32, %arg1: i32) -> (i32, i32, i32, i32) {
    %c0_i32 = arith.constant 0 : i32
    %c0_i32_0 = arith.constant 0 : i32
    %c0_i32_1 = arith.constant 0 : i32
    return %arg0, %arg1, %c0_i32, %c0_i32_0 : i32, i32, i32, i32
  }
  func.func @transform_8(%arg0: i32, %arg1: i32) -> (i32, i32, i32, i32) {
    %c0_i32 = arith.constant 0 : i32
    %c0_i32_0 = arith.constant 0 : i32
    %c0_i32_1 = arith.constant 0 : i32
    return %arg0, %arg1, %c0_i32, %c0_i32_0 : i32, i32, i32, i32
  }
  func.func @transform_9(%arg0: i32, %arg1: i32) -> (i32, i32, i32, i32) {
    %c0_i32 = arith.constant 0 : i32
    %c0_i32_0 = arith.constant 0 : i32
    %c0_i32_1 = arith.constant 0 : i32
    return %arg0, %arg1, %c0_i32, %c0_i32_0 : i32, i32, i32, i32
  }
  func.func @transform_10(%arg0: i32, %arg1: i32) -> (i32, i32, i32, i32) {
    %c0_i32 = arith.constant 0 : i32
    %c0_i32_0 = arith.constant 0 : i32
    %c0_i32_1 = arith.constant 0 : i32
    return %arg0, %arg1, %c0_i32, %c0_i32_0 : i32, i32, i32, i32
  }
  func.func @transform_11(%arg0: i32, %arg1: i32) -> (i32, i32, i32, i32) {
    %c0_i32 = arith.constant 0 : i32
    %c0_i32_0 = arith.constant 0 : i32
    %c0_i32_1 = arith.constant 0 : i32
    return %arg0, %arg1, %c0_i32, %c0_i32_0 : i32, i32, i32, i32
  }
  func.func @transform_12(%arg0: i32, %arg1: i32) -> (i32, i32, i32, i32) {
    %c0_i32 = arith.constant 0 : i32
    %c0_i32_0 = arith.constant 0 : i32
    %c0_i32_1 = arith.constant 0 : i32
    return %arg0, %arg1, %c0_i32, %c0_i32_0 : i32, i32, i32, i32
  }
  func.func @transform_13(%arg0: i32, %arg1: i32) -> (i32, i32, i32, i32) {
    %c0_i32 = arith.constant 0 : i32
    %c0_i32_0 = arith.constant 0 : i32
    %c0_i32_1 = arith.constant 0 : i32
    return %arg0, %arg1, %c0_i32, %c0_i32_0 : i32, i32, i32, i32
  }
  func.func @transform_14(%arg0: i32, %arg1: i32) -> (i32, i32, i32, i32) {
    %c0_i32 = arith.constant 0 : i32
    %c0_i32_0 = arith.constant 0 : i32
    %c0_i32_1 = arith.constant 0 : i32
    return %arg0, %arg1, %c0_i32, %c0_i32_0 : i32, i32, i32, i32
  }
  func.func @transform_15(%arg0: i32, %arg1: i32) -> (i32, i32, i32, i32) {
    %c0_i32 = arith.constant 0 : i32
    %c0_i32_0 = arith.constant 0 : i32
    %c0_i32_1 = arith.constant 0 : i32
    return %arg0, %arg1, %c0_i32, %c0_i32_0 : i32, i32, i32, i32
  }
  func.func @transform_16(%arg0: i32, %arg1: i32) -> (i32, i32, i32, i32) {
    %c0_i32 = arith.constant 0 : i32
    %c0_i32_0 = arith.constant 0 : i32
    %c0_i32_1 = arith.constant 0 : i32
    return %arg0, %arg1, %c0_i32, %c0_i32_0 : i32, i32, i32, i32
  }
  func.func @transform_17(%arg0: i32, %arg1: i32) -> (i32, i32, i32, i32) {
    %c0_i32 = arith.constant 0 : i32
    %c0_i32_0 = arith.constant 0 : i32
    %c0_i32_1 = arith.constant 0 : i32
    %c0_i32_2 = arith.constant 0 : i32
    return %arg0, %c0_i32, %c0_i32_0, %c0_i32_1 : i32, i32, i32, i32
  }
}

</mosaic_0001>

<llo_original>
// kernel: tpu_custom_call.1
$region0: #{tpu_custom_call.1}
  #allocation0 [shape = 'u32[]', space=smem, size = 0x4, offset = 0x4, fixed_abs, tag = 'smem constant byte address 0x4 - core index']
  #allocation1 [shape = 'u32[144,128]{1,0:T(1,128)}', space=vmem, size = 0x12000, scoped, tag = 'internal scratch']
  %s0 = inlined_call_operand.vmem [shape: f32[2,2,8,16], index: 0, kind: input, shape index: {}]
  %s1 = inlined_call_operand.vmem [shape: f32[2,8,16], index: 1, kind: input, shape index: {}]
  %s2 = inlined_call_operand.vmem [shape: bf16[32,32], index: 2, kind: input, shape index: {}]
  %s3 = inlined_call_operand.vmem [shape: bf16[2,16,32], index: 3, kind: input, shape index: {}]
  %s4 = inlined_call_operand.vmem [shape: f32[2,1,32], index: 4, kind: input, shape index: {}]
  %s5 = inlined_call_operand.vmem [shape: bf16[2,2,32,96], index: 5, kind: input, shape index: {}]
  %s6 = inlined_call_operand.vmem [shape: f32[2,2,1,96], index: 6, kind: input, shape index: {}]
  %s7 = inlined_call_operand.vmem [shape: bf16[2,2,32,32], index: 7, kind: input, shape index: {}]
  %s8 = inlined_call_operand.vmem [shape: f32[2,2,1,32], index: 8, kind: input, shape index: {}]
  %s9 = inlined_call_operand.vmem [shape: f32[2,2,1,32], index: 9, kind: input, shape index: {}]
  %s10 = inlined_call_operand.vmem [shape: f32[2,2,1,32], index: 10, kind: input, shape index: {}]
  %s11 = inlined_call_operand.vmem [shape: bf16[2,2,32,2048], index: 11, kind: input, shape index: {}]
  %s12 = inlined_call_operand.vmem [shape: f32[2,2,1,2048], index: 12, kind: input, shape index: {}]
  %s13 = inlined_call_operand.vmem [shape: bf16[2,2,2048,32], index: 13, kind: input, shape index: {}]
  %s14 = inlined_call_operand.vmem [shape: f32[2,2,1,32], index: 14, kind: input, shape index: {}]
  %s15 = inlined_call_operand.vmem [shape: f32[2,2,1,32], index: 15, kind: input, shape index: {}]
  %s16 = inlined_call_operand.vmem [shape: f32[2,2,1,32], index: 16, kind: input, shape index: {}]
  %s17 = inlined_call_operand.hbm [shape: f32[2,2,8,32], index: 17, kind: output, shape index: {}]
  %s18 = sld [smem:[#allocation0]]
  $region105: #{tpu_custom_call.1} parent=0
    _
  %s20 = ssub.s32 1, %s18
  %s21 = scalar_select 0, %s20, %s18
  $region1: #{tpu_custom_call.1} parent=0
    #allocation2 [shape = 'u8[16384]{0}', space=vmem, size = 0x4000, scoped, tag = 'output window, operand 0']
    #allocation3 [shape = 's32[2]{0}', space=sflag, size = 0x8, scoped, tag = 'scoped memory for tpu_custom_call.1']
    %22 = vsyncpa [#allocation3], 0
    %s23 = scalar_lea.sflag [#allocation3], 1
    %24 = vsyncpa %s23, 0
    loop: start=0, step=1, limit=6
    $region2: #{tpu_custom_call.1} parent=1 // loop_pre_header
      _
    $region3: #{tpu_custom_call.1} parent=1 // loop_header
      %s26 = sphi 0, %s30
      %p27 = scmp.ge.s32.totalorder %s26, 6
      %s33 = sphi 0, %s45
      %s34 = sphi 0, %s41
      %s35 = sphi 0, %s33
      %s36 = sphi 0, %s34
      %s37 = sphi 0, %s35
      %s38 = sphi 0, %s36
      %s48 = sphi 0, %s50
      %s51 = sphi 0, %s48
      %s52 = sphi 0, %s51
      %s68 = sphi 0, %s52
      %s74 = sphi 0, %s76
      %s77 = sphi 0, %s74
      %s78 = sphi 0, %s77
      %s94 = sphi 0, %s78
      %s98 = sphi 0, %s98
      %s100 = sphi 0, %s98
      %s101 = sphi 0, %s100
      %s115 = sphi 0, %s101
      %s121 = sphi 0, %s123
      %s124 = sphi 0, %s121
      %s125 = sphi 0, %s124
      %s141 = sphi 0, %s125
      %s147 = sphi 0, %s149
      %s150 = sphi 0, %s147
      %s151 = sphi 0, %s150
      %s167 = sphi 0, %s151
      %s175 = sphi 0, %s177
      %s178 = sphi 0, %s175
      %s179 = sphi 0, %s178
      %s195 = sphi 0, %s179
      %s203 = sphi 0, %s205
      %s206 = sphi 0, %s203
      %s207 = sphi 0, %s206
      %s223 = sphi 0, %s207
      %s231 = sphi 0, %s233
      %s234 = sphi 0, %s231
      %s235 = sphi 0, %s234
      %s251 = sphi 0, %s235
      %s259 = sphi 0, %s261
      %s262 = sphi 0, %s259
      %s263 = sphi 0, %s262
      %s279 = sphi 0, %s263
      %s287 = sphi 0, %s289
      %s290 = sphi 0, %s287
      %s291 = sphi 0, %s290
      %s307 = sphi 0, %s291
      %s315 = sphi 0, %s317
      %s318 = sphi 0, %s315
      %s319 = sphi 0, %s318
      %s335 = sphi 0, %s319
      %s343 = sphi 0, %s345
      %s346 = sphi 0, %s343
      %s347 = sphi 0, %s346
      %s363 = sphi 0, %s347
      %s371 = sphi 0, %s373
      %s374 = sphi 0, %s371
      %s375 = sphi 0, %s374
      %s391 = sphi 0, %s375
      %s399 = sphi 0, %s401
      %s402 = sphi 0, %s399
      %s403 = sphi 0, %s402
      %s419 = sphi 0, %s403
      %s427 = sphi 0, %s429
      %s430 = sphi 0, %s427
      %s431 = sphi 0, %s430
      %s447 = sphi 0, %s431
      %s455 = sphi 0, %s457
      %s458 = sphi 0, %s455
      %s459 = sphi 0, %s458
      %s475 = sphi 0, %s459
      %s483 = sphi 0, %s485
      %s486 = sphi 0, %s483
      %s487 = sphi 0, %s486
      %s503 = sphi 0, %s487
      %s509 = sphi 0, %s511
      %s512 = sphi 0, %s509
      %s513 = sphi 0, %s512
      %s529 = sphi 0, %s513
    $region4: #{tpu_custom_call.1} parent=1 // loop_header_branch
      %29 = sbr.rel (%p27) target = $region8
    $region5: #{tpu_custom_call.1} parent=1 // loop_body
      %s31 = ssub.s32 %s26, 1
      %s32 = ssub.s32 %s26, 2
      %s39 = sadd.s32 1, %s34
      %p40 = scmp.ge.s32.totalorder %s39, 2
      %s41 = scalar_select %p40, 0, %s39
      %s42 = sadd.s32 1, %s33
      %s43 = scalar_select %p40, %s42, %s33
      %p44 = scmp.ge.s32.totalorder %s43, 2
      %s45 = scalar_select %p44, 0, %s43
      %s46 = ssub.s32 %s33, %s45
      %p47 = scmp.eq.s32.totalorder %s46, 0
      %s49 = sadd.s32 %s48, 1
      %s50 = scalar_select %p47, %s48, %s49
      %p53 = pneg %p47
      %p54 = scmp.eq.s32.totalorder %s26, 3
      %p55 = por %p53, %p54
      %p56 = scmp.ne.s32.totalorder %s48, %s51
      %p57 = scmp.eq.s32.totalorder %s26, 0
      %p58 = por %p56, %p57
      %p59 = scmp.ne.s32.totalorder %s48, %s51
      %p60 = scmp.eq.s32.totalorder %s31, 3
      %p61 = por %p59, %p60
      %p62 = scmp.ne.s32.totalorder %s51, %s52
      %p63 = scmp.eq.s32.totalorder %s31, 0
      %p64 = por %p62, %p63
      %p65 = scmp.ne.s32.totalorder %s51, %s52
      %p66 = scmp.eq.s32.totalorder %s32, 3
      %p67 = por %p65, %p66
      %p69 = scmp.ne.s32.totalorder %s52, %s68
      %p70 = scmp.eq.s32.totalorder %s32, 0
      %p71 = por %p69, %p70
      %s72 = ssub.s32 %s33, %s45
      %p73 = scmp.eq.s32.totalorder %s72, 0
      %s75 = sadd.s32 %s74, 1
      %s76 = scalar_select %p73, %s74, %s75
      %p79 = pneg %p73
      %p80 = scmp.eq.s32.totalorder %s26, 3
      %p81 = por %p79, %p80
      %p82 = scmp.ne.s32.totalorder %s74, %s77
      %p83 = scmp.eq.s32.totalorder %s26, 0
      %p84 = por %p82, %p83
      %p85 = scmp.ne.s32.totalorder %s74, %s77
      %p86 = scmp.eq.s32.totalorder %s31, 3
      %p87 = por %p85, %p86
      %p88 = scmp.ne.s32.totalorder %s77, %s78
      %p89 = scmp.eq.s32.totalorder %s31, 0
      %p90 = por %p88, %p89
      %p91 = scmp.ne.s32.totalorder %s77, %s78
      %p92 = scmp.eq.s32.totalorder %s32, 3
      %p93 = por %p91, %p92
      %p95 = scmp.ne.s32.totalorder %s78, %s94
      %p96 = scmp.eq.s32.totalorder %s32, 0
      %p97 = por %p95, %p96
      %s99 = sadd.s32 %s98, 1
      %p102 = scmp.eq.s32.totalorder %s26, 3
      %p103 = scmp.ne.s32.totalorder %s98, %s100
      %p104 = scmp.eq.s32.totalorder %s26, 0
      %p105 = por %p103, %p104
      %p106 = scmp.ne.s32.totalorder %s98, %s100
      %p107 = scmp.eq.s32.totalorder %s31, 3
      %p108 = por %p106, %p107
      %p109 = scmp.ne.s32.totalorder %s100, %s101
      %p110 = scmp.eq.s32.totalorder %s31, 0
      %p111 = por %p109, %p110
      %p112 = scmp.ne.s32.totalorder %s100, %s101
      %p113 = scmp.eq.s32.totalorder %s32, 3
      %p114 = por %p112, %p113
      %p116 = scmp.ne.s32.totalorder %s101, %s115
      %p117 = scmp.eq.s32.totalorder %s32, 0
      %p118 = por %p116, %p117
      %s119 = ssub.s32 %s33, %s45
      %p120 = scmp.eq.s32.totalorder %s119, 0
      %s122 = sadd.s32 %s121, 1
      %s123 = scalar_select %p120, %s121, %s122
      %p126 = pneg %p120
      %p127 = scmp.eq.s32.totalorder %s26, 3
      %p128 = por %p126, %p127
      %p129 = scmp.ne.s32.totalorder %s121, %s124
      %p130 = scmp.eq.s32.totalorder %s26, 0
      %p131 = por %p129, %p130
      %p132 = scmp.ne.s32.totalorder %s121, %s124
      %p133 = scmp.eq.s32.totalorder %s31, 3
      %p134 = por %p132, %p133
      %p135 = scmp.ne.s32.totalorder %s124, %s125
      %p136 = scmp.eq.s32.totalorder %s31, 0
      %p137 = por %p135, %p136
      %p138 = scmp.ne.s32.totalorder %s124, %s125
      %p139 = scmp.eq.s32.totalorder %s32, 3
      %p140 = por %p138, %p139
      %p142 = scmp.ne.s32.totalorder %s125, %s141
      %p143 = scmp.eq.s32.totalorder %s32, 0
      %p144 = por %p142, %p143
      %s145 = ssub.s32 %s33, %s45
      %p146 = scmp.eq.s32.totalorder %s145, 0
      %s148 = sadd.s32 %s147, 1
      %s149 = scalar_select %p146, %s147, %s148
      %p152 = pneg %p146
      %p153 = scmp.eq.s32.totalorder %s26, 3
      %p154 = por %p152, %p153
      %p155 = scmp.ne.s32.totalorder %s147, %s150
      %p156 = scmp.eq.s32.totalorder %s26, 0
      %p157 = por %p155, %p156
      %p158 = scmp.ne.s32.totalorder %s147, %s150
      %p159 = scmp.eq.s32.totalorder %s31, 3
      %p160 = por %p158, %p159
      %p161 = scmp.ne.s32.totalorder %s150, %s151
      %p162 = scmp.eq.s32.totalorder %s31, 0
      %p163 = por %p161, %p162
      %p164 = scmp.ne.s32.totalorder %s150, %s151
      %p165 = scmp.eq.s32.totalorder %s32, 3
      %p166 = por %p164, %p165
      %p168 = scmp.ne.s32.totalorder %s151, %s167
      %p169 = scmp.eq.s32.totalorder %s32, 0
      %p170 = por %p168, %p169
      %s171 = ssub.s32 %s33, %s45
      %s172 = ssub.s32 %s34, %s41
      %s173 = sor.u32 %s171, %s172
      %p174 = scmp.eq.s32.totalorder %s173, 0
      %s176 = sadd.s32 %s175, 1
      %s177 = scalar_select %p174, %s175, %s176
      %p180 = pneg %p174
      %p181 = scmp.eq.s32.totalorder %s26, 3
      %p182 = por %p180, %p181
      %p183 = scmp.ne.s32.totalorder %s175, %s178
      %p184 = scmp.eq.s32.totalorder %s26, 0
      %p185 = por %p183, %p184
      %p186 = scmp.ne.s32.totalorder %s175, %s178
      %p187 = scmp.eq.s32.totalorder %s31, 3
      %p188 = por %p186, %p187
      %p189 = scmp.ne.s32.totalorder %s178, %s179
      %p190 = scmp.eq.s32.totalorder %s31, 0
      %p191 = por %p189, %p190
      %p192 = scmp.ne.s32.totalorder %s178, %s179
      %p193 = scmp.eq.s32.totalorder %s32, 3
      %p194 = por %p192, %p193
      %p196 = scmp.ne.s32.totalorder %s179, %s195
      %p197 = scmp.eq.s32.totalorder %s32, 0
      %p198 = por %p196, %p197
      %s199 = ssub.s32 %s33, %s45
      %s200 = ssub.s32 %s34, %s41
      %s201 = sor.u32 %s199, %s200
      %p202 = scmp.eq.s32.totalorder %s201, 0
      %s204 = sadd.s32 %s203, 1
      %s205 = scalar_select %p202, %s203, %s204
      %p208 = pneg %p202
      %p209 = scmp.eq.s32.totalorder %s26, 3
      %p210 = por %p208, %p209
      %p211 = scmp.ne.s32.totalorder %s203, %s206
      %p212 = scmp.eq.s32.totalorder %s26, 0
      %p213 = por %p211, %p212
      %p214 = scmp.ne.s32.totalorder %s203, %s206
      %p215 = scmp.eq.s32.totalorder %s31, 3
      %p216 = por %p214, %p215
      %p217 = scmp.ne.s32.totalorder %s206, %s207
      %p218 = scmp.eq.s32.totalorder %s31, 0
      %p219 = por %p217, %p218
      %p220 = scmp.ne.s32.totalorder %s206, %s207
      %p221 = scmp.eq.s32.totalorder %s32, 3
      %p222 = por %p220, %p221
      %p224 = scmp.ne.s32.totalorder %s207, %s223
      %p225 = scmp.eq.s32.totalorder %s32, 0
      %p226 = por %p224, %p225
      %s227 = ssub.s32 %s33, %s45
      %s228 = ssub.s32 %s34, %s41
      %s229 = sor.u32 %s227, %s228
      %p230 = scmp.eq.s32.totalorder %s229, 0
      %s232 = sadd.s32 %s231, 1
      %s233 = scalar_select %p230, %s231, %s232
      %p236 = pneg %p230
      %p237 = scmp.eq.s32.totalorder %s26, 3
      %p238 = por %p236, %p237
      %p239 = scmp.ne.s32.totalorder %s231, %s234
      %p240 = scmp.eq.s32.totalorder %s26, 0
      %p241 = por %p239, %p240
      %p242 = scmp.ne.s32.totalorder %s231, %s234
      %p243 = scmp.eq.s32.totalorder %s31, 3
      %p244 = por %p242, %p243
      %p245 = scmp.ne.s32.totalorder %s234, %s235
      %p246 = scmp.eq.s32.totalorder %s31, 0
      %p247 = por %p245, %p246
      %p248 = scmp.ne.s32.totalorder %s234, %s235
      %p249 = scmp.eq.s32.totalorder %s32, 3
      %p250 = por %p248, %p249
      %p252 = scmp.ne.s32.totalorder %s235, %s251
      %p253 = scmp.eq.s32.totalorder %s32, 0
      %p254 = por %p252, %p253
      %s255 = ssub.s32 %s33, %s45
      %s256 = ssub.s32 %s34, %s41
      %s257 = sor.u32 %s255, %s256
      %p258 = scmp.eq.s32.totalorder %s257, 0
      %s260 = sadd.s32 %s259, 1
      %s261 = scalar_select %p258, %s259, %s260
      %p264 = pneg %p258
      %p265 = scmp.eq.s32.totalorder %s26, 3
      %p266 = por %p264, %p265
      %p267 = scmp.ne.s32.totalorder %s259, %s262
      %p268 = scmp.eq.s32.totalorder %s26, 0
      %p269 = por %p267, %p268
      %p270 = scmp.ne.s32.totalorder %s259, %s262
      %p271 = scmp.eq.s32.totalorder %s31, 3
      %p272 = por %p270, %p271
      %p273 = scmp.ne.s32.totalorder %s262, %s263
      %p274 = scmp.eq.s32.totalorder %s31, 0
      %p275 = por %p273, %p274
      %p276 = scmp.ne.s32.totalorder %s262, %s263
      %p277 = scmp.eq.s32.totalorder %s32, 3
      %p278 = por %p276, %p277
      %p280 = scmp.ne.s32.totalorder %s263, %s279
      %p281 = scmp.eq.s32.totalorder %s32, 0
      %p282 = por %p280, %p281
      %s283 = ssub.s32 %s33, %s45
      %s284 = ssub.s32 %s34, %s41
      %s285 = sor.u32 %s283, %s284
      %p286 = scmp.eq.s32.totalorder %s285, 0
      %s288 = sadd.s32 %s287, 1
      %s289 = scalar_select %p286, %s287, %s288
      %p292 = pneg %p286
      %p293 = scmp.eq.s32.totalorder %s26, 3
      %p294 = por %p292, %p293
      %p295 = scmp.ne.s32.totalorder %s287, %s290
      %p296 = scmp.eq.s32.totalorder %s26, 0
      %p297 = por %p295, %p296
      %p298 = scmp.ne.s32.totalorder %s287, %s290
      %p299 = scmp.eq.s32.totalorder %s31, 3
      %p300 = por %p298, %p299
      %p301 = scmp.ne.s32.totalorder %s290, %s291
      %p302 = scmp.eq.s32.totalorder %s31, 0
      %p303 = por %p301, %p302
      %p304 = scmp.ne.s32.totalorder %s290, %s291
      %p305 = scmp.eq.s32.totalorder %s32, 3
      %p306 = por %p304, %p305
      %p308 = scmp.ne.s32.totalorder %s291, %s307
      %p309 = scmp.eq.s32.totalorder %s32, 0
      %p310 = por %p308, %p309
      %s311 = ssub.s32 %s33, %s45
      %s312 = ssub.s32 %s34, %s41
      %s313 = sor.u32 %s311, %s312
      %p314 = scmp.eq.s32.totalorder %s313, 0
      %s316 = sadd.s32 %s315, 1
      %s317 = scalar_select %p314, %s315, %s316
      %p320 = pneg %p314
      %p321 = scmp.eq.s32.totalorder %s26, 3
      %p322 = por %p320, %p321
      %p323 = scmp.ne.s32.totalorder %s315, %s318
      %p324 = scmp.eq.s32.totalorder %s26, 0
      %p325 = por %p323, %p324
      %p326 = scmp.ne.s32.totalorder %s315, %s318
      %p327 = scmp.eq.s32.totalorder %s31, 3
      %p328 = por %p326, %p327
      %p329 = scmp.ne.s32.totalorder %s318, %s319
      %p330 = scmp.eq.s32.totalorder %s31, 0
      %p331 = por %p329, %p330
      %p332 = scmp.ne.s32.totalorder %s318, %s319
      %p333 = scmp.eq.s32.totalorder %s32, 3
      %p334 = por %p332, %p333
      %p336 = scmp.ne.s32.totalorder %s319, %s335
      %p337 = scmp.eq.s32.totalorder %s32, 0
      %p338 = por %p336, %p337
      %s339 = ssub.s32 %s33, %s45
      %s340 = ssub.s32 %s34, %s41
      %s341 = sor.u32 %s339, %s340
      %p342 = scmp.eq.s32.totalorder %s341, 0
      %s344 = sadd.s32 %s343, 1
      %s345 = scalar_select %p342, %s343, %s344
      %p348 = pneg %p342
      %p349 = scmp.eq.s32.totalorder %s26, 3
      %p350 = por %p348, %p349
      %p351 = scmp.ne.s32.totalorder %s343, %s346
      %p352 = scmp.eq.s32.totalorder %s26, 0
      %p353 = por %p351, %p352
      %p354 = scmp.ne.s32.totalorder %s343, %s346
      %p355 = scmp.eq.s32.totalorder %s31, 3
      %p356 = por %p354, %p355
      %p357 = scmp.ne.s32.totalorder %s346, %s347
      %p358 = scmp.eq.s32.totalorder %s31, 0
      %p359 = por %p357, %p358
      %p360 = scmp.ne.s32.totalorder %s346, %s347
      %p361 = scmp.eq.s32.totalorder %s32, 3
      %p362 = por %p360, %p361
      %p364 = scmp.ne.s32.totalorder %s347, %s363
      %p365 = scmp.eq.s32.totalorder %s32, 0
      %p366 = por %p364, %p365
      %s367 = ssub.s32 %s33, %s45
      %s368 = ssub.s32 %s34, %s41
      %s369 = sor.u32 %s367, %s368
      %p370 = scmp.eq.s32.totalorder %s369, 0
      %s372 = sadd.s32 %s371, 1
      %s373 = scalar_select %p370, %s371, %s372
      %p376 = pneg %p370
      %p377 = scmp.eq.s32.totalorder %s26, 3
      %p378 = por %p376, %p377
      %p379 = scmp.ne.s32.totalorder %s371, %s374
      %p380 = scmp.eq.s32.totalorder %s26, 0
      %p381 = por %p379, %p380
      %p382 = scmp.ne.s32.totalorder %s371, %s374
      %p383 = scmp.eq.s32.totalorder %s31, 3
      %p384 = por %p382, %p383
      %p385 = scmp.ne.s32.totalorder %s374, %s375
      %p386 = scmp.eq.s32.totalorder %s31, 0
      %p387 = por %p385, %p386
      %p388 = scmp.ne.s32.totalorder %s374, %s375
      %p389 = scmp.eq.s32.totalorder %s32, 3
      %p390 = por %p388, %p389
      %p392 = scmp.ne.s32.totalorder %s375, %s391
      %p393 = scmp.eq.s32.totalorder %s32, 0
      %p394 = por %p392, %p393
      %s395 = ssub.s32 %s33, %s45
      %s396 = ssub.s32 %s34, %s41
      %s397 = sor.u32 %s395, %s396
      %p398 = scmp.eq.s32.totalorder %s397, 0
      %s400 = sadd.s32 %s399, 1
      %s401 = scalar_select %p398, %s399, %s400
      %p404 = pneg %p398
      %p405 = scmp.eq.s32.totalorder %s26, 3
      %p406 = por %p404, %p405
      %p407 = scmp.ne.s32.totalorder %s399, %s402
      %p408 = scmp.eq.s32.totalorder %s26, 0
      %p409 = por %p407, %p408
      %p410 = scmp.ne.s32.totalorder %s399, %s402
      %p411 = scmp.eq.s32.totalorder %s31, 3
      %p412 = por %p410, %p411
      %p413 = scmp.ne.s32.totalorder %s402, %s403
      %p414 = scmp.eq.s32.totalorder %s31, 0
      %p415 = por %p413, %p414
      %p416 = scmp.ne.s32.totalorder %s402, %s403
      %p417 = scmp.eq.s32.totalorder %s32, 3
      %p418 = por %p416, %p417
      %p420 = scmp.ne.s32.totalorder %s403, %s419
      %p421 = scmp.eq.s32.totalorder %s32, 0
      %p422 = por %p420, %p421
      %s423 = ssub.s32 %s33, %s45
      %s424 = ssub.s32 %s34, %s41
      %s425 = sor.u32 %s423, %s424
      %p426 = scmp.eq.s32.totalorder %s425, 0
      %s428 = sadd.s32 %s427, 1
      %s429 = scalar_select %p426, %s427, %s428
      %p432 = pneg %p426
      %p433 = scmp.eq.s32.totalorder %s26, 3
      %p434 = por %p432, %p433
      %p435 = scmp.ne.s32.totalorder %s427, %s430
      %p436 = scmp.eq.s32.totalorder %s26, 0
      %p437 = por %p435, %p436
      %p438 = scmp.ne.s32.totalorder %s427, %s430
      %p439 = scmp.eq.s32.totalorder %s31, 3
      %p440 = por %p438, %p439
      %p441 = scmp.ne.s32.totalorder %s430, %s431
      %p442 = scmp.eq.s32.totalorder %s31, 0
      %p443 = por %p441, %p442
      %p444 = scmp.ne.s32.totalorder %s430, %s431
      %p445 = scmp.eq.s32.totalorder %s32, 3
      %p446 = por %p444, %p445
      %p448 = scmp.ne.s32.totalorder %s431, %s447
      %p449 = scmp.eq.s32.totalorder %s32, 0
      %p450 = por %p448, %p449
      %s451 = ssub.s32 %s33, %s45
      %s452 = ssub.s32 %s34, %s41
      %s453 = sor.u32 %s451, %s452
      %p454 = scmp.eq.s32.totalorder %s453, 0
      %s456 = sadd.s32 %s455, 1
      %s457 = scalar_select %p454, %s455, %s456
      %p460 = pneg %p454
      %p461 = scmp.eq.s32.totalorder %s26, 3
      %p462 = por %p460, %p461
      %p463 = scmp.ne.s32.totalorder %s455, %s458
      %p464 = scmp.eq.s32.totalorder %s26, 0
      %p465 = por %p463, %p464
      %p466 = scmp.ne.s32.totalorder %s455, %s458
      %p467 = scmp.eq.s32.totalorder %s31, 3
      %p468 = por %p466, %p467
      %p469 = scmp.ne.s32.totalorder %s458, %s459
      %p470 = scmp.eq.s32.totalorder %s31, 0
      %p471 = por %p469, %p470
      %p472 = scmp.ne.s32.totalorder %s458, %s459
      %p473 = scmp.eq.s32.totalorder %s32, 3
      %p474 = por %p472, %p473
      %p476 = scmp.ne.s32.totalorder %s459, %s475
      %p477 = scmp.eq.s32.totalorder %s32, 0
      %p478 = por %p476, %p477
      %s479 = ssub.s32 %s33, %s45
      %s480 = ssub.s32 %s34, %s41
      %s481 = sor.u32 %s479, %s480
      %p482 = scmp.eq.s32.totalorder %s481, 0
      %s484 = sadd.s32 %s483, 1
      %s485 = scalar_select %p482, %s483, %s484
      %p488 = pneg %p482
      %p489 = scmp.eq.s32.totalorder %s26, 3
      %p490 = por %p488, %p489
      %p491 = scmp.ne.s32.totalorder %s483, %s486
      %p492 = scmp.eq.s32.totalorder %s26, 0
      %p493 = por %p491, %p492
      %p494 = scmp.ne.s32.totalorder %s483, %s486
      %p495 = scmp.eq.s32.totalorder %s31, 3
      %p496 = por %p494, %p495
      %p497 = scmp.ne.s32.totalorder %s486, %s487
      %p498 = scmp.eq.s32.totalorder %s31, 0
      %p499 = por %p497, %p498
      %p500 = scmp.ne.s32.totalorder %s486, %s487
      %p501 = scmp.eq.s32.totalorder %s32, 3
      %p502 = por %p500, %p501
      %p504 = scmp.ne.s32.totalorder %s487, %s503
      %p505 = scmp.eq.s32.totalorder %s32, 0
      %p506 = por %p504, %p505
      %s507 = ssub.s32 %s33, %s45
      %p508 = scmp.eq.s32.totalorder %s507, 0
      %s510 = sadd.s32 %s509, 1
      %s511 = scalar_select %p508, %s509, %s510
      %p514 = pneg %p508
      %p515 = scmp.eq.s32.totalorder %s26, 3
      %p516 = por %p514, %p515
      %p517 = scmp.ne.s32.totalorder %s509, %s512
      %p518 = scmp.eq.s32.totalorder %s26, 0
      %p519 = por %p517, %p518
      %p520 = scmp.ne.s32.totalorder %s509, %s512
      %p521 = scmp.eq.s32.totalorder %s31, 3
      %p522 = por %p520, %p521
      %p523 = scmp.ne.s32.totalorder %s512, %s513
      %p524 = scmp.eq.s32.totalorder %s31, 0
      %p525 = por %p523, %p524
      %p526 = scmp.ne.s32.totalorder %s512, %s513
      %p527 = scmp.eq.s32.totalorder %s32, 3
      %p528 = por %p526, %p527
      %p530 = scmp.ne.s32.totalorder %s513, %s529
      %p531 = scmp.eq.s32.totalorder %s32, 0
      %p532 = por %p530, %p531
      %p533 = scmp.le.s32.totalorder 1, %s26
      %p534 = scmp.lt.s32.totalorder %s26, 5
      %p535 = pnand %p533, %p534
      %p536 = pneg %p535
      // Predicated region
      $region9: #{tpu_custom_call.1} parent=5 // pred_check
        _
      $region10: #{tpu_custom_call.1} parent=5 // pred_check_branch
        %538 = sbr.rel (%p535) target = $region12
      $region11: #{tpu_custom_call.1} parent=5 // pred_region
        %s539 = ssub.s32 %s26, 1
        // Predicated region
        $region13: #{tpu_custom_call.1} parent=11 // pred_check
          %p540 = pneg %p111
        $region14: #{tpu_custom_call.1} parent=11 // pred_check_branch
          %542 = sbr.rel (%p540) target = $region16
        $region15: #{tpu_custom_call.1} parent=11 // pred_region
          _
        $region16: #{tpu_custom_call.1} parent=11 // pred_fallthru
          _
      $region12: #{tpu_custom_call.1} parent=5 // pred_fallthru
        _
      %p543 = scmp.lt.s32.totalorder %s26, 4
      // Predicated region
      $region17: #{tpu_custom_call.1} parent=5 // pred_check
        %p544 = pneg %p543
      $region18: #{tpu_custom_call.1} parent=5 // pred_check_branch
        %546 = sbr.rel (%p544) target = $region20
      $region19: #{tpu_custom_call.1} parent=5 // pred_region
        // Predicated region
        $region21: #{tpu_custom_call.1} parent=19 // pred_check
          %p547 = pneg %p58
        $region22: #{tpu_custom_call.1} parent=19 // pred_check_branch
          %549 = sbr.rel (%p547) target = $region24
        $region23: #{tpu_custom_call.1} parent=19 // pred_region
          %p550 = scmp.lt.s32.totalorder %s33, 1
          %s551 = scalar_select %p550, %s33, 1
          %s552 = smul.addr %s551, 2
          %s553 = smul.addr %s552, 8
          %s554 = scalar_lea.vmem %s0, %s553
        $region24: #{tpu_custom_call.1} parent=19 // pred_fallthru
          _
        // Predicated region
        $region25: #{tpu_custom_call.1} parent=19 // pred_check
          %p555 = pneg %p84
        $region26: #{tpu_custom_call.1} parent=19 // pred_check_branch
          %557 = sbr.rel (%p555) target = $region28
        $region27: #{tpu_custom_call.1} parent=19 // pred_region
          %p558 = scmp.lt.s32.totalorder %s33, 1
          %s559 = scalar_select %p558, %s33, 1
          %s560 = smul.addr %s559, 8
          %s561 = scalar_lea.vmem %s1, %s560
        $region28: #{tpu_custom_call.1} parent=19 // pred_fallthru
          _
        // Predicated region
        $region29: #{tpu_custom_call.1} parent=19 // pred_check
          %p562 = pneg %p131
        $region30: #{tpu_custom_call.1} parent=19 // pred_check_branch
          %564 = sbr.rel (%p562) target = $region32
        $region31: #{tpu_custom_call.1} parent=19 // pred_region
          %p565 = scmp.lt.s32.totalorder %s33, 1
          %s566 = scalar_select %p565, %s33, 1
          %s567 = smul.addr %s566, 2
          %s568 = smul.addr %s567, 4
          %s569 = scalar_lea.vmem %s3, %s568
        $region32: #{tpu_custom_call.1} parent=19 // pred_fallthru
          _
        // Predicated region
        $region33: #{tpu_custom_call.1} parent=19 // pred_check
          %p570 = pneg %p157
        $region34: #{tpu_custom_call.1} parent=19 // pred_check_branch
          %572 = sbr.rel (%p570) target = $region36
        $region35: #{tpu_custom_call.1} parent=19 // pred_region
          %p573 = scmp.lt.s32.totalorder %s33, 1
          %s574 = scalar_select %p573, %s33, 1
          %s575 = scalar_lea.vmem %s4, %s574
        $region36: #{tpu_custom_call.1} parent=19 // pred_fallthru
          _
        // Predicated region
        $region37: #{tpu_custom_call.1} parent=19 // pred_check
          %p576 = pneg %p185
        $region38: #{tpu_custom_call.1} parent=19 // pred_check_branch
          %578 = sbr.rel (%p576) target = $region40
        $region39: #{tpu_custom_call.1} parent=19 // pred_region
          %p579 = scmp.lt.s32.totalorder %s33, 1
          %s580 = scalar_select %p579, %s33, 1
          %p581 = scmp.lt.s32.totalorder %s34, 1
          %s582 = scalar_select %p581, %s34, 1
          %s583 = smul.addr %s582, 4
          %s584 = smul.addr %s580, 8
          %s585 = sadd.s32 %s583, %s584
          %s586 = smul.addr %s585, 4
          %s587 = scalar_lea.vmem %s5, %s586
        $region40: #{tpu_custom_call.1} parent=19 // pred_fallthru
          _
        // Predicated region
        $region41: #{tpu_custom_call.1} parent=19 // pred_check
          %p588 = pneg %p213
        $region42: #{tpu_custom_call.1} parent=19 // pred_check_branch
          %590 = sbr.rel (%p588) target = $region44
        $region43: #{tpu_custom_call.1} parent=19 // pred_region
          %p591 = scmp.lt.s32.totalorder %s33, 1
          %s592 = scalar_select %p591, %s33, 1
          %p593 = scmp.lt.s32.totalorder %s34, 1
          %s594 = scalar_select %p593, %s34, 1
          %s595 = smul.addr %s592, 2
          %s596 = sadd.s32 %s594, %s595
          %s597 = scalar_lea.vmem %s6, %s596
        $region44: #{tpu_custom_call.1} parent=19 // pred_fallthru
          _
        // Predicated region
        $region45: #{tpu_custom_call.1} parent=19 // pred_check
          %p598 = pneg %p241
        $region46: #{tpu_custom_call.1} parent=19 // pred_check_branch
          %600 = sbr.rel (%p598) target = $region48
        $region47: #{tpu_custom_call.1} parent=19 // pred_region
          %p601 = scmp.lt.s32.totalorder %s33, 1
          %s602 = scalar_select %p601, %s33, 1
          %p603 = scmp.lt.s32.totalorder %s34, 1
          %s604 = scalar_select %p603, %s34, 1
          %s605 = smul.addr %s604, 4
          %s606 = smul.addr %s602, 8
          %s607 = sadd.s32 %s605, %s606
          %s608 = smul.addr %s607, 4
          %s609 = scalar_lea.vmem %s7, %s608
        $region48: #{tpu_custom_call.1} parent=19 // pred_fallthru
          _
        // Predicated region
        $region49: #{tpu_custom_call.1} parent=19 // pred_check
          %p610 = pneg %p269
        $region50: #{tpu_custom_call.1} parent=19 // pred_check_branch
          %612 = sbr.rel (%p610) target = $region52
        $region51: #{tpu_custom_call.1} parent=19 // pred_region
          %p613 = scmp.lt.s32.totalorder %s33, 1
          %s614 = scalar_select %p613, %s33, 1
          %p615 = scmp.lt.s32.totalorder %s34, 1
          %s616 = scalar_select %p615, %s34, 1
          %s617 = smul.addr %s614, 2
          %s618 = sadd.s32 %s616, %s617
          %s619 = scalar_lea.vmem %s8, %s618
        $region52: #{tpu_custom_call.1} parent=19 // pred_fallthru
          _
        // Predicated region
        $region53: #{tpu_custom_call.1} parent=19 // pred_check
          %p620 = pneg %p297
        $region54: #{tpu_custom_call.1} parent=19 // pred_check_branch
          %622 = sbr.rel (%p620) target = $region56
        $region55: #{tpu_custom_call.1} parent=19 // pred_region
          %p623 = scmp.lt.s32.totalorder %s33, 1
          %s624 = scalar_select %p623, %s33, 1
          %p625 = scmp.lt.s32.totalorder %s34, 1
          %s626 = scalar_select %p625, %s34, 1
          %s627 = smul.addr %s624, 2
          %s628 = sadd.s32 %s626, %s627
          %s629 = scalar_lea.vmem %s9, %s628
        $region56: #{tpu_custom_call.1} parent=19 // pred_fallthru
          _
        // Predicated region
        $region57: #{tpu_custom_call.1} parent=19 // pred_check
          %p630 = pneg %p325
        $region58: #{tpu_custom_call.1} parent=19 // pred_check_branch
          %632 = sbr.rel (%p630) target = $region60
        $region59: #{tpu_custom_call.1} parent=19 // pred_region
          %p633 = scmp.lt.s32.totalorder %s33, 1
          %s634 = scalar_select %p633, %s33, 1
          %p635 = scmp.lt.s32.totalorder %s34, 1
          %s636 = scalar_select %p635, %s34, 1
          %s637 = smul.addr %s634, 2
          %s638 = sadd.s32 %s636, %s637
          %s639 = scalar_lea.vmem %s10, %s638
        $region60: #{tpu_custom_call.1} parent=19 // pred_fallthru
          _
        // Predicated region
        $region61: #{tpu_custom_call.1} parent=19 // pred_check
          %p640 = pneg %p353
        $region62: #{tpu_custom_call.1} parent=19 // pred_check_branch
          %642 = sbr.rel (%p640) target = $region64
        $region63: #{tpu_custom_call.1} parent=19 // pred_region
          %p643 = scmp.lt.s32.totalorder %s33, 1
          %s644 = scalar_select %p643, %s33, 1
          %p645 = scmp.lt.s32.totalorder %s34, 1
          %s646 = scalar_select %p645, %s34, 1
          %s647 = smul.addr %s646, 64
          %s648 = smul.addr %s644, 128
          %s649 = sadd.s32 %s647, %s648
          %s650 = smul.addr %s649, 4
          %s651 = scalar_lea.vmem %s11, %s650
        $region64: #{tpu_custom_call.1} parent=19 // pred_fallthru
          _
        // Predicated region
        $region65: #{tpu_custom_call.1} parent=19 // pred_check
          %p652 = pneg %p381
        $region66: #{tpu_custom_call.1} parent=19 // pred_check_branch
          %654 = sbr.rel (%p652) target = $region68
        $region67: #{tpu_custom_call.1} parent=19 // pred_region
          %p655 = scmp.lt.s32.totalorder %s33, 1
          %s656 = scalar_select %p655, %s33, 1
          %p657 = scmp.lt.s32.totalorder %s34, 1
          %s658 = scalar_select %p657, %s34, 1
          %s659 = smul.addr %s658, 16
          %s660 = smul.addr %s656, 32
          %s661 = sadd.s32 %s659, %s660
          %s662 = scalar_lea.vmem %s12, %s661
        $region68: #{tpu_custom_call.1} parent=19 // pred_fallthru
          _
        // Predicated region
        $region69: #{tpu_custom_call.1} parent=19 // pred_check
          %p663 = pneg %p409
        $region70: #{tpu_custom_call.1} parent=19 // pred_check_branch
          %665 = sbr.rel (%p663) target = $region72
        $region71: #{tpu_custom_call.1} parent=19 // pred_region
          %p666 = scmp.lt.s32.totalorder %s33, 1
          %s667 = scalar_select %p666, %s33, 1
          %p668 = scmp.lt.s32.totalorder %s34, 1
          %s669 = scalar_select %p668, %s34, 1
          %s670 = smul.addr %s669, 256
          %s671 = smul.addr %s667, 512
          %s672 = sadd.s32 %s670, %s671
          %s673 = smul.addr %s672, 4
          %s674 = scalar_lea.vmem %s13, %s673
        $region72: #{tpu_custom_call.1} parent=19 // pred_fallthru
          _
        // Predicated region
        $region73: #{tpu_custom_call.1} parent=19 // pred_check
          %p675 = pneg %p437
        $region74: #{tpu_custom_call.1} parent=19 // pred_check_branch
          %677 = sbr.rel (%p675) target = $region76
        $region75: #{tpu_custom_call.1} parent=19 // pred_region
          %p678 = scmp.lt.s32.totalorder %s33, 1
          %s679 = scalar_select %p678, %s33, 1
          %p680 = scmp.lt.s32.totalorder %s34, 1
          %s681 = scalar_select %p680, %s34, 1
          %s682 = smul.addr %s679, 2
          %s683 = sadd.s32 %s681, %s682
          %s684 = scalar_lea.vmem %s14, %s683
        $region76: #{tpu_custom_call.1} parent=19 // pred_fallthru
          _
        // Predicated region
        $region77: #{tpu_custom_call.1} parent=19 // pred_check
          %p685 = pneg %p465
        $region78: #{tpu_custom_call.1} parent=19 // pred_check_branch
          %687 = sbr.rel (%p685) target = $region80
        $region79: #{tpu_custom_call.1} parent=19 // pred_region
          %p688 = scmp.lt.s32.totalorder %s33, 1
          %s689 = scalar_select %p688, %s33, 1
          %p690 = scmp.lt.s32.totalorder %s34, 1
          %s691 = scalar_select %p690, %s34, 1
          %s692 = smul.addr %s689, 2
          %s693 = sadd.s32 %s691, %s692
          %s694 = scalar_lea.vmem %s15, %s693
        $region80: #{tpu_custom_call.1} parent=19 // pred_fallthru
          _
        // Predicated region
        $region81: #{tpu_custom_call.1} parent=19 // pred_check
          %p695 = pneg %p493
        $region82: #{tpu_custom_call.1} parent=19 // pred_check_branch
          %697 = sbr.rel (%p695) target = $region84
        $region83: #{tpu_custom_call.1} parent=19 // pred_region
          %p698 = scmp.lt.s32.totalorder %s33, 1
          %s699 = scalar_select %p698, %s33, 1
          %p700 = scmp.lt.s32.totalorder %s34, 1
          %s701 = scalar_select %p700, %s34, 1
          %s702 = smul.addr %s699, 2
          %s703 = sadd.s32 %s701, %s702
          %s704 = scalar_lea.vmem %s16, %s703
        $region84: #{tpu_custom_call.1} parent=19 // pred_fallthru
          _
      $region20: #{tpu_custom_call.1} parent=5 // pred_fallthru
        _
      %p705 = scmp.le.s32.totalorder 1, %s26
      %p706 = scmp.lt.s32.totalorder %s26, 5
      %p707 = pnand %p705, %p706
      %p708 = pneg %p707
      // Predicated region
      $region85: #{tpu_custom_call.1} parent=5 // pred_check
        _
      $region86: #{tpu_custom_call.1} parent=5 // pred_check_branch
        %710 = sbr.rel (%p707) target = $region88
      $region87: #{tpu_custom_call.1} parent=5 // pred_region
        %s711 = ssub.s32 %s26, 1
        %p712 = scmp.lt.s32.totalorder %s35, 1
        %s713 = scalar_select %p712, %s35, 1
        %s714 = smul.addr %s713, 2
        %s715 = smul.addr %s714, 8
        %s716 = scalar_lea.vmem %s0, %s715
        %p717 = pneg %p64
        %p718 = pneg %p61
        %p719 = scmp.lt.s32.totalorder %s35, 1
        %s720 = scalar_select %p719, %s35, 1
        %s721 = smul.addr %s720, 8
        %s722 = scalar_lea.vmem %s1, %s721
        %p723 = pneg %p90
        %p724 = pneg %p87
        %p725 = pneg %p111
        %p726 = pneg %p108
        %p727 = scmp.lt.s32.totalorder %s35, 1
        %s728 = scalar_select %p727, %s35, 1
        %s729 = smul.addr %s728, 2
        %s730 = smul.addr %s729, 4
        %s731 = scalar_lea.vmem %s3, %s730
        %p732 = pneg %p137
        %p733 = pneg %p134
        %p734 = scmp.lt.s32.totalorder %s35, 1
        %s735 = scalar_select %p734, %s35, 1
        %s736 = scalar_lea.vmem %s4, %s735
        %p737 = pneg %p163
        %p738 = pneg %p160
        %p739 = scmp.lt.s32.totalorder %s35, 1
        %s740 = scalar_select %p739, %s35, 1
        %p741 = scmp.lt.s32.totalorder %s36, 1
        %s742 = scalar_select %p741, %s36, 1
        %s743 = smul.addr %s742, 4
        %s744 = smul.addr %s740, 8
        %s745 = sadd.s32 %s743, %s744
        %s746 = smul.addr %s745, 4
        %s747 = scalar_lea.vmem %s5, %s746
        %p748 = pneg %p191
        %p749 = pneg %p188
        %p750 = scmp.lt.s32.totalorder %s35, 1
        %s751 = scalar_select %p750, %s35, 1
        %p752 = scmp.lt.s32.totalorder %s36, 1
        %s753 = scalar_select %p752, %s36, 1
        %s754 = smul.addr %s751, 2
        %s755 = sadd.s32 %s753, %s754
        %s756 = scalar_lea.vmem %s6, %s755
        %p757 = pneg %p219
        %p758 = pneg %p216
        %p759 = scmp.lt.s32.totalorder %s35, 1
        %s760 = scalar_select %p759, %s35, 1
        %p761 = scmp.lt.s32.totalorder %s36, 1
        %s762 = scalar_select %p761, %s36, 1
        %s763 = smul.addr %s762, 4
        %s764 = smul.addr %s760, 8
        %s765 = sadd.s32 %s763, %s764
        %s766 = smul.addr %s765, 4
        %s767 = scalar_lea.vmem %s7, %s766
        %p768 = pneg %p247
        %p769 = pneg %p244
        %p770 = scmp.lt.s32.totalorder %s35, 1
        %s771 = scalar_select %p770, %s35, 1
        %p772 = scmp.lt.s32.totalorder %s36, 1
        %s773 = scalar_select %p772, %s36, 1
        %s774 = smul.addr %s771, 2
        %s775 = sadd.s32 %s773, %s774
        %s776 = scalar_lea.vmem %s8, %s775
        %p777 = pneg %p275
        %p778 = pneg %p272
        %p779 = scmp.lt.s32.totalorder %s35, 1
        %s780 = scalar_select %p779, %s35, 1
        %p781 = scmp.lt.s32.totalorder %s36, 1
        %s782 = scalar_select %p781, %s36, 1
        %s783 = smul.addr %s780, 2
        %s784 = sadd.s32 %s782, %s783
        %s785 = scalar_lea.vmem %s9, %s784
        %p786 = pneg %p303
        %p787 = pneg %p300
        %p788 = scmp.lt.s32.totalorder %s35, 1
        %s789 = scalar_select %p788, %s35, 1
        %p790 = scmp.lt.s32.totalorder %s36, 1
        %s791 = scalar_select %p790, %s36, 1
        %s792 = smul.addr %s789, 2
        %s793 = sadd.s32 %s791, %s792
        %s794 = scalar_lea.vmem %s10, %s793
        %p795 = pneg %p331
        %p796 = pneg %p328
        %p797 = scmp.lt.s32.totalorder %s35, 1
        %s798 = scalar_select %p797, %s35, 1
        %p799 = scmp.lt.s32.totalorder %s36, 1
        %s800 = scalar_select %p799, %s36, 1
        %s801 = smul.addr %s800, 64
        %s802 = smul.addr %s798, 128
        %s803 = sadd.s32 %s801, %s802
        %s804 = smul.addr %s803, 4
        %s805 = scalar_lea.vmem %s11, %s804
        %p806 = pneg %p359
        %p807 = pneg %p356
        %p808 = scmp.lt.s32.totalorder %s35, 1
        %s809 = scalar_select %p808, %s35, 1
        %p810 = scmp.lt.s32.totalorder %s36, 1
        %s811 = scalar_select %p810, %s36, 1
        %s812 = smul.addr %s811, 16
        %s813 = smul.addr %s809, 32
        %s814 = sadd.s32 %s812, %s813
        %s815 = scalar_lea.vmem %s12, %s814
        %p816 = pneg %p387
        %p817 = pneg %p384
        %p818 = scmp.lt.s32.totalorder %s35, 1
        %s819 = scalar_select %p818, %s35, 1
        %p820 = scmp.lt.s32.totalorder %s36, 1
        %s821 = scalar_select %p820, %s36, 1
        %s822 = smul.addr %s821, 256
        %s823 = smul.addr %s819, 512
        %s824 = sadd.s32 %s822, %s823
        %s825 = smul.addr %s824, 4
        %s826 = scalar_lea.vmem %s13, %s825
        %p827 = pneg %p415
        %p828 = pneg %p412
        %p829 = scmp.lt.s32.totalorder %s35, 1
        %s830 = scalar_select %p829, %s35, 1
        %p831 = scmp.lt.s32.totalorder %s36, 1
        %s832 = scalar_select %p831, %s36, 1
        %s833 = smul.addr %s830, 2
        %s834 = sadd.s32 %s832, %s833
        %s835 = scalar_lea.vmem %s14, %s834
        %p836 = pneg %p443
        %p837 = pneg %p440
        %p838 = scmp.lt.s32.totalorder %s35, 1
        %s839 = scalar_select %p838, %s35, 1
        %p840 = scmp.lt.s32.totalorder %s36, 1
        %s841 = scalar_select %p840, %s36, 1
        %s842 = smul.addr %s839, 2
        %s843 = sadd.s32 %s841, %s842
        %s844 = scalar_lea.vmem %s15, %s843
        %p845 = pneg %p471
        %p846 = pneg %p468
        %p847 = scmp.lt.s32.totalorder %s35, 1
        %s848 = scalar_select %p847, %s35, 1
        %p849 = scmp.lt.s32.totalorder %s36, 1
        %s850 = scalar_select %p849, %s36, 1
        %s851 = smul.addr %s848, 2
        %s852 = sadd.s32 %s850, %s851
        %s853 = scalar_lea.vmem %s16, %s852
        %p854 = pneg %p499
        %p855 = pneg %p496
        %p856 = pneg %p525
        %p857 = pneg %p522
        %s858 = sand.u32 %s512, 1
        %s859 = scalar_lea.sflag [#allocation3], %s858
        %s860 = sand.u32 %s512, 1
        %s861 = smul.addr %s860, 16
        %s862 = scalar_lea.vmem [#allocation2], %s861
        %p863 = scmp.lt.s32.totalorder %s35, 1
        %s864 = scalar_select %p863, %s35, 1
        %s865 = smul.addr %s864, 2
        %s866 = smul.addr %s865, 8
        %s867 = scalar_lea.vmem %s0, %s866
        %p868 = scmp.lt.s32.totalorder %s35, 1
        %s869 = scalar_select %p868, %s35, 1
        %s870 = smul.addr %s869, 8
        %s871 = scalar_lea.vmem %s1, %s870
        %p872 = scmp.lt.s32.totalorder %s35, 1
        %s873 = scalar_select %p872, %s35, 1
        %s874 = smul.addr %s873, 2
        %s875 = smul.addr %s874, 4
        %s876 = scalar_lea.vmem %s3, %s875
        %p877 = scmp.lt.s32.totalorder %s35, 1
        %s878 = scalar_select %p877, %s35, 1
        %s879 = scalar_lea.vmem %s4, %s878
        %p880 = scmp.lt.s32.totalorder %s35, 1
        %s881 = scalar_select %p880, %s35, 1
        %p882 = scmp.lt.s32.totalorder %s36, 1
        %s883 = scalar_select %p882, %s36, 1
        %s884 = smul.addr %s883, 4
        %s885 = smul.addr %s881, 8
        %s886 = sadd.s32 %s884, %s885
        %s887 = smul.addr %s886, 4
        %s888 = scalar_lea.vmem %s5, %s887
        %p889 = scmp.lt.s32.totalorder %s35, 1
        %s890 = scalar_select %p889, %s35, 1
        %p891 = scmp.lt.s32.totalorder %s36, 1
        %s892 = scalar_select %p891, %s36, 1
        %s893 = smul.addr %s890, 2
        %s894 = sadd.s32 %s892, %s893
        %s895 = scalar_lea.vmem %s6, %s894
        %p896 = scmp.lt.s32.totalorder %s35, 1
        %s897 = scalar_select %p896, %s35, 1
        %p898 = scmp.lt.s32.totalorder %s36, 1
        %s899 = scalar_select %p898, %s36, 1
        %s900 = smul.addr %s899, 4
        %s901 = smul.addr %s897, 8
        %s902 = sadd.s32 %s900, %s901
        %s903 = smul.addr %s902, 4
        %s904 = scalar_lea.vmem %s7, %s903
        %p905 = scmp.lt.s32.totalorder %s35, 1
        %s906 = scalar_select %p905, %s35, 1
        %p907 = scmp.lt.s32.totalorder %s36, 1
        %s908 = scalar_select %p907, %s36, 1
        %s909 = smul.addr %s906, 2
        %s910 = sadd.s32 %s908, %s909
        %s911 = scalar_lea.vmem %s8, %s910
        %p912 = scmp.lt.s32.totalorder %s35, 1
        %s913 = scalar_select %p912, %s35, 1
        %p914 = scmp.lt.s32.totalorder %s36, 1
        %s915 = scalar_select %p914, %s36, 1
        %s916 = smul.addr %s913, 2
        %s917 = sadd.s32 %s915, %s916
        %s918 = scalar_lea.vmem %s9, %s917
        %p919 = scmp.lt.s32.totalorder %s35, 1
        %s920 = scalar_select %p919, %s35, 1
        %p921 = scmp.lt.s32.totalorder %s36, 1
        %s922 = scalar_select %p921, %s36, 1
        %s923 = smul.addr %s920, 2
        %s924 = sadd.s32 %s922, %s923
        %s925 = scalar_lea.vmem %s10, %s924
        %p926 = scmp.lt.s32.totalorder %s35, 1
        %s927 = scalar_select %p926, %s35, 1
        %p928 = scmp.lt.s32.totalorder %s36, 1
        %s929 = scalar_select %p928, %s36, 1
        %s930 = smul.addr %s929, 64
        %s931 = smul.addr %s927, 128
        %s932 = sadd.s32 %s930, %s931
        %s933 = smul.addr %s932, 4
        %s934 = scalar_lea.vmem %s11, %s933
        %p935 = scmp.lt.s32.totalorder %s35, 1
        %s936 = scalar_select %p935, %s35, 1
        %p937 = scmp.lt.s32.totalorder %s36, 1
        %s938 = scalar_select %p937, %s36, 1
        %s939 = smul.addr %s938, 16
        %s940 = smul.addr %s936, 32
        %s941 = sadd.s32 %s939, %s940
        %s942 = scalar_lea.vmem %s12, %s941
        %p943 = scmp.lt.s32.totalorder %s35, 1
        %s944 = scalar_select %p943, %s35, 1
        %p945 = scmp.lt.s32.totalorder %s36, 1
        %s946 = scalar_select %p945, %s36, 1
        %s947 = smul.addr %s946, 256
        %s948 = smul.addr %s944, 512
        %s949 = sadd.s32 %s947, %s948
        %s950 = smul.addr %s949, 4
        %s951 = scalar_lea.vmem %s13, %s950
        %p952 = scmp.lt.s32.totalorder %s35, 1
        %s953 = scalar_select %p952, %s35, 1
        %p954 = scmp.lt.s32.totalorder %s36, 1
        %s955 = scalar_select %p954, %s36, 1
        %s956 = smul.addr %s953, 2
        %s957 = sadd.s32 %s955, %s956
        %s958 = scalar_lea.vmem %s14, %s957
        %p959 = scmp.lt.s32.totalorder %s35, 1
        %s960 = scalar_select %p959, %s35, 1
        %p961 = scmp.lt.s32.totalorder %s36, 1
        %s962 = scalar_select %p961, %s36, 1
        %s963 = smul.addr %s960, 2
        %s964 = sadd.s32 %s962, %s963
        %s965 = scalar_lea.vmem %s15, %s964
        %p966 = scmp.lt.s32.totalorder %s35, 1
        %s967 = scalar_select %p966, %s35, 1
        %p968 = scmp.lt.s32.totalorder %s36, 1
        %s969 = scalar_select %p968, %s36, 1
        %s970 = smul.addr %s967, 2
        %s971 = sadd.s32 %s969, %s970
        %s972 = scalar_lea.vmem %s16, %s971
        %p974 = scmp.eq.s32.totalorder %s36, 0
        // Predicated region
        $region89: #{tpu_custom_call.1} parent=87 // pred_check
          %p975 = pneg %p974
        $region90: #{tpu_custom_call.1} parent=87 // pred_check_branch
          %977 = sbr.rel (%p975) target = $region92
        $region91: #{tpu_custom_call.1} parent=87 // pred_region
          %v978 = vld [vmem:[%s867] sm:$0xff]
          %v979 = vld [vmem:[%s867 + $0x8] sm:$0xff]
          %v980 = vld [vmem:[%s871] sm:$0xff]
          %v981 = vadd.f32 %v978, %v980
          %v982 = vadd.f32 %v979, %v980
          %v983 = vpack.c.bf16 %v982, %v981
          %v984 = vld [vmem:[%s876] sm:$0xf]
          %v985 = vld [vmem:[%s876 + $0x4] sm:$0xf]
          %v986 = vld [vmem:[%s879] sm:$0x1]
          %v988 = vlaneseq
          %v989 = vshrl.u32 %v988, 7
          %v990 = vsub.s32 0, %v989
          %v991 = vrot.slane %v986, %v990
          %v995 = vunpack.c.l.b16 %v984
          %v996 = vunpack.c.l.b16 %v985
          %v997 = vpack.c.b16 %v996, %v995
          %vm999 = vcmask 130048
          %v1001 = vsel %vm999, %v983, 0
          %1003 = vmatprep.subr.bf16.mxu0 0
          %1004 = vmatpush1.bf16.msra.mxu0 0
          %1005 = vmatprep.subr.bf16.mxu0 0
          %1006 = vmatpush1.bf16.msra.mxu0 0
          %1007 = vmatprep.subr.bf16.mxu0 0
          %1008 = vmatpush1.bf16.msra.mxu0 0
          %1009 = vmatprep.subr.bf16.mxu0 0
          %1010 = vmatpush1.bf16.msra.mxu0 0
          %1011 = vmatprep.subr.bf16.mxu0 0
          %1012 = vmatpush1.bf16.msra.mxu0 0
          %1013 = vmatprep.subr.bf16.mxu0 0
          %1014 = vmatpush1.bf16.msra.mxu0 0
          %1015 = vmatprep.subr.bf16.mxu0 0
          %1016 = vmatpush1.bf16.msra.mxu0 0
          %1017 = vmatprep.subr.bf16.mxu0 0
          %1018 = vmatpush1.bf16.msra.mxu0 %v997
          %1019 = vmatprep.subr.bf16.mxu0 0
          %1020 = vmatpush2.bf16.msra.mxu0 0
          %1021 = vmatprep.subr.bf16.mxu0 0
          %1022 = vmatpush2.bf16.msra.mxu0 0
          %1023 = vmatprep.subr.bf16.mxu0 0
          %1024 = vmatpush2.bf16.msra.mxu0 0
          %1025 = vmatprep.subr.bf16.mxu0 0
          %1026 = vmatpush2.bf16.msra.mxu0 0
          %1027 = vmatprep.subr.bf16.mxu0 0
          %1028 = vmatpush2.bf16.msra.mxu0 0
          %1029 = vmatprep.subr.bf16.mxu0 0
          %1030 = vmatpush2.bf16.msra.mxu0 0
          %1031 = vmatprep.subr.bf16.mxu0 0
          %1032 = vmatpush2.bf16.msra.mxu0 0
          %1033 = vmatprep.subr.bf16.mxu0 0
          %1034 = vmatpush2.bf16.msra.mxu0 0
          %1035 = vmatprep.mubr.bf16.mxu0 0
          %1036 = vmatmul.mubr.bf16.gmra.mxu0 %v1001
          %v1037 = vpop.f32.mrf.mxu0
          %v1038 = vadd.f32 %v991, %v1037
          %v1039 = vpop.f32.mrf.mxu0
          %v1040 = vpop.f32.mrf.mxu0
          %v1041 = vadd.f32 %v991, %v1040
          %v1042 = vpop.f32.mrf.mxu0
          %1043 = vdwg.mxu0
          %vm1044 = vcmask 261120
          %1045 = vst.msk [vmem:[%s862] sm:$0xff] %vm1044, %v1038
          %1046 = vst.msk [vmem:[%s862 + $0x8] sm:$0xff] %vm1044, %v1041
        $region92: #{tpu_custom_call.1} parent=87 // pred_fallthru
          _
        %v1047 = vld [vmem:[%s862] sm:$0xff]
        %v1048 = vld [vmem:[%s862 + $0x8] sm:$0xff]
        %v1049 = vpack.c.bf16 %v1048, %v1047
        %v1050 = vld [vmem:[%s888] sm:$0xf]
        %v1051 = vld [vmem:[%s888 + $0x4] sm:$0xf]
        %v1052 = vld [vmem:[%s888 + $0x8] sm:$0xf]
        %v1053 = vld [vmem:[%s888 + $0xc] sm:$0xf]
        %v1054 = vld [vmem:[%s895] sm:$0x1]
        %v1056 = vlaneseq
        %v1057 = vshrl.u32 %v1056, 7
        %v1058 = vsub.s32 0, %v1057
        %v1059 = vrot.slane %v1054, %v1058
        %v1065 = vunpack.c.l.b16 %v1050
        %v1066 = vunpack.c.l.b16 %v1051
        %v1067 = vunpack.c.l.b16 %v1052
        %v1068 = vunpack.c.l.b16 %v1053
        %v1069 = vpack.c.b16 %v1066, %v1065
        %v1070 = vpack.c.b16 %v1068, %v1067
        %vm1073 = vcmask 261120
        %v1075 = vsel %vm1073, %v1049, 0
        %1077 = vmatprep.subr.bf16.mxu0 0
        %1078 = vmatpush1.bf16.msra.mxu0 0
        %1079 = vmatprep.subr.bf16.mxu0 0
        %1080 = vmatpush1.bf16.msra.mxu0 0
        %1081 = vmatprep.subr.bf16.mxu0 0
        %1082 = vmatpush1.bf16.msra.mxu0 0
        %1083 = vmatprep.subr.bf16.mxu0 0
        %1084 = vmatpush1.bf16.msra.mxu0 0
        %1085 = vmatprep.subr.bf16.mxu0 0
        %1086 = vmatpush1.bf16.msra.mxu0 0
        %1087 = vmatprep.subr.bf16.mxu0 0
        %1088 = vmatpush1.bf16.msra.mxu0 0
        %1089 = vmatprep.subr.bf16.mxu0 0
        %1090 = vmatpush1.bf16.msra.mxu0 %v1070
        %1091 = vmatprep.subr.bf16.mxu0 0
        %1092 = vmatpush1.bf16.msra.mxu0 %v1069
        %1093 = vmatprep.subr.bf16.mxu0 0
        %1094 = vmatpush2.bf16.msra.mxu0 0
        %1095 = vmatprep.subr.bf16.mxu0 0
        %1096 = vmatpush2.bf16.msra.mxu0 0
        %1097 = vmatprep.subr.bf16.mxu0 0
        %1098 = vmatpush2.bf16.msra.mxu0 0
        %1099 = vmatprep.subr.bf16.mxu0 0
        %1100 = vmatpush2.bf16.msra.mxu0 0
        %1101 = vmatprep.subr.bf16.mxu0 0
        %1102 = vmatpush2.bf16.msra.mxu0 0
        %1103 = vmatprep.subr.bf16.mxu0 0
        %1104 = vmatpush2.bf16.msra.mxu0 0
        %1105 = vmatprep.subr.bf16.mxu0 0
        %1106 = vmatpush2.bf16.msra.mxu0 0
        %1107 = vmatprep.subr.bf16.mxu0 0
        %1108 = vmatpush2.bf16.msra.mxu0 0
        %1109 = vmatprep.mubr.bf16.mxu0 0
        %1110 = vmatmul.mubr.bf16.gmra.mxu0 %v1075
        %v1111 = vpop.f32.mrf.mxu0
        %v1112 = vadd.f32 %v1059, %v1111
        %v1113 = vpop.f32.mrf.mxu0
        %v1114 = vpop.f32.mrf.mxu0
        %v1115 = vadd.f32 %v1059, %v1114
        %v1116 = vpop.f32.mrf.mxu0
        %1117 = vdwg.mxu0
        %1120 = vrot.lane.b32.xlu0 %v1112, 96
        %v1121 = vpop.permute.xlu0 %1120
        %1122 = vrot.lane.b32.xlu0 %v1115, 96
        %v1123 = vpop.permute.xlu0 %1122
        %v1126 = vmul.f32 %v1112, %v1121
        %v1127 = vmul.f32 %v1112, %v1123
        %v1128 = vmul.f32 %v1115, %v1121
        %v1129 = vmul.f32 %v1115, %v1123
        %v1130 = vpack.c.bf16 %v1127, %v1126
        %v1131 = vpack.c.bf16 %v1129, %v1128
        %v1132 = vld [vmem:[%s2] sm:$0xf]
        %v1133 = vld [vmem:[%s2 + $0x4] sm:$0xf]
        %v1134 = vld [vmem:[%s2 + $0x8] sm:$0xf]
        %v1135 = vld [vmem:[%s2 + $0xc] sm:$0xf]
        %v1140 = vunpack.c.l.b16 %v1132
        %v1141 = vunpack.c.l.b16 %v1133
        %v1142 = vunpack.c.l.b16 %v1134
        %v1143 = vunpack.c.l.b16 %v1135
        %v1144 = vpack.c.b16 %v1141, %v1140
        %v1145 = vpack.c.b16 %v1143, %v1142
        %v1149 = vsel %vm1073, %v1130, 0
        %v1152 = vsel %vm1073, %v1131, 0
        %1154 = vmatprep.subr.bf16.mxu0 0
        %1155 = vmatpush1.bf16.msra.mxu0 0
        %1156 = vmatprep.subr.bf16.mxu0 0
        %1157 = vmatpush1.bf16.msra.mxu0 0
        %1158 = vmatprep.subr.bf16.mxu0 0
        %1159 = vmatpush1.bf16.msra.mxu0 0
        %1160 = vmatprep.subr.bf16.mxu0 0
        %1161 = vmatpush1.bf16.msra.mxu0 0
        %1162 = vmatprep.subr.bf16.mxu0 0
        %1163 = vmatpush1.bf16.msra.mxu0 0
        %1164 = vmatprep.subr.bf16.mxu0 0
        %1165 = vmatpush1.bf16.msra.mxu0 0
        %1166 = vmatprep.subr.bf16.mxu0 0
        %1167 = vmatpush1.bf16.msra.mxu0 %v1145
        %1168 = vmatprep.subr.bf16.mxu0 0
        %1169 = vmatpush1.bf16.msra.mxu0 %v1144
        %1170 = vmatprep.subr.bf16.mxu0 0
        %1171 = vmatpush2.bf16.msra.mxu0 0
        %1172 = vmatprep.subr.bf16.mxu0 0
        %1173 = vmatpush2.bf16.msra.mxu0 0
        %1174 = vmatprep.subr.bf16.mxu0 0
        %1175 = vmatpush2.bf16.msra.mxu0 0
        %1176 = vmatprep.subr.bf16.mxu0 0
        %1177 = vmatpush2.bf16.msra.mxu0 0
        %1178 = vmatprep.subr.bf16.mxu0 0
        %1179 = vmatpush2.bf16.msra.mxu0 0
        %1180 = vmatprep.subr.bf16.mxu0 0
        %1181 = vmatpush2.bf16.msra.mxu0 0
        %1182 = vmatprep.subr.bf16.mxu0 0
        %1183 = vmatpush2.bf16.msra.mxu0 0
        %1184 = vmatprep.subr.bf16.mxu0 0
        %1185 = vmatpush2.bf16.msra.mxu0 0
        %1186 = vmatprep.mubr.bf16.mxu0 0
        %1187 = vmatmul.mubr.bf16.gmra.mxu0 %v1149
        %v1188 = vpop.f32.mrf.mxu0
        %v1189 = vadd.f32 0.0, %v1188
        %v1190 = vpop.f32.mrf.mxu0
        %v1191 = vpop.f32.mrf.mxu0
        %v1192 = vadd.f32 0.0, %v1191
        %v1193 = vpop.f32.mrf.mxu0
        %1194 = vmatprep.mubr.bf16.mxu0 0
        %1195 = vmatmul.mubr.bf16.gmra.mxu0 %v1152
        %v1196 = vpop.f32.mrf.mxu0
        %v1197 = vadd.f32 0.0, %v1196
        %v1198 = vpop.f32.mrf.mxu0
        %v1199 = vpop.f32.mrf.mxu0
        %v1200 = vadd.f32 0.0, %v1199
        %v1201 = vpop.f32.mrf.mxu0
        %1202 = vdwg.mxu0
        %v1203 = vsel %vm1073, %v1189, -inf
        %v1204 = vsel %vm1073, %v1192, -inf
        %v1205 = vmax.f32 %v1203, %v1204
        %v1206 = vsel %vm1073, %v1197, -inf
        %v1207 = vsel %vm1073, %v1200, -inf
        %v1208 = vmax.f32 %v1206, %v1207
        %v1209 = vsub.f32 %v1189, %v1205
        %v1210 = vsub.f32 %v1192, %v1205
        %v1211 = vsub.f32 %v1197, %v1208
        %v1212 = vsub.f32 %v1200, %v1208
        %v1213 = vmul.f32 %v1209, 1.442695
        %v1214 = vpow.pop %v1213
        %v1215 = vmul.f32 %v1210, 1.442695
        %v1216 = vpow.pop %v1215
        %v1217 = vmul.f32 %v1211, 1.442695
        %v1218 = vpow.pop %v1217
        %v1219 = vmul.f32 %v1212, 1.442695
        %v1220 = vpow.pop %v1219
        %v1221 = vsel %vm1073, %v1214, 0.0
        %v1222 = vsel %vm1073, %v1216, 0.0
        %v1223 = vadd.f32 %v1221, %v1222
        %v1224 = vsel %vm1073, %v1218, 0.0
        %v1225 = vsel %vm1073, %v1220, 0.0
        %v1226 = vadd.f32 %v1224, %v1225
        %v1227 = vrcp.pop %v1223
        %v1228 = vrcp.pop %v1226
        %v1229 = vmul.f32 %v1214, %v1227
        %v1230 = vmul.f32 %v1216, %v1227
        %v1231 = vmul.f32 %v1218, %v1228
        %v1232 = vmul.f32 %v1220, %v1228
        %1233 = vrot.lane.b32.xlu0 %v1112, 64
        %v1234 = vpop.permute.xlu0 %1233
        %1235 = vrot.lane.b32.xlu0 %v1115, 64
        %v1236 = vpop.permute.xlu0 %1235
        %v1239 = vmul.f32 %v1229, %v1234
        %v1240 = vmul.f32 %v1230, %v1236
        %v1241 = vmul.f32 %v1231, %v1234
        %v1242 = vmul.f32 %v1232, %v1236
        %v1243 = vsel %vm1073, %v1239, 0.0
        %v1244 = vsel %vm1073, %v1240, 0.0
        %v1245 = vadd.f32 %v1243, %v1244
        %v1246 = vsel %vm1073, %v1241, 0.0
        %v1247 = vsel %vm1073, %v1242, 0.0
        %v1248 = vadd.f32 %v1246, %v1247
        %v1249 = vpack.c.bf16 %v1248, %v1245
        %v1250 = vld [vmem:[%s904] sm:$0xf]
        %v1251 = vld [vmem:[%s904 + $0x4] sm:$0xf]
        %v1252 = vld [vmem:[%s904 + $0x8] sm:$0xf]
        %v1253 = vld [vmem:[%s904 + $0xc] sm:$0xf]
        %v1254 = vld [vmem:[%s911] sm:$0x1]
        %v1256 = vlaneseq
        %v1257 = vshrl.u32 %v1256, 7
        %v1258 = vsub.s32 0, %v1257
        %v1259 = vrot.slane %v1254, %v1258
        %v1265 = vunpack.c.l.b16 %v1250
        %v1266 = vunpack.c.l.b16 %v1251
        %v1267 = vunpack.c.l.b16 %v1252
        %v1268 = vunpack.c.l.b16 %v1253
        %v1269 = vpack.c.b16 %v1266, %v1265
        %v1270 = vpack.c.b16 %v1268, %v1267
        %v1274 = vsel %vm1073, %v1249, 0
        %1276 = vmatprep.subr.bf16.mxu0 0
        %1277 = vmatpush1.bf16.msra.mxu0 0
        %1278 = vmatprep.subr.bf16.mxu0 0
        %1279 = vmatpush1.bf16.msra.mxu0 0
        %1280 = vmatprep.subr.bf16.mxu0 0
        %1281 = vmatpush1.bf16.msra.mxu0 0
        %1282 = vmatprep.subr.bf16.mxu0 0
        %1283 = vmatpush1.bf16.msra.mxu0 0
        %1284 = vmatprep.subr.bf16.mxu0 0
        %1285 = vmatpush1.bf16.msra.mxu0 0
        %1286 = vmatprep.subr.bf16.mxu0 0
        %1287 = vmatpush1.bf16.msra.mxu0 0
        %1288 = vmatprep.subr.bf16.mxu0 0
        %1289 = vmatpush1.bf16.msra.mxu0 %v1270
        %1290 = vmatprep.subr.bf16.mxu0 0
        %1291 = vmatpush1.bf16.msra.mxu0 %v1269
        %1292 = vmatprep.subr.bf16.mxu0 0
        %1293 = vmatpush2.bf16.msra.mxu0 0
        %1294 = vmatprep.subr.bf16.mxu0 0
        %1295 = vmatpush2.bf16.msra.mxu0 0
        %1296 = vmatprep.subr.bf16.mxu0 0
        %1297 = vmatpush2.bf16.msra.mxu0 0
        %1298 = vmatprep.subr.bf16.mxu0 0
        %1299 = vmatpush2.bf16.msra.mxu0 0
        %1300 = vmatprep.subr.bf16.mxu0 0
        %1301 = vmatpush2.bf16.msra.mxu0 0
        %1302 = vmatprep.subr.bf16.mxu0 0
        %1303 = vmatpush2.bf16.msra.mxu0 0
        %1304 = vmatprep.subr.bf16.mxu0 0
        %1305 = vmatpush2.bf16.msra.mxu0 0
        %1306 = vmatprep.subr.bf16.mxu0 0
        %1307 = vmatpush2.bf16.msra.mxu0 0
        %1308 = vmatprep.mubr.bf16.mxu0 0
        %1309 = vmatmul.mubr.bf16.gmra.mxu0 %v1274
        %v1310 = vpop.f32.mrf.mxu0
        %v1311 = vadd.f32 %v1259, %v1310
        %v1312 = vpop.f32.mrf.mxu0
        %v1313 = vpop.f32.mrf.mxu0
        %v1314 = vadd.f32 %v1259, %v1313
        %v1315 = vpop.f32.mrf.mxu0
        %1316 = vdwg.mxu0
        %v1317 = vadd.f32 %v1047, %v1311
        %v1318 = vadd.f32 %v1048, %v1314
        %v1319 = vld [vmem:[%s918] sm:$0x1]
        %v1320 = vld [vmem:[%s925] sm:$0x1]
        %v1321 = vsel %vm1073, %v1317, 0.0
        %1322 = vadd.xlane.f32.xlu0 %v1321
        %v1323 = vpop.xlane.xlu0 %1322
        %v1324 = vsel %vm1073, %v1318, 0.0
        %1325 = vadd.xlane.f32.xlu0 %v1324
        %v1326 = vpop.xlane.xlu0 %1325
        %v1327 = vrcp.pop 32.0
        %v1328 = vmul.f32 %v1323, %v1327
        %v1329 = vmul.f32 %v1326, %v1327
        %v1330 = vsub.f32 %v1317, %v1328
        %v1331 = vsub.f32 %v1318, %v1329
        %v1332 = vmul.f32 %v1330, %v1330
        %v1333 = vmul.f32 %v1331, %v1331
        %v1334 = vsel %vm1073, %v1332, 0.0
        %1335 = vadd.xlane.f32.xlu0 %v1334
        %v1336 = vpop.xlane.xlu0 %1335
        %v1337 = vsel %vm1073, %v1333, 0.0
        %1338 = vadd.xlane.f32.xlu0 %v1337
        %v1339 = vpop.xlane.xlu0 %1338
        %v1340 = vmul.f32 %v1336, %v1327
        %v1341 = vmul.f32 %v1339, %v1327
        %v1342 = vadd.f32 %v1340, 1e-05
        %v1343 = vadd.f32 %v1341, 1e-05
        %v1344 = vrsqrt.pop %v1342
        %v1345 = vrsqrt.pop %v1343
        %v1346 = vmul.f32 %v1330, %v1344
        %v1347 = vmul.f32 %v1331, %v1345
        %v1349 = vlaneseq
        %v1350 = vshrl.u32 %v1349, 7
        %v1351 = vsub.s32 0, %v1350
        %v1352 = vrot.slane %v1319, %v1351
        %v1354 = vmul.f32 %v1346, %v1352
        %v1355 = vmul.f32 %v1347, %v1352
        %v1357 = vlaneseq
        %v1358 = vshrl.u32 %v1357, 7
        %v1359 = vsub.s32 0, %v1358
        %v1360 = vrot.slane %v1320, %v1359
        %v1362 = vadd.f32 %v1354, %v1360
        %v1363 = vadd.f32 %v1355, %v1360
        %v1364 = vpack.c.bf16 %v1363, %v1362
        %v1365 = vld [vmem:[%s934] sm:$0xff]
        %v1366 = vld [vmem:[%s934 + $0x8] sm:$0xff]
        %v1367 = vld [vmem:[%s934 + $0x10] sm:$0xff]
        %v1368 = vld [vmem:[%s934 + $0x18] sm:$0xff]
        %v1369 = vld [vmem:[%s934 + $0x20] sm:$0xff]
        %v1370 = vld [vmem:[%s934 + $0x28] sm:$0xff]
        %v1371 = vld [vmem:[%s934 + $0x30] sm:$0xff]
        %v1372 = vld [vmem:[%s934 + $0x38] sm:$0xff]
        %v1373 = vld [vmem:[%s934 + $0x40] sm:$0xff]
        %v1374 = vld [vmem:[%s934 + $0x48] sm:$0xff]
        %v1375 = vld [vmem:[%s934 + $0x50] sm:$0xff]
        %v1376 = vld [vmem:[%s934 + $0x58] sm:$0xff]
        %v1377 = vld [vmem:[%s934 + $0x60] sm:$0xff]
        %v1378 = vld [vmem:[%s934 + $0x68] sm:$0xff]
        %v1379 = vld [vmem:[%s934 + $0x70] sm:$0xff]
        %v1380 = vld [vmem:[%s934 + $0x78] sm:$0xff]
        %v1381 = vld [vmem:[%s934 + $0x80] sm:$0xff]
        %v1382 = vld [vmem:[%s934 + $0x88] sm:$0xff]
        %v1383 = vld [vmem:[%s934 + $0x90] sm:$0xff]
        %v1384 = vld [vmem:[%s934 + $0x98] sm:$0xff]
        %v1385 = vld [vmem:[%s934 + $0xa0] sm:$0xff]
        %v1386 = vld [vmem:[%s934 + $0xa8] sm:$0xff]
        %v1387 = vld [vmem:[%s934 + $0xb0] sm:$0xff]
        %v1388 = vld [vmem:[%s934 + $0xb8] sm:$0xff]
        %v1389 = vld [vmem:[%s934 + $0xc0] sm:$0xff]
        %v1390 = vld [vmem:[%s934 + $0xc8] sm:$0xff]
        %v1391 = vld [vmem:[%s934 + $0xd0] sm:$0xff]
        %v1392 = vld [vmem:[%s934 + $0xd8] sm:$0xff]
        %v1393 = vld [vmem:[%s934 + $0xe0] sm:$0xff]
        %v1394 = vld [vmem:[%s934 + $0xe8] sm:$0xff]
        %v1395 = vld [vmem:[%s934 + $0xf0] sm:$0xff]
        %v1396 = vld [vmem:[%s934 + $0xf8] sm:$0xff]
        %v1397 = vld [vmem:[%s942] sm:$0xff]
        %v1398 = vld [vmem:[%s942 + $0x8] sm:$0xff]
        %v1401 = vlaneseq
        %v1402 = vshrl.u32 %v1401, 7
        %v1403 = vsub.s32 0, %v1402
        %v1404 = vrot.slane %v1397, %v1403
        %v1405 = vlaneseq
        %v1406 = vshrl.u32 %v1405, 7
        %v1407 = vsub.s32 1, %v1406
        %v1408 = vrot.slane %v1397, %v1407
        %v1409 = vlaneseq
        %v1410 = vshrl.u32 %v1409, 7
        %v1411 = vsub.s32 2, %v1410
        %v1412 = vrot.slane %v1397, %v1411
        %v1413 = vlaneseq
        %v1414 = vshrl.u32 %v1413, 7
        %v1415 = vsub.s32 3, %v1414
        %v1416 = vrot.slane %v1397, %v1415
        %v1417 = vlaneseq
        %v1418 = vshrl.u32 %v1417, 7
        %v1419 = vsub.s32 4, %v1418
        %v1420 = vrot.slane %v1397, %v1419
        %v1421 = vlaneseq
        %v1422 = vshrl.u32 %v1421, 7
        %v1423 = vsub.s32 5, %v1422
        %v1424 = vrot.slane %v1397, %v1423
        %v1425 = vlaneseq
        %v1426 = vshrl.u32 %v1425, 7
        %v1427 = vsub.s32 6, %v1426
        %v1428 = vrot.slane %v1397, %v1427
        %v1429 = vlaneseq
        %v1430 = vshrl.u32 %v1429, 7
        %v1431 = vsub.s32 7, %v1430
        %v1432 = vrot.slane %v1397, %v1431
        %v1433 = vlaneseq
        %v1434 = vshrl.u32 %v1433, 7
        %v1435 = vsub.s32 0, %v1434
        %v1436 = vrot.slane %v1398, %v1435
        %v1437 = vlaneseq
        %v1438 = vshrl.u32 %v1437, 7
        %v1439 = vsub.s32 1, %v1438
        %v1440 = vrot.slane %v1398, %v1439
        %v1441 = vlaneseq
        %v1442 = vshrl.u32 %v1441, 7
        %v1443 = vsub.s32 2, %v1442
        %v1444 = vrot.slane %v1398, %v1443
        %v1445 = vlaneseq
        %v1446 = vshrl.u32 %v1445, 7
        %v1447 = vsub.s32 3, %v1446
        %v1448 = vrot.slane %v1398, %v1447
        %v1449 = vlaneseq
        %v1450 = vshrl.u32 %v1449, 7
        %v1451 = vsub.s32 4, %v1450
        %v1452 = vrot.slane %v1398, %v1451
        %v1453 = vlaneseq
        %v1454 = vshrl.u32 %v1453, 7
        %v1455 = vsub.s32 5, %v1454
        %v1456 = vrot.slane %v1398, %v1455
        %v1457 = vlaneseq
        %v1458 = vshrl.u32 %v1457, 7
        %v1459 = vsub.s32 6, %v1458
        %v1460 = vrot.slane %v1398, %v1459
        %v1461 = vlaneseq
        %v1462 = vshrl.u32 %v1461, 7
        %v1463 = vsub.s32 7, %v1462
        %v1464 = vrot.slane %v1398, %v1463
        %v1513 = vunpack.c.l.b16 %v1365
        %v1514 = vunpack.c.h.b16 %v1365
        %v1515 = vunpack.c.l.b16 %v1366
        %v1516 = vunpack.c.h.b16 %v1366
        %v1517 = vunpack.c.l.b16 %v1367
        %v1518 = vunpack.c.h.b16 %v1367
        %v1519 = vunpack.c.l.b16 %v1368
        %v1520 = vunpack.c.h.b16 %v1368
        %v1521 = vunpack.c.l.b16 %v1369
        %v1522 = vunpack.c.h.b16 %v1369
        %v1523 = vunpack.c.l.b16 %v1370
        %v1524 = vunpack.c.h.b16 %v1370
        %v1525 = vunpack.c.l.b16 %v1371
        %v1526 = vunpack.c.h.b16 %v1371
        %v1527 = vunpack.c.l.b16 %v1372
        %v1528 = vunpack.c.h.b16 %v1372
        %v1529 = vunpack.c.l.b16 %v1373
        %v1530 = vunpack.c.h.b16 %v1373
        %v1531 = vunpack.c.l.b16 %v1374
        %v1532 = vunpack.c.h.b16 %v1374
        %v1533 = vunpack.c.l.b16 %v1375
        %v1534 = vunpack.c.h.b16 %v1375
        %v1535 = vunpack.c.l.b16 %v1376
        %v1536 = vunpack.c.h.b16 %v1376
        %v1537 = vunpack.c.l.b16 %v1377
        %v1538 = vunpack.c.h.b16 %v1377
        %v1539 = vunpack.c.l.b16 %v1378
        %v1540 = vunpack.c.h.b16 %v1378
        %v1541 = vunpack.c.l.b16 %v1379
        %v1542 = vunpack.c.h.b16 %v1379
        %v1543 = vunpack.c.l.b16 %v1380
        %v1544 = vunpack.c.h.b16 %v1380
        %v1545 = vunpack.c.l.b16 %v1381
        %v1546 = vunpack.c.h.b16 %v1381
        %v1547 = vunpack.c.l.b16 %v1382
        %v1548 = vunpack.c.h.b16 %v1382
        %v1549 = vunpack.c.l.b16 %v1383
        %v1550 = vunpack.c.h.b16 %v1383
        %v1551 = vunpack.c.l.b16 %v1384
        %v1552 = vunpack.c.h.b16 %v1384
        %v1553 = vunpack.c.l.b16 %v1385
        %v1554 = vunpack.c.h.b16 %v1385
        %v1555 = vunpack.c.l.b16 %v1386
        %v1556 = vunpack.c.h.b16 %v1386
        %v1557 = vunpack.c.l.b16 %v1387
        %v1558 = vunpack.c.h.b16 %v1387
        %v1559 = vunpack.c.l.b16 %v1388
        %v1560 = vunpack.c.h.b16 %v1388
        %v1561 = vunpack.c.l.b16 %v1389
        %v1562 = vunpack.c.h.b16 %v1389
        %v1563 = vunpack.c.l.b16 %v1390
        %v1564 = vunpack.c.h.b16 %v1390
        %v1565 = vunpack.c.l.b16 %v1391
        %v1566 = vunpack.c.h.b16 %v1391
        %v1567 = vunpack.c.l.b16 %v1392
        %v1568 = vunpack.c.h.b16 %v1392
        %v1569 = vunpack.c.l.b16 %v1393
        %v1570 = vunpack.c.h.b16 %v1393
        %v1571 = vunpack.c.l.b16 %v1394
        %v1572 = vunpack.c.h.b16 %v1394
        %v1573 = vunpack.c.l.b16 %v1395
        %v1574 = vunpack.c.h.b16 %v1395
        %v1575 = vunpack.c.l.b16 %v1396
        %v1576 = vunpack.c.h.b16 %v1396
        %v1577 = vpack.c.b16 %v1529, %v1513
        %v1578 = vpack.c.b16 %v1530, %v1514
        %v1579 = vpack.c.b16 %v1531, %v1515
        %v1580 = vpack.c.b16 %v1532, %v1516
        %v1581 = vpack.c.b16 %v1533, %v1517
        %v1582 = vpack.c.b16 %v1534, %v1518
        %v1583 = vpack.c.b16 %v1535, %v1519
        %v1584 = vpack.c.b16 %v1536, %v1520
        %v1585 = vpack.c.b16 %v1537, %v1521
        %v1586 = vpack.c.b16 %v1538, %v1522
        %v1587 = vpack.c.b16 %v1539, %v1523
        %v1588 = vpack.c.b16 %v1540, %v1524
        %v1589 = vpack.c.b16 %v1541, %v1525
        %v1590 = vpack.c.b16 %v1542, %v1526
        %v1591 = vpack.c.b16 %v1543, %v1527
        %v1592 = vpack.c.b16 %v1544, %v1528
        %v1593 = vpack.c.b16 %v1561, %v1545
        %v1594 = vpack.c.b16 %v1562, %v1546
        %v1595 = vpack.c.b16 %v1563, %v1547
        %v1596 = vpack.c.b16 %v1564, %v1548
        %v1597 = vpack.c.b16 %v1565, %v1549
        %v1598 = vpack.c.b16 %v1566, %v1550
        %v1599 = vpack.c.b16 %v1567, %v1551
        %v1600 = vpack.c.b16 %v1568, %v1552
        %v1601 = vpack.c.b16 %v1569, %v1553
        %v1602 = vpack.c.b16 %v1570, %v1554
        %v1603 = vpack.c.b16 %v1571, %v1555
        %v1604 = vpack.c.b16 %v1572, %v1556
        %v1605 = vpack.c.b16 %v1573, %v1557
        %v1606 = vpack.c.b16 %v1574, %v1558
        %v1607 = vpack.c.b16 %v1575, %v1559
        %v1608 = vpack.c.b16 %v1576, %v1560
        %v1642 = vsel %vm1073, %v1364, 0
        %1644 = vmatprep.subr.bf16.mxu0 0
        %1645 = vmatpush1.bf16.msra.mxu0 0
        %1646 = vmatprep.subr.bf16.mxu0 0
        %1647 = vmatpush1.bf16.msra.mxu0 0
        %1648 = vmatprep.subr.bf16.mxu0 0
        %1649 = vmatpush1.bf16.msra.mxu0 0
        %1650 = vmatprep.subr.bf16.mxu0 0
        %1651 = vmatpush1.bf16.msra.mxu0 0
        %1652 = vmatprep.subr.bf16.mxu0 0
        %1653 = vmatpush1.bf16.msra.mxu0 0
        %1654 = vmatprep.subr.bf16.mxu0 0
        %1655 = vmatpush1.bf16.msra.mxu0 0
        %1656 = vmatprep.subr.bf16.mxu0 %v1594
        %1657 = vmatpush1.bf16.msra.mxu0 %v1593
        %1658 = vmatprep.subr.bf16.mxu0 %v1578
        %1659 = vmatpush1.bf16.msra.mxu0 %v1577
        %1660 = vmatprep.subr.bf16.mxu0 0
        %1661 = vmatpush2.bf16.msra.mxu0 0
        %1662 = vmatprep.subr.bf16.mxu0 0
        %1663 = vmatpush2.bf16.msra.mxu0 0
        %1664 = vmatprep.subr.bf16.mxu0 0
        %1665 = vmatpush2.bf16.msra.mxu0 0
        %1666 = vmatprep.subr.bf16.mxu0 0
        %1667 = vmatpush2.bf16.msra.mxu0 0
        %1668 = vmatprep.subr.bf16.mxu0 0
        %1669 = vmatpush2.bf16.msra.mxu0 0
        %1670 = vmatprep.subr.bf16.mxu0 0
        %1671 = vmatpush2.bf16.msra.mxu0 0
        %1672 = vmatprep.subr.bf16.mxu0 0
        %1673 = vmatpush2.bf16.msra.mxu0 0
        %1674 = vmatprep.subr.bf16.mxu0 0
        %1675 = vmatpush2.bf16.msra.mxu0 0
        %1676 = vmatprep.mubr.bf16.mxu0 0
        %1677 = vmatmul.mubr.bf16.gmra.mxu0 %v1642
        %v1678 = vpop.f32.mrf.mxu0
        %v1679 = vadd.f32 %v1404, %v1678
        %v1680 = vpop.f32.mrf.mxu0
        %v1681 = vadd.f32 %v1408, %v1680
        %v1682 = vpop.f32.mrf.mxu0
        %v1683 = vadd.f32 %v1404, %v1682
        %v1684 = vpop.f32.mrf.mxu0
        %v1685 = vadd.f32 %v1408, %v1684
        %1686 = vdwg.mxu0
        %1687 = vmatprep.subr.bf16.mxu0 0
        %1688 = vmatpush1.bf16.msra.mxu0 0
        %1689 = vmatprep.subr.bf16.mxu0 0
        %1690 = vmatpush1.bf16.msra.mxu0 0
        %1691 = vmatprep.subr.bf16.mxu0 0
        %1692 = vmatpush1.bf16.msra.mxu0 0
        %1693 = vmatprep.subr.bf16.mxu0 0
        %1694 = vmatpush1.bf16.msra.mxu0 0
        %1695 = vmatprep.subr.bf16.mxu0 0
        %1696 = vmatpush1.bf16.msra.mxu0 0
        %1697 = vmatprep.subr.bf16.mxu0 0
        %1698 = vmatpush1.bf16.msra.mxu0 0
        %1699 = vmatprep.subr.bf16.mxu0 %v1596
        %1700 = vmatpush1.bf16.msra.mxu0 %v1595
        %1701 = vmatprep.subr.bf16.mxu0 %v1580
        %1702 = vmatpush1.bf16.msra.mxu0 %v1579
        %1703 = vmatprep.subr.bf16.mxu0 0
        %1704 = vmatpush2.bf16.msra.mxu0 0
        %1705 = vmatprep.subr.bf16.mxu0 0
        %1706 = vmatpush2.bf16.msra.mxu0 0
        %1707 = vmatprep.subr.bf16.mxu0 0
        %1708 = vmatpush2.bf16.msra.mxu0 0
        %1709 = vmatprep.subr.bf16.mxu0 0
        %1710 = vmatpush2.bf16.msra.mxu0 0
        %1711 = vmatprep.subr.bf16.mxu0 0
        %1712 = vmatpush2.bf16.msra.mxu0 0
        %1713 = vmatprep.subr.bf16.mxu0 0
        %1714 = vmatpush2.bf16.msra.mxu0 0
        %1715 = vmatprep.subr.bf16.mxu0 0
        %1716 = vmatpush2.bf16.msra.mxu0 0
        %1717 = vmatprep.subr.bf16.mxu0 0
        %1718 = vmatpush2.bf16.msra.mxu0 0
        %1719 = vmatprep.mubr.bf16.mxu0 0
        %1720 = vmatmul.mubr.bf16.gmra.mxu0 %v1642
        %v1721 = vpop.f32.mrf.mxu0
        %v1722 = vadd.f32 %v1412, %v1721
        %v1723 = vpop.f32.mrf.mxu0
        %v1724 = vadd.f32 %v1416, %v1723
        %v1725 = vpop.f32.mrf.mxu0
        %v1726 = vadd.f32 %v1412, %v1725
        %v1727 = vpop.f32.mrf.mxu0
        %v1728 = vadd.f32 %v1416, %v1727
        %1729 = vdwg.mxu0
        %1730 = vmatprep.subr.bf16.mxu0 0
        %1731 = vmatpush1.bf16.msra.mxu0 0
        %1732 = vmatprep.subr.bf16.mxu0 0
        %1733 = vmatpush1.bf16.msra.mxu0 0
        %1734 = vmatprep.subr.bf16.mxu0 0
        %1735 = vmatpush1.bf16.msra.mxu0 0
        %1736 = vmatprep.subr.bf16.mxu0 0
        %1737 = vmatpush1.bf16.msra.mxu0 0
        %1738 = vmatprep.subr.bf16.mxu0 0
        %1739 = vmatpush1.bf16.msra.mxu0 0
        %1740 = vmatprep.subr.bf16.mxu0 0
        %1741 = vmatpush1.bf16.msra.mxu0 0
        %1742 = vmatprep.subr.bf16.mxu0 %v1598
        %1743 = vmatpush1.bf16.msra.mxu0 %v1597
        %1744 = vmatprep.subr.bf16.mxu0 %v1582
        %1745 = vmatpush1.bf16.msra.mxu0 %v1581
        %1746 = vmatprep.subr.bf16.mxu0 0
        %1747 = vmatpush2.bf16.msra.mxu0 0
        %1748 = vmatprep.subr.bf16.mxu0 0
        %1749 = vmatpush2.bf16.msra.mxu0 0
        %1750 = vmatprep.subr.bf16.mxu0 0
        %1751 = vmatpush2.bf16.msra.mxu0 0
        %1752 = vmatprep.subr.bf16.mxu0 0
        %1753 = vmatpush2.bf16.msra.mxu0 0
        %1754 = vmatprep.subr.bf16.mxu0 0
        %1755 = vmatpush2.bf16.msra.mxu0 0
        %1756 = vmatprep.subr.bf16.mxu0 0
        %1757 = vmatpush2.bf16.msra.mxu0 0
        %1758 = vmatprep.subr.bf16.mxu0 0
        %1759 = vmatpush2.bf16.msra.mxu0 0
        %1760 = vmatprep.subr.bf16.mxu0 0
        %1761 = vmatpush2.bf16.msra.mxu0 0
        %1762 = vmatprep.mubr.bf16.mxu0 0
        %1763 = vmatmul.mubr.bf16.gmra.mxu0 %v1642
        %v1764 = vpop.f32.mrf.mxu0
        %v1765 = vadd.f32 %v1420, %v1764
        %v1766 = vpop.f32.mrf.mxu0
        %v1767 = vadd.f32 %v1424, %v1766
        %v1768 = vpop.f32.mrf.mxu0
        %v1769 = vadd.f32 %v1420, %v1768
        %v1770 = vpop.f32.mrf.mxu0
        %v1771 = vadd.f32 %v1424, %v1770
        %1772 = vdwg.mxu0
        %1773 = vmatprep.subr.bf16.mxu0 0
        %1774 = vmatpush1.bf16.msra.mxu0 0
        %1775 = vmatprep.subr.bf16.mxu0 0
        %1776 = vmatpush1.bf16.msra.mxu0 0
        %1777 = vmatprep.subr.bf16.mxu0 0
        %1778 = vmatpush1.bf16.msra.mxu0 0
        %1779 = vmatprep.subr.bf16.mxu0 0
        %1780 = vmatpush1.bf16.msra.mxu0 0
        %1781 = vmatprep.subr.bf16.mxu0 0
        %1782 = vmatpush1.bf16.msra.mxu0 0
        %1783 = vmatprep.subr.bf16.mxu0 0
        %1784 = vmatpush1.bf16.msra.mxu0 0
        %1785 = vmatprep.subr.bf16.mxu0 %v1600
        %1786 = vmatpush1.bf16.msra.mxu0 %v1599
        %1787 = vmatprep.subr.bf16.mxu0 %v1584
        %1788 = vmatpush1.bf16.msra.mxu0 %v1583
        %1789 = vmatprep.subr.bf16.mxu0 0
        %1790 = vmatpush2.bf16.msra.mxu0 0
        %1791 = vmatprep.subr.bf16.mxu0 0
        %1792 = vmatpush2.bf16.msra.mxu0 0
        %1793 = vmatprep.subr.bf16.mxu0 0
        %1794 = vmatpush2.bf16.msra.mxu0 0
        %1795 = vmatprep.subr.bf16.mxu0 0
        %1796 = vmatpush2.bf16.msra.mxu0 0
        %1797 = vmatprep.subr.bf16.mxu0 0
        %1798 = vmatpush2.bf16.msra.mxu0 0
        %1799 = vmatprep.subr.bf16.mxu0 0
        %1800 = vmatpush2.bf16.msra.mxu0 0
        %1801 = vmatprep.subr.bf16.mxu0 0
        %1802 = vmatpush2.bf16.msra.mxu0 0
        %1803 = vmatprep.subr.bf16.mxu0 0
        %1804 = vmatpush2.bf16.msra.mxu0 0
        %1805 = vmatprep.mubr.bf16.mxu0 0
        %1806 = vmatmul.mubr.bf16.gmra.mxu0 %v1642
        %v1807 = vpop.f32.mrf.mxu0
        %v1808 = vadd.f32 %v1428, %v1807
        %v1809 = vpop.f32.mrf.mxu0
        %v1810 = vadd.f32 %v1432, %v1809
        %v1811 = vpop.f32.mrf.mxu0
        %v1812 = vadd.f32 %v1428, %v1811
        %v1813 = vpop.f32.mrf.mxu0
        %v1814 = vadd.f32 %v1432, %v1813
        %1815 = vdwg.mxu0
        %1816 = vmatprep.subr.bf16.mxu0 0
        %1817 = vmatpush1.bf16.msra.mxu0 0
        %1818 = vmatprep.subr.bf16.mxu0 0
        %1819 = vmatpush1.bf16.msra.mxu0 0
        %1820 = vmatprep.subr.bf16.mxu0 0
        %1821 = vmatpush1.bf16.msra.mxu0 0
        %1822 = vmatprep.subr.bf16.mxu0 0
        %1823 = vmatpush1.bf16.msra.mxu0 0
        %1824 = vmatprep.subr.bf16.mxu0 0
        %1825 = vmatpush1.bf16.msra.mxu0 0
        %1826 = vmatprep.subr.bf16.mxu0 0
        %1827 = vmatpush1.bf16.msra.mxu0 0
        %1828 = vmatprep.subr.bf16.mxu0 %v1602
        %1829 = vmatpush1.bf16.msra.mxu0 %v1601
        %1830 = vmatprep.subr.bf16.mxu0 %v1586
        %1831 = vmatpush1.bf16.msra.mxu0 %v1585
        %1832 = vmatprep.subr.bf16.mxu0 0
        %1833 = vmatpush2.bf16.msra.mxu0 0
        %1834 = vmatprep.subr.bf16.mxu0 0
        %1835 = vmatpush2.bf16.msra.mxu0 0
        %1836 = vmatprep.subr.bf16.mxu0 0
        %1837 = vmatpush2.bf16.msra.mxu0 0
        %1838 = vmatprep.subr.bf16.mxu0 0
        %1839 = vmatpush2.bf16.msra.mxu0 0
        %1840 = vmatprep.subr.bf16.mxu0 0
        %1841 = vmatpush2.bf16.msra.mxu0 0
        %1842 = vmatprep.subr.bf16.mxu0 0
        %1843 = vmatpush2.bf16.msra.mxu0 0
        %1844 = vmatprep.subr.bf16.mxu0 0
        %1845 = vmatpush2.bf16.msra.mxu0 0
        %1846 = vmatprep.subr.bf16.mxu0 0
        %1847 = vmatpush2.bf16.msra.mxu0 0
        %1848 = vmatprep.mubr.bf16.mxu0 0
        %1849 = vmatmul.mubr.bf16.gmra.mxu0 %v1642
        %v1850 = vpop.f32.mrf.mxu0
        %v1851 = vadd.f32 %v1436, %v1850
        %v1852 = vpop.f32.mrf.mxu0
        %v1853 = vadd.f32 %v1440, %v1852
        %v1854 = vpop.f32.mrf.mxu0
        %v1855 = vadd.f32 %v1436, %v1854
        %v1856 = vpop.f32.mrf.mxu0
        %v1857 = vadd.f32 %v1440, %v1856
        %1858 = vdwg.mxu0
        %1859 = vmatprep.subr.bf16.mxu0 0
        %1860 = vmatpush1.bf16.msra.mxu0 0
        %1861 = vmatprep.subr.bf16.mxu0 0
        %1862 = vmatpush1.bf16.msra.mxu0 0
        %1863 = vmatprep.subr.bf16.mxu0 0
        %1864 = vmatpush1.bf16.msra.mxu0 0
        %1865 = vmatprep.subr.bf16.mxu0 0
        %1866 = vmatpush1.bf16.msra.mxu0 0
        %1867 = vmatprep.subr.bf16.mxu0 0
        %1868 = vmatpush1.bf16.msra.mxu0 0
        %1869 = vmatprep.subr.bf16.mxu0 0
        %1870 = vmatpush1.bf16.msra.mxu0 0
        %1871 = vmatprep.subr.bf16.mxu0 %v1604
        %1872 = vmatpush1.bf16.msra.mxu0 %v1603
        %1873 = vmatprep.subr.bf16.mxu0 %v1588
        %1874 = vmatpush1.bf16.msra.mxu0 %v1587
        %1875 = vmatprep.subr.bf16.mxu0 0
        %1876 = vmatpush2.bf16.msra.mxu0 0
        %1877 = vmatprep.subr.bf16.mxu0 0
        %1878 = vmatpush2.bf16.msra.mxu0 0
        %1879 = vmatprep.subr.bf16.mxu0 0
        %1880 = vmatpush2.bf16.msra.mxu0 0
        %1881 = vmatprep.subr.bf16.mxu0 0
        %1882 = vmatpush2.bf16.msra.mxu0 0
        %1883 = vmatprep.subr.bf16.mxu0 0
        %1884 = vmatpush2.bf16.msra.mxu0 0
        %1885 = vmatprep.subr.bf16.mxu0 0
        %1886 = vmatpush2.bf16.msra.mxu0 0
        %1887 = vmatprep.subr.bf16.mxu0 0
        %1888 = vmatpush2.bf16.msra.mxu0 0
        %1889 = vmatprep.subr.bf16.mxu0 0
        %1890 = vmatpush2.bf16.msra.mxu0 0
        %1891 = vmatprep.mubr.bf16.mxu0 0
        %1892 = vmatmul.mubr.bf16.gmra.mxu0 %v1642
        %v1893 = vpop.f32.mrf.mxu0
        %v1894 = vadd.f32 %v1444, %v1893
        %v1895 = vpop.f32.mrf.mxu0
        %v1896 = vadd.f32 %v1448, %v1895
        %v1897 = vpop.f32.mrf.mxu0
        %v1898 = vadd.f32 %v1444, %v1897
        %v1899 = vpop.f32.mrf.mxu0
        %v1900 = vadd.f32 %v1448, %v1899
        %1901 = vdwg.mxu0
        %1902 = vmatprep.subr.bf16.mxu0 0
        %1903 = vmatpush1.bf16.msra.mxu0 0
        %1904 = vmatprep.subr.bf16.mxu0 0
        %1905 = vmatpush1.bf16.msra.mxu0 0
        %1906 = vmatprep.subr.bf16.mxu0 0
        %1907 = vmatpush1.bf16.msra.mxu0 0
        %1908 = vmatprep.subr.bf16.mxu0 0
        %1909 = vmatpush1.bf16.msra.mxu0 0
        %1910 = vmatprep.subr.bf16.mxu0 0
        %1911 = vmatpush1.bf16.msra.mxu0 0
        %1912 = vmatprep.subr.bf16.mxu0 0
        %1913 = vmatpush1.bf16.msra.mxu0 0
        %1914 = vmatprep.subr.bf16.mxu0 %v1606
        %1915 = vmatpush1.bf16.msra.mxu0 %v1605
        %1916 = vmatprep.subr.bf16.mxu0 %v1590
        %1917 = vmatpush1.bf16.msra.mxu0 %v1589
        %1918 = vmatprep.subr.bf16.mxu0 0
        %1919 = vmatpush2.bf16.msra.mxu0 0
        %1920 = vmatprep.subr.bf16.mxu0 0
        %1921 = vmatpush2.bf16.msra.mxu0 0
        %1922 = vmatprep.subr.bf16.mxu0 0
        %1923 = vmatpush2.bf16.msra.mxu0 0
        %1924 = vmatprep.subr.bf16.mxu0 0
        %1925 = vmatpush2.bf16.msra.mxu0 0
        %1926 = vmatprep.subr.bf16.mxu0 0
        %1927 = vmatpush2.bf16.msra.mxu0 0
        %1928 = vmatprep.subr.bf16.mxu0 0
        %1929 = vmatpush2.bf16.msra.mxu0 0
        %1930 = vmatprep.subr.bf16.mxu0 0
        %1931 = vmatpush2.bf16.msra.mxu0 0
        %1932 = vmatprep.subr.bf16.mxu0 0
        %1933 = vmatpush2.bf16.msra.mxu0 0
        %1934 = vmatprep.mubr.bf16.mxu0 0
        %1935 = vmatmul.mubr.bf16.gmra.mxu0 %v1642
        %v1936 = vpop.f32.mrf.mxu0
        %v1937 = vadd.f32 %v1452, %v1936
        %v1938 = vpop.f32.mrf.mxu0
        %v1939 = vadd.f32 %v1456, %v1938
        %v1940 = vpop.f32.mrf.mxu0
        %v1941 = vadd.f32 %v1452, %v1940
        %v1942 = vpop.f32.mrf.mxu0
        %v1943 = vadd.f32 %v1456, %v1942
        %1944 = vdwg.mxu0
        %1945 = vmatprep.subr.bf16.mxu0 0
        %1946 = vmatpush1.bf16.msra.mxu0 0
        %1947 = vmatprep.subr.bf16.mxu0 0
        %1948 = vmatpush1.bf16.msra.mxu0 0
        %1949 = vmatprep.subr.bf16.mxu0 0
        %1950 = vmatpush1.bf16.msra.mxu0 0
        %1951 = vmatprep.subr.bf16.mxu0 0
        %1952 = vmatpush1.bf16.msra.mxu0 0
        %1953 = vmatprep.subr.bf16.mxu0 0
        %1954 = vmatpush1.bf16.msra.mxu0 0
        %1955 = vmatprep.subr.bf16.mxu0 0
        %1956 = vmatpush1.bf16.msra.mxu0 0
        %1957 = vmatprep.subr.bf16.mxu0 %v1608
        %1958 = vmatpush1.bf16.msra.mxu0 %v1607
        %1959 = vmatprep.subr.bf16.mxu0 %v1592
        %1960 = vmatpush1.bf16.msra.mxu0 %v1591
        %1961 = vmatprep.subr.bf16.mxu0 0
        %1962 = vmatpush2.bf16.msra.mxu0 0
        %1963 = vmatprep.subr.bf16.mxu0 0
        %1964 = vmatpush2.bf16.msra.mxu0 0
        %1965 = vmatprep.subr.bf16.mxu0 0
        %1966 = vmatpush2.bf16.msra.mxu0 0
        %1967 = vmatprep.subr.bf16.mxu0 0
        %1968 = vmatpush2.bf16.msra.mxu0 0
        %1969 = vmatprep.subr.bf16.mxu0 0
        %1970 = vmatpush2.bf16.msra.mxu0 0
        %1971 = vmatprep.subr.bf16.mxu0 0
        %1972 = vmatpush2.bf16.msra.mxu0 0
        %1973 = vmatprep.subr.bf16.mxu0 0
        %1974 = vmatpush2.bf16.msra.mxu0 0
        %1975 = vmatprep.subr.bf16.mxu0 0
        %1976 = vmatpush2.bf16.msra.mxu0 0
        %1977 = vmatprep.mubr.bf16.mxu0 0
        %1978 = vmatmul.mubr.bf16.gmra.mxu0 %v1642
        %v1979 = vpop.f32.mrf.mxu0
        %v1980 = vadd.f32 %v1460, %v1979
        %v1981 = vpop.f32.mrf.mxu0
        %v1982 = vadd.f32 %v1464, %v1981
        %v1983 = vpop.f32.mrf.mxu0
        %v1984 = vadd.f32 %v1460, %v1983
        %v1985 = vpop.f32.mrf.mxu0
        %v1986 = vadd.f32 %v1464, %v1985
        %1987 = vdwg.mxu0
        %v1988 = vmax.f32 %v1679, 0.0
        %v1989 = vmax.f32 %v1681, 0.0
        %v1990 = vmax.f32 %v1722, 0.0
        %v1991 = vmax.f32 %v1724, 0.0
        %v1992 = vmax.f32 %v1765, 0.0
        %v1993 = vmax.f32 %v1767, 0.0
        %v1994 = vmax.f32 %v1808, 0.0
        %v1995 = vmax.f32 %v1810, 0.0
        %v1996 = vmax.f32 %v1851, 0.0
        %v1997 = vmax.f32 %v1853, 0.0
        %v1998 = vmax.f32 %v1894, 0.0
        %v1999 = vmax.f32 %v1896, 0.0
        %v2000 = vmax.f32 %v1937, 0.0
        %v2001 = vmax.f32 %v1939, 0.0
        %v2002 = vmax.f32 %v1980, 0.0
        %v2003 = vmax.f32 %v1982, 0.0
        %v2004 = vmax.f32 %v1683, 0.0
        %v2005 = vmax.f32 %v1685, 0.0
        %v2006 = vmax.f32 %v1726, 0.0
        %v2007 = vmax.f32 %v1728, 0.0
        %v2008 = vmax.f32 %v1769, 0.0
        %v2009 = vmax.f32 %v1771, 0.0
        %v2010 = vmax.f32 %v1812, 0.0
        %v2011 = vmax.f32 %v1814, 0.0
        %v2012 = vmax.f32 %v1855, 0.0
        %v2013 = vmax.f32 %v1857, 0.0
        %v2014 = vmax.f32 %v1898, 0.0
        %v2015 = vmax.f32 %v1900, 0.0
        %v2016 = vmax.f32 %v1941, 0.0
        %v2017 = vmax.f32 %v1943, 0.0
        %v2018 = vmax.f32 %v1984, 0.0
        %v2019 = vmax.f32 %v1986, 0.0
        %v2020 = vpack.c.bf16 %v2004, %v1988
        %v2021 = vpack.c.bf16 %v2005, %v1989
        %v2022 = vpack.c.bf16 %v2006, %v1990
        %v2023 = vpack.c.bf16 %v2007, %v1991
        %v2024 = vpack.c.bf16 %v2008, %v1992
        %v2025 = vpack.c.bf16 %v2009, %v1993
        %v2026 = vpack.c.bf16 %v2010, %v1994
        %v2027 = vpack.c.bf16 %v2011, %v1995
        %v2028 = vpack.c.bf16 %v2012, %v1996
        %v2029 = vpack.c.bf16 %v2013, %v1997
        %v2030 = vpack.c.bf16 %v2014, %v1998
        %v2031 = vpack.c.bf16 %v2015, %v1999
        %v2032 = vpack.c.bf16 %v2016, %v2000
        %v2033 = vpack.c.bf16 %v2017, %v2001
        %v2034 = vpack.c.bf16 %v2018, %v2002
        %v2035 = vpack.c.bf16 %v2019, %v2003
        %v2036 = vld [vmem:[%s951] sm:$0xf]
        %v2037 = vld [vmem:[%s951 + $0x4] sm:$0xf]
        %v2038 = vld [vmem:[%s951 + $0x8] sm:$0xf]
        %v2039 = vld [vmem:[%s951 + $0xc] sm:$0xf]
        %v2040 = vld [vmem:[%s951 + $0x10] sm:$0xf]
        %v2041 = vld [vmem:[%s951 + $0x14] sm:$0xf]
        %v2042 = vld [vmem:[%s951 + $0x18] sm:$0xf]
        %v2043 = vld [vmem:[%s951 + $0x1c] sm:$0xf]
        %v2044 = vld [vmem:[%s951 + $0x20] sm:$0xf]
        %v2045 = vld [vmem:[%s951 + $0x24] sm:$0xf]
        %v2046 = vld [vmem:[%s951 + $0x28] sm:$0xf]
        %v2047 = vld [vmem:[%s951 + $0x2c] sm:$0xf]
        %v2048 = vld [vmem:[%s951 + $0x30] sm:$0xf]
        %v2049 = vld [vmem:[%s951 + $0x34] sm:$0xf]
        %v2050 = vld [vmem:[%s951 + $0x38] sm:$0xf]
        %v2051 = vld [vmem:[%s951 + $0x3c] sm:$0xf]
        %v2052 = vld [vmem:[%s951 + $0x40] sm:$0xf]
        %v2053 = vld [vmem:[%s951 + $0x44] sm:$0xf]
        %v2054 = vld [vmem:[%s951 + $0x48] sm:$0xf]
        %v2055 = vld [vmem:[%s951 + $0x4c] sm:$0xf]
        %v2056 = vld [vmem:[%s951 + $0x50] sm:$0xf]
        %v2057 = vld [vmem:[%s951 + $0x54] sm:$0xf]
        %v2058 = vld [vmem:[%s951 + $0x58] sm:$0xf]
        %v2059 = vld [vmem:[%s951 + $0x5c] sm:$0xf]
        %v2060 = vld [vmem:[%s951 + $0x60] sm:$0xf]
        %v2061 = vld [vmem:[%s951 + $0x64] sm:$0xf]
        %v2062 = vld [vmem:[%s951 + $0x68] sm:$0xf]
        %v2063 = vld [vmem:[%s951 + $0x6c] sm:$0xf]
        %v2064 = vld [vmem:[%s951 + $0x70] sm:$0xf]
        %v2065 = vld [vmem:[%s951 + $0x74] sm:$0xf]
        %v2066 = vld [vmem:[%s951 + $0x78] sm:$0xf]
        %v2067 = vld [vmem:[%s951 + $0x7c] sm:$0xf]
        %v2068 = vld [vmem:[%s951 + $0x80] sm:$0xf]
        %v2069 = vld [vmem:[%s951 + $0x84] sm:$0xf]
        %v2070 = vld [vmem:[%s951 + $0x88] sm:$0xf]
        %v2071 = vld [vmem:[%s951 + $0x8c] sm:$0xf]
        %v2072 = vld [vmem:[%s951 + $0x90] sm:$0xf]
        %v2073 = vld [vmem:[%s951 + $0x94] sm:$0xf]
        %v2074 = vld [vmem:[%s951 + $0x98] sm:$0xf]
        %v2075 = vld [vmem:[%s951 + $0x9c] sm:$0xf]
        %v2076 = vld [vmem:[%s951 + $0xa0] sm:$0xf]
        %v2077 = vld [vmem:[%s951 + $0xa4] sm:$0xf]
        %v2078 = vld [vmem:[%s951 + $0xa8] sm:$0xf]
        %v2079 = vld [vmem:[%s951 + $0xac] sm:$0xf]
        %v2080 = vld [vmem:[%s951 + $0xb0] sm:$0xf]
        %v2081 = vld [vmem:[%s951 + $0xb4] sm:$0xf]
        %v2082 = vld [vmem:[%s951 + $0xb8] sm:$0xf]
        %v2083 = vld [vmem:[%s951 + $0xbc] sm:$0xf]
        %v2084 = vld [vmem:[%s951 + $0xc0] sm:$0xf]
        %v2085 = vld [vmem:[%s951 + $0xc4] sm:$0xf]
        %v2086 = vld [vmem:[%s951 + $0xc8] sm:$0xf]
        %v2087 = vld [vmem:[%s951 + $0xcc] sm:$0xf]
        %v2088 = vld [vmem:[%s951 + $0xd0] sm:$0xf]
        %v2089 = vld [vmem:[%s951 + $0xd4] sm:$0xf]
        %v2090 = vld [vmem:[%s951 + $0xd8] sm:$0xf]
        %v2091 = vld [vmem:[%s951 + $0xdc] sm:$0xf]
        %v2092 = vld [vmem:[%s951 + $0xe0] sm:$0xf]
        %v2093 = vld [vmem:[%s951 + $0xe4] sm:$0xf]
        %v2094 = vld [vmem:[%s951 + $0xe8] sm:$0xf]
        %v2095 = vld [vmem:[%s951 + $0xec] sm:$0xf]
        %v2096 = vld [vmem:[%s951 + $0xf0] sm:$0xf]
        %v2097 = vld [vmem:[%s951 + $0xf4] sm:$0xf]
        %v2098 = vld [vmem:[%s951 + $0xf8] sm:$0xf]
        %v2099 = vld [vmem:[%s951 + $0xfc] sm:$0xf]
        %v2100 = vld [vmem:[%s951 + $0x100] sm:$0xf]
        %v2101 = vld [vmem:[%s951 + $0x104] sm:$0xf]
        %v2102 = vld [vmem:[%s951 + $0x108] sm:$0xf]
        %v2103 = vld [vmem:[%s951 + $0x10c] sm:$0xf]
        %v2104 = vld [vmem:[%s951 + $0x110] sm:$0xf]
        %v2105 = vld [vmem:[%s951 + $0x114] sm:$0xf]
        %v2106 = vld [vmem:[%s951 + $0x118] sm:$0xf]
        %v2107 = vld [vmem:[%s951 + $0x11c] sm:$0xf]
        %v2108 = vld [vmem:[%s951 + $0x120] sm:$0xf]
        %v2109 = vld [vmem:[%s951 + $0x124] sm:$0xf]
        %v2110 = vld [vmem:[%s951 + $0x128] sm:$0xf]
        %v2111 = vld [vmem:[%s951 + $0x12c] sm:$0xf]
        %v2112 = vld [vmem:[%s951 + $0x130] sm:$0xf]
        %v2113 = vld [vmem:[%s951 + $0x134] sm:$0xf]
        %v2114 = vld [vmem:[%s951 + $0x138] sm:$0xf]
        %v2115 = vld [vmem:[%s951 + $0x13c] sm:$0xf]
        %v2116 = vld [vmem:[%s951 + $0x140] sm:$0xf]
        %v2117 = vld [vmem:[%s951 + $0x144] sm:$0xf]
        %v2118 = vld [vmem:[%s951 + $0x148] sm:$0xf]
        %v2119 = vld [vmem:[%s951 + $0x14c] sm:$0xf]
        %v2120 = vld [vmem:[%s951 + $0x150] sm:$0xf]
        %v2121 = vld [vmem:[%s951 + $0x154] sm:$0xf]
        %v2122 = vld [vmem:[%s951 + $0x158] sm:$0xf]
        %v2123 = vld [vmem:[%s951 + $0x15c] sm:$0xf]
        %v2124 = vld [vmem:[%s951 + $0x160] sm:$0xf]
        %v2125 = vld [vmem:[%s951 + $0x164] sm:$0xf]
        %v2126 = vld [vmem:[%s951 + $0x168] sm:$0xf]
        %v2127 = vld [vmem:[%s951 + $0x16c] sm:$0xf]
        %v2128 = vld [vmem:[%s951 + $0x170] sm:$0xf]
        %v2129 = vld [vmem:[%s951 + $0x174] sm:$0xf]
        %v2130 = vld [vmem:[%s951 + $0x178] sm:$0xf]
        %v2131 = vld [vmem:[%s951 + $0x17c] sm:$0xf]
        %v2132 = vld [vmem:[%s951 + $0x180] sm:$0xf]
        %v2133 = vld [vmem:[%s951 + $0x184] sm:$0xf]
        %v2134 = vld [vmem:[%s951 + $0x188] sm:$0xf]
        %v2135 = vld [vmem:[%s951 + $0x18c] sm:$0xf]
        %v2136 = vld [vmem:[%s951 + $0x190] sm:$0xf]
        %v2137 = vld [vmem:[%s951 + $0x194] sm:$0xf]
        %v2138 = vld [vmem:[%s951 + $0x198] sm:$0xf]
        %v2139 = vld [vmem:[%s951 + $0x19c] sm:$0xf]
        %v2140 = vld [vmem:[%s951 + $0x1a0] sm:$0xf]
        %v2141 = vld [vmem:[%s951 + $0x1a4] sm:$0xf]
        %v2142 = vld [vmem:[%s951 + $0x1a8] sm:$0xf]
        %v2143 = vld [vmem:[%s951 + $0x1ac] sm:$0xf]
        %v2144 = vld [vmem:[%s951 + $0x1b0] sm:$0xf]
        %v2145 = vld [vmem:[%s951 + $0x1b4] sm:$0xf]
        %v2146 = vld [vmem:[%s951 + $0x1b8] sm:$0xf]
        %v2147 = vld [vmem:[%s951 + $0x1bc] sm:$0xf]
        %v2148 = vld [vmem:[%s951 + $0x1c0] sm:$0xf]
        %v2149 = vld [vmem:[%s951 + $0x1c4] sm:$0xf]
        %v2150 = vld [vmem:[%s951 + $0x1c8] sm:$0xf]
        %v2151 = vld [vmem:[%s951 + $0x1cc] sm:$0xf]
        %v2152 = vld [vmem:[%s951 + $0x1d0] sm:$0xf]
        %v2153 = vld [vmem:[%s951 + $0x1d4] sm:$0xf]
        %v2154 = vld [vmem:[%s951 + $0x1d8] sm:$0xf]
        %v2155 = vld [vmem:[%s951 + $0x1dc] sm:$0xf]
        %v2156 = vld [vmem:[%s951 + $0x1e0] sm:$0xf]
        %v2157 = vld [vmem:[%s951 + $0x1e4] sm:$0xf]
        %v2158 = vld [vmem:[%s951 + $0x1e8] sm:$0xf]
        %v2159 = vld [vmem:[%s951 + $0x1ec] sm:$0xf]
        %v2160 = vld [vmem:[%s951 + $0x1f0] sm:$0xf]
        %v2161 = vld [vmem:[%s951 + $0x1f4] sm:$0xf]
        %v2162 = vld [vmem:[%s951 + $0x1f8] sm:$0xf]
        %v2163 = vld [vmem:[%s951 + $0x1fc] sm:$0xf]
        %v2164 = vld [vmem:[%s951 + $0x200] sm:$0xf]
        %v2165 = vld [vmem:[%s951 + $0x204] sm:$0xf]
        %v2166 = vld [vmem:[%s951 + $0x208] sm:$0xf]
        %v2167 = vld [vmem:[%s951 + $0x20c] sm:$0xf]
        %v2168 = vld [vmem:[%s951 + $0x210] sm:$0xf]
        %v2169 = vld [vmem:[%s951 + $0x214] sm:$0xf]
        %v2170 = vld [vmem:[%s951 + $0x218] sm:$0xf]
        %v2171 = vld [vmem:[%s951 + $0x21c] sm:$0xf]
        %v2172 = vld [vmem:[%s951 + $0x220] sm:$0xf]
        %v2173 = vld [vmem:[%s951 + $0x224] sm:$0xf]
        %v2174 = vld [vmem:[%s951 + $0x228] sm:$0xf]
        %v2175 = vld [vmem:[%s951 + $0x22c] sm:$0xf]
        %v2176 = vld [vmem:[%s951 + $0x230] sm:$0xf]
        %v2177 = vld [vmem:[%s951 + $0x234] sm:$0xf]
        %v2178 = vld [vmem:[%s951 + $0x238] sm:$0xf]
        %v2179 = vld [vmem:[%s951 + $0x23c] sm:$0xf]
        %v2180 = vld [vmem:[%s951 + $0x240] sm:$0xf]
        %v2181 = vld [vmem:[%s951 + $0x244] sm:$0xf]
        %v2182 = vld [vmem:[%s951 + $0x248] sm:$0xf]
        %v2183 = vld [vmem:[%s951 + $0x24c] sm:$0xf]
        %v2184 = vld [vmem:[%s951 + $0x250] sm:$0xf]
        %v2185 = vld [vmem:[%s951 + $0x254] sm:$0xf]
        %v2186 = vld [vmem:[%s951 + $0x258] sm:$0xf]
        %v2187 = vld [vmem:[%s951 + $0x25c] sm:$0xf]
        %v2188 = vld [vmem:[%s951 + $0x260] sm:$0xf]
        %v2189 = vld [vmem:[%s951 + $0x264] sm:$0xf]
        %v2190 = vld [vmem:[%s951 + $0x268] sm:$0xf]
        %v2191 = vld [vmem:[%s951 + $0x26c] sm:$0xf]
        %v2192 = vld [vmem:[%s951 + $0x270] sm:$0xf]
        %v2193 = vld [vmem:[%s951 + $0x274] sm:$0xf]
        %v2194 = vld [vmem:[%s951 + $0x278] sm:$0xf]
        %v2195 = vld [vmem:[%s951 + $0x27c] sm:$0xf]
        %v2196 = vld [vmem:[%s951 + $0x280] sm:$0xf]
        %v2197 = vld [vmem:[%s951 + $0x284] sm:$0xf]
        %v2198 = vld [vmem:[%s951 + $0x288] sm:$0xf]
        %v2199 = vld [vmem:[%s951 + $0x28c] sm:$0xf]
        %v2200 = vld [vmem:[%s951 + $0x290] sm:$0xf]
        %v2201 = vld [vmem:[%s951 + $0x294] sm:$0xf]
        %v2202 = vld [vmem:[%s951 + $0x298] sm:$0xf]
        %v2203 = vld [vmem:[%s951 + $0x29c] sm:$0xf]
        %v2204 = vld [vmem:[%s951 + $0x2a0] sm:$0xf]
        %v2205 = vld [vmem:[%s951 + $0x2a4] sm:$0xf]
        %v2206 = vld [vmem:[%s951 + $0x2a8] sm:$0xf]
        %v2207 = vld [vmem:[%s951 + $0x2ac] sm:$0xf]
        %v2208 = vld [vmem:[%s951 + $0x2b0] sm:$0xf]
        %v2209 = vld [vmem:[%s951 + $0x2b4] sm:$0xf]
        %v2210 = vld [vmem:[%s951 + $0x2b8] sm:$0xf]
        %v2211 = vld [vmem:[%s951 + $0x2bc] sm:$0xf]
        %v2212 = vld [vmem:[%s951 + $0x2c0] sm:$0xf]
        %v2213 = vld [vmem:[%s951 + $0x2c4] sm:$0xf]
        %v2214 = vld [vmem:[%s951 + $0x2c8] sm:$0xf]
        %v2215 = vld [vmem:[%s951 + $0x2cc] sm:$0xf]
        %v2216 = vld [vmem:[%s951 + $0x2d0] sm:$0xf]
        %v2217 = vld [vmem:[%s951 + $0x2d4] sm:$0xf]
        %v2218 = vld [vmem:[%s951 + $0x2d8] sm:$0xf]
        %v2219 = vld [vmem:[%s951 + $0x2dc] sm:$0xf]
        %v2220 = vld [vmem:[%s951 + $0x2e0] sm:$0xf]
        %v2221 = vld [vmem:[%s951 + $0x2e4] sm:$0xf]
        %v2222 = vld [vmem:[%s951 + $0x2e8] sm:$0xf]
        %v2223 = vld [vmem:[%s951 + $0x2ec] sm:$0xf]
        %v2224 = vld [vmem:[%s951 + $0x2f0] sm:$0xf]
        %v2225 = vld [vmem:[%s951 + $0x2f4] sm:$0xf]
        %v2226 = vld [vmem:[%s951 + $0x2f8] sm:$0xf]
        %v2227 = vld [vmem:[%s951 + $0x2fc] sm:$0xf]
        %v2228 = vld [vmem:[%s951 + $0x300] sm:$0xf]
        %v2229 = vld [vmem:[%s951 + $0x304] sm:$0xf]
        %v2230 = vld [vmem:[%s951 + $0x308] sm:$0xf]
        %v2231 = vld [vmem:[%s951 + $0x30c] sm:$0xf]
        %v2232 = vld [vmem:[%s951 + $0x310] sm:$0xf]
        %v2233 = vld [vmem:[%s951 + $0x314] sm:$0xf]
        %v2234 = vld [vmem:[%s951 + $0x318] sm:$0xf]
        %v2235 = vld [vmem:[%s951 + $0x31c] sm:$0xf]
        %v2236 = vld [vmem:[%s951 + $0x320] sm:$0xf]
        %v2237 = vld [vmem:[%s951 + $0x324] sm:$0xf]
        %v2238 = vld [vmem:[%s951 + $0x328] sm:$0xf]
        %v2239 = vld [vmem:[%s951 + $0x32c] sm:$0xf]
        %v2240 = vld [vmem:[%s951 + $0x330] sm:$0xf]
        %v2241 = vld [vmem:[%s951 + $0x334] sm:$0xf]
        %v2242 = vld [vmem:[%s951 + $0x338] sm:$0xf]
        %v2243 = vld [vmem:[%s951 + $0x33c] sm:$0xf]
        %v2244 = vld [vmem:[%s951 + $0x340] sm:$0xf]
        %v2245 = vld [vmem:[%s951 + $0x344] sm:$0xf]
        %v2246 = vld [vmem:[%s951 + $0x348] sm:$0xf]
        %v2247 = vld [vmem:[%s951 + $0x34c] sm:$0xf]
        %v2248 = vld [vmem:[%s951 + $0x350] sm:$0xf]
        %v2249 = vld [vmem:[%s951 + $0x354] sm:$0xf]
        %v2250 = vld [vmem:[%s951 + $0x358] sm:$0xf]
        %v2251 = vld [vmem:[%s951 + $0x35c] sm:$0xf]
        %v2252 = vld [vmem:[%s951 + $0x360] sm:$0xf]
        %v2253 = vld [vmem:[%s951 + $0x364] sm:$0xf]
        %v2254 = vld [vmem:[%s951 + $0x368] sm:$0xf]
        %v2255 = vld [vmem:[%s951 + $0x36c] sm:$0xf]
        %v2256 = vld [vmem:[%s951 + $0x370] sm:$0xf]
        %v2257 = vld [vmem:[%s951 + $0x374] sm:$0xf]
        %v2258 = vld [vmem:[%s951 + $0x378] sm:$0xf]
        %v2259 = vld [vmem:[%s951 + $0x37c] sm:$0xf]
        %v2260 = vld [vmem:[%s951 + $0x380] sm:$0xf]
        %v2261 = vld [vmem:[%s951 + $0x384] sm:$0xf]
        %v2262 = vld [vmem:[%s951 + $0x388] sm:$0xf]
        %v2263 = vld [vmem:[%s951 + $0x38c] sm:$0xf]
        %v2264 = vld [vmem:[%s951 + $0x390] sm:$0xf]
        %v2265 = vld [vmem:[%s951 + $0x394] sm:$0xf]
        %v2266 = vld [vmem:[%s951 + $0x398] sm:$0xf]
        %v2267 = vld [vmem:[%s951 + $0x39c] sm:$0xf]
        %v2268 = vld [vmem:[%s951 + $0x3a0] sm:$0xf]
        %v2269 = vld [vmem:[%s951 + $0x3a4] sm:$0xf]
        %v2270 = vld [vmem:[%s951 + $0x3a8] sm:$0xf]
        %v2271 = vld [vmem:[%s951 + $0x3ac] sm:$0xf]
        %v2272 = vld [vmem:[%s951 + $0x3b0] sm:$0xf]
        %v2273 = vld [vmem:[%s951 + $0x3b4] sm:$0xf]
        %v2274 = vld [vmem:[%s951 + $0x3b8] sm:$0xf]
        %v2275 = vld [vmem:[%s951 + $0x3bc] sm:$0xf]
        %v2276 = vld [vmem:[%s951 + $0x3c0] sm:$0xf]
        %v2277 = vld [vmem:[%s951 + $0x3c4] sm:$0xf]
        %v2278 = vld [vmem:[%s951 + $0x3c8] sm:$0xf]
        %v2279 = vld [vmem:[%s951 + $0x3cc] sm:$0xf]
        %v2280 = vld [vmem:[%s951 + $0x3d0] sm:$0xf]
        %v2281 = vld [vmem:[%s951 + $0x3d4] sm:$0xf]
        %v2282 = vld [vmem:[%s951 + $0x3d8] sm:$0xf]
        %v2283 = vld [vmem:[%s951 + $0x3dc] sm:$0xf]
        %v2284 = vld [vmem:[%s951 + $0x3e0] sm:$0xf]
        %v2285 = vld [vmem:[%s951 + $0x3e4] sm:$0xf]
        %v2286 = vld [vmem:[%s951 + $0x3e8] sm:$0xf]
        %v2287 = vld [vmem:[%s951 + $0x3ec] sm:$0xf]
        %v2288 = vld [vmem:[%s951 + $0x3f0] sm:$0xf]
        %v2289 = vld [vmem:[%s951 + $0x3f4] sm:$0xf]
        %v2290 = vld [vmem:[%s951 + $0x3f8] sm:$0xf]
        %v2291 = vld [vmem:[%s951 + $0x3fc] sm:$0xf]
        %v2292 = vld [vmem:[%s958] sm:$0x1]
        %v2294 = vlaneseq
        %v2295 = vshrl.u32 %v2294, 7
        %v2296 = vsub.s32 0, %v2295
        %v2297 = vrot.slane %v2292, %v2296
        %v2555 = vunpack.c.l.b16 %v2036
        %v2556 = vunpack.c.l.b16 %v2037
        %v2557 = vunpack.c.l.b16 %v2038
        %v2558 = vunpack.c.l.b16 %v2039
        %v2559 = vunpack.c.l.b16 %v2040
        %v2560 = vunpack.c.l.b16 %v2041
        %v2561 = vunpack.c.l.b16 %v2042
        %v2562 = vunpack.c.l.b16 %v2043
        %v2563 = vunpack.c.l.b16 %v2044
        %v2564 = vunpack.c.l.b16 %v2045
        %v2565 = vunpack.c.l.b16 %v2046
        %v2566 = vunpack.c.l.b16 %v2047
        %v2567 = vunpack.c.l.b16 %v2048
        %v2568 = vunpack.c.l.b16 %v2049
        %v2569 = vunpack.c.l.b16 %v2050
        %v2570 = vunpack.c.l.b16 %v2051
        %v2571 = vunpack.c.l.b16 %v2052
        %v2572 = vunpack.c.l.b16 %v2053
        %v2573 = vunpack.c.l.b16 %v2054
        %v2574 = vunpack.c.l.b16 %v2055
        %v2575 = vunpack.c.l.b16 %v2056
        %v2576 = vunpack.c.l.b16 %v2057
        %v2577 = vunpack.c.l.b16 %v2058
        %v2578 = vunpack.c.l.b16 %v2059
        %v2579 = vunpack.c.l.b16 %v2060
        %v2580 = vunpack.c.l.b16 %v2061
        %v2581 = vunpack.c.l.b16 %v2062
        %v2582 = vunpack.c.l.b16 %v2063
        %v2583 = vunpack.c.l.b16 %v2064
        %v2584 = vunpack.c.l.b16 %v2065
        %v2585 = vunpack.c.l.b16 %v2066
        %v2586 = vunpack.c.l.b16 %v2067
        %v2587 = vunpack.c.l.b16 %v2068
        %v2588 = vunpack.c.l.b16 %v2069
        %v2589 = vunpack.c.l.b16 %v2070
        %v2590 = vunpack.c.l.b16 %v2071
        %v2591 = vunpack.c.l.b16 %v2072
        %v2592 = vunpack.c.l.b16 %v2073
        %v2593 = vunpack.c.l.b16 %v2074
        %v2594 = vunpack.c.l.b16 %v2075
        %v2595 = vunpack.c.l.b16 %v2076
        %v2596 = vunpack.c.l.b16 %v2077
        %v2597 = vunpack.c.l.b16 %v2078
        %v2598 = vunpack.c.l.b16 %v2079
        %v2599 = vunpack.c.l.b16 %v2080
        %v2600 = vunpack.c.l.b16 %v2081
        %v2601 = vunpack.c.l.b16 %v2082
        %v2602 = vunpack.c.l.b16 %v2083
        %v2603 = vunpack.c.l.b16 %v2084
        %v2604 = vunpack.c.l.b16 %v2085
        %v2605 = vunpack.c.l.b16 %v2086
        %v2606 = vunpack.c.l.b16 %v2087
        %v2607 = vunpack.c.l.b16 %v2088
        %v2608 = vunpack.c.l.b16 %v2089
        %v2609 = vunpack.c.l.b16 %v2090
        %v2610 = vunpack.c.l.b16 %v2091
        %v2611 = vunpack.c.l.b16 %v2092
        %v2612 = vunpack.c.l.b16 %v2093
        %v2613 = vunpack.c.l.b16 %v2094
        %v2614 = vunpack.c.l.b16 %v2095
        %v2615 = vunpack.c.l.b16 %v2096
        %v2616 = vunpack.c.l.b16 %v2097
        %v2617 = vunpack.c.l.b16 %v2098
        %v2618 = vunpack.c.l.b16 %v2099
        %v2619 = vunpack.c.l.b16 %v2100
        %v2620 = vunpack.c.l.b16 %v2101
        %v2621 = vunpack.c.l.b16 %v2102
        %v2622 = vunpack.c.l.b16 %v2103
        %v2623 = vunpack.c.l.b16 %v2104
        %v2624 = vunpack.c.l.b16 %v2105
        %v2625 = vunpack.c.l.b16 %v2106
        %v2626 = vunpack.c.l.b16 %v2107
        %v2627 = vunpack.c.l.b16 %v2108
        %v2628 = vunpack.c.l.b16 %v2109
        %v2629 = vunpack.c.l.b16 %v2110
        %v2630 = vunpack.c.l.b16 %v2111
        %v2631 = vunpack.c.l.b16 %v2112
        %v2632 = vunpack.c.l.b16 %v2113
        %v2633 = vunpack.c.l.b16 %v2114
        %v2634 = vunpack.c.l.b16 %v2115
        %v2635 = vunpack.c.l.b16 %v2116
        %v2636 = vunpack.c.l.b16 %v2117
        %v2637 = vunpack.c.l.b16 %v2118
        %v2638 = vunpack.c.l.b16 %v2119
        %v2639 = vunpack.c.l.b16 %v2120
        %v2640 = vunpack.c.l.b16 %v2121
        %v2641 = vunpack.c.l.b16 %v2122
        %v2642 = vunpack.c.l.b16 %v2123
        %v2643 = vunpack.c.l.b16 %v2124
        %v2644 = vunpack.c.l.b16 %v2125
        %v2645 = vunpack.c.l.b16 %v2126
        %v2646 = vunpack.c.l.b16 %v2127
        %v2647 = vunpack.c.l.b16 %v2128
        %v2648 = vunpack.c.l.b16 %v2129
        %v2649 = vunpack.c.l.b16 %v2130
        %v2650 = vunpack.c.l.b16 %v2131
        %v2651 = vunpack.c.l.b16 %v2132
        %v2652 = vunpack.c.l.b16 %v2133
        %v2653 = vunpack.c.l.b16 %v2134
        %v2654 = vunpack.c.l.b16 %v2135
        %v2655 = vunpack.c.l.b16 %v2136
        %v2656 = vunpack.c.l.b16 %v2137
        %v2657 = vunpack.c.l.b16 %v2138
        %v2658 = vunpack.c.l.b16 %v2139
        %v2659 = vunpack.c.l.b16 %v2140
        %v2660 = vunpack.c.l.b16 %v2141
        %v2661 = vunpack.c.l.b16 %v2142
        %v2662 = vunpack.c.l.b16 %v2143
        %v2663 = vunpack.c.l.b16 %v2144
        %v2664 = vunpack.c.l.b16 %v2145
        %v2665 = vunpack.c.l.b16 %v2146
        %v2666 = vunpack.c.l.b16 %v2147
        %v2667 = vunpack.c.l.b16 %v2148
        %v2668 = vunpack.c.l.b16 %v2149
        %v2669 = vunpack.c.l.b16 %v2150
        %v2670 = vunpack.c.l.b16 %v2151
        %v2671 = vunpack.c.l.b16 %v2152
        %v2672 = vunpack.c.l.b16 %v2153
        %v2673 = vunpack.c.l.b16 %v2154
        %v2674 = vunpack.c.l.b16 %v2155
        %v2675 = vunpack.c.l.b16 %v2156
        %v2676 = vunpack.c.l.b16 %v2157
        %v2677 = vunpack.c.l.b16 %v2158
        %v2678 = vunpack.c.l.b16 %v2159
        %v2679 = vunpack.c.l.b16 %v2160
        %v2680 = vunpack.c.l.b16 %v2161
        %v2681 = vunpack.c.l.b16 %v2162
        %v2682 = vunpack.c.l.b16 %v2163
        %v2683 = vunpack.c.l.b16 %v2164
        %v2684 = vunpack.c.l.b16 %v2165
        %v2685 = vunpack.c.l.b16 %v2166
        %v2686 = vunpack.c.l.b16 %v2167
        %v2687 = vunpack.c.l.b16 %v2168
        %v2688 = vunpack.c.l.b16 %v2169
        %v2689 = vunpack.c.l.b16 %v2170
        %v2690 = vunpack.c.l.b16 %v2171
        %v2691 = vunpack.c.l.b16 %v2172
        %v2692 = vunpack.c.l.b16 %v2173
        %v2693 = vunpack.c.l.b16 %v2174
        %v2694 = vunpack.c.l.b16 %v2175
        %v2695 = vunpack.c.l.b16 %v2176
        %v2696 = vunpack.c.l.b16 %v2177
        %v2697 = vunpack.c.l.b16 %v2178
        %v2698 = vunpack.c.l.b16 %v2179
        %v2699 = vunpack.c.l.b16 %v2180
        %v2700 = vunpack.c.l.b16 %v2181
        %v2701 = vunpack.c.l.b16 %v2182
        %v2702 = vunpack.c.l.b16 %v2183
        %v2703 = vunpack.c.l.b16 %v2184
        %v2704 = vunpack.c.l.b16 %v2185
        %v2705 = vunpack.c.l.b16 %v2186
        %v2706 = vunpack.c.l.b16 %v2187
        %v2707 = vunpack.c.l.b16 %v2188
        %v2708 = vunpack.c.l.b16 %v2189
        %v2709 = vunpack.c.l.b16 %v2190
        %v2710 = vunpack.c.l.b16 %v2191
        %v2711 = vunpack.c.l.b16 %v2192
        %v2712 = vunpack.c.l.b16 %v2193
        %v2713 = vunpack.c.l.b16 %v2194
        %v2714 = vunpack.c.l.b16 %v2195
        %v2715 = vunpack.c.l.b16 %v2196
        %v2716 = vunpack.c.l.b16 %v2197
        %v2717 = vunpack.c.l.b16 %v2198
        %v2718 = vunpack.c.l.b16 %v2199
        %v2719 = vunpack.c.l.b16 %v2200
        %v2720 = vunpack.c.l.b16 %v2201
        %v2721 = vunpack.c.l.b16 %v2202
        %v2722 = vunpack.c.l.b16 %v2203
        %v2723 = vunpack.c.l.b16 %v2204
        %v2724 = vunpack.c.l.b16 %v2205
        %v2725 = vunpack.c.l.b16 %v2206
        %v2726 = vunpack.c.l.b16 %v2207
        %v2727 = vunpack.c.l.b16 %v2208
        %v2728 = vunpack.c.l.b16 %v2209
        %v2729 = vunpack.c.l.b16 %v2210
        %v2730 = vunpack.c.l.b16 %v2211
        %v2731 = vunpack.c.l.b16 %v2212
        %v2732 = vunpack.c.l.b16 %v2213
        %v2733 = vunpack.c.l.b16 %v2214
        %v2734 = vunpack.c.l.b16 %v2215
        %v2735 = vunpack.c.l.b16 %v2216
        %v2736 = vunpack.c.l.b16 %v2217
        %v2737 = vunpack.c.l.b16 %v2218
        %v2738 = vunpack.c.l.b16 %v2219
        %v2739 = vunpack.c.l.b16 %v2220
        %v2740 = vunpack.c.l.b16 %v2221
        %v2741 = vunpack.c.l.b16 %v2222
        %v2742 = vunpack.c.l.b16 %v2223
        %v2743 = vunpack.c.l.b16 %v2224
        %v2744 = vunpack.c.l.b16 %v2225
        %v2745 = vunpack.c.l.b16 %v2226
        %v2746 = vunpack.c.l.b16 %v2227
        %v2747 = vunpack.c.l.b16 %v2228
        %v2748 = vunpack.c.l.b16 %v2229
        %v2749 = vunpack.c.l.b16 %v2230
        %v2750 = vunpack.c.l.b16 %v2231
        %v2751 = vunpack.c.l.b16 %v2232
        %v2752 = vunpack.c.l.b16 %v2233
        %v2753 = vunpack.c.l.b16 %v2234
        %v2754 = vunpack.c.l.b16 %v2235
        %v2755 = vunpack.c.l.b16 %v2236
        %v2756 = vunpack.c.l.b16 %v2237
        %v2757 = vunpack.c.l.b16 %v2238
        %v2758 = vunpack.c.l.b16 %v2239
        %v2759 = vunpack.c.l.b16 %v2240
        %v2760 = vunpack.c.l.b16 %v2241
        %v2761 = vunpack.c.l.b16 %v2242
        %v2762 = vunpack.c.l.b16 %v2243
        %v2763 = vunpack.c.l.b16 %v2244
        %v2764 = vunpack.c.l.b16 %v2245
        %v2765 = vunpack.c.l.b16 %v2246
        %v2766 = vunpack.c.l.b16 %v2247
        %v2767 = vunpack.c.l.b16 %v2248
        %v2768 = vunpack.c.l.b16 %v2249
        %v2769 = vunpack.c.l.b16 %v2250
        %v2770 = vunpack.c.l.b16 %v2251
        %v2771 = vunpack.c.l.b16 %v2252
        %v2772 = vunpack.c.l.b16 %v2253
        %v2773 = vunpack.c.l.b16 %v2254
        %v2774 = vunpack.c.l.b16 %v2255
        %v2775 = vunpack.c.l.b16 %v2256
        %v2776 = vunpack.c.l.b16 %v2257
        %v2777 = vunpack.c.l.b16 %v2258
        %v2778 = vunpack.c.l.b16 %v2259
        %v2779 = vunpack.c.l.b16 %v2260
        %v2780 = vunpack.c.l.b16 %v2261
        %v2781 = vunpack.c.l.b16 %v2262
        %v2782 = vunpack.c.l.b16 %v2263
        %v2783 = vunpack.c.l.b16 %v2264
        %v2784 = vunpack.c.l.b16 %v2265
        %v2785 = vunpack.c.l.b16 %v2266
        %v2786 = vunpack.c.l.b16 %v2267
        %v2787 = vunpack.c.l.b16 %v2268
        %v2788 = vunpack.c.l.b16 %v2269
        %v2789 = vunpack.c.l.b16 %v2270
        %v2790 = vunpack.c.l.b16 %v2271
        %v2791 = vunpack.c.l.b16 %v2272
        %v2792 = vunpack.c.l.b16 %v2273
        %v2793 = vunpack.c.l.b16 %v2274
        %v2794 = vunpack.c.l.b16 %v2275
        %v2795 = vunpack.c.l.b16 %v2276
        %v2796 = vunpack.c.l.b16 %v2277
        %v2797 = vunpack.c.l.b16 %v2278
        %v2798 = vunpack.c.l.b16 %v2279
        %v2799 = vunpack.c.l.b16 %v2280
        %v2800 = vunpack.c.l.b16 %v2281
        %v2801 = vunpack.c.l.b16 %v2282
        %v2802 = vunpack.c.l.b16 %v2283
        %v2803 = vunpack.c.l.b16 %v2284
        %v2804 = vunpack.c.l.b16 %v2285
        %v2805 = vunpack.c.l.b16 %v2286
        %v2806 = vunpack.c.l.b16 %v2287
        %v2807 = vunpack.c.l.b16 %v2288
        %v2808 = vunpack.c.l.b16 %v2289
        %v2809 = vunpack.c.l.b16 %v2290
        %v2810 = vunpack.c.l.b16 %v2291
        %v2811 = vpack.c.b16 %v2556, %v2555
        %v2812 = vpack.c.b16 %v2558, %v2557
        %v2813 = vpack.c.b16 %v2560, %v2559
        %v2814 = vpack.c.b16 %v2562, %v2561
        %v2815 = vpack.c.b16 %v2564, %v2563
        %v2816 = vpack.c.b16 %v2566, %v2565
        %v2817 = vpack.c.b16 %v2568, %v2567
        %v2818 = vpack.c.b16 %v2570, %v2569
        %v2819 = vpack.c.b16 %v2572, %v2571
        %v2820 = vpack.c.b16 %v2574, %v2573
        %v2821 = vpack.c.b16 %v2576, %v2575
        %v2822 = vpack.c.b16 %v2578, %v2577
        %v2823 = vpack.c.b16 %v2580, %v2579
        %v2824 = vpack.c.b16 %v2582, %v2581
        %v2825 = vpack.c.b16 %v2584, %v2583
        %v2826 = vpack.c.b16 %v2586, %v2585
        %v2827 = vpack.c.b16 %v2588, %v2587
        %v2828 = vpack.c.b16 %v2590, %v2589
        %v2829 = vpack.c.b16 %v2592, %v2591
        %v2830 = vpack.c.b16 %v2594, %v2593
        %v2831 = vpack.c.b16 %v2596, %v2595
        %v2832 = vpack.c.b16 %v2598, %v2597
        %v2833 = vpack.c.b16 %v2600, %v2599
        %v2834 = vpack.c.b16 %v2602, %v2601
        %v2835 = vpack.c.b16 %v2604, %v2603
        %v2836 = vpack.c.b16 %v2606, %v2605
        %v2837 = vpack.c.b16 %v2608, %v2607
        %v2838 = vpack.c.b16 %v2610, %v2609
        %v2839 = vpack.c.b16 %v2612, %v2611
        %v2840 = vpack.c.b16 %v2614, %v2613
        %v2841 = vpack.c.b16 %v2616, %v2615
        %v2842 = vpack.c.b16 %v2618, %v2617
        %v2843 = vpack.c.b16 %v2620, %v2619
        %v2844 = vpack.c.b16 %v2622, %v2621
        %v2845 = vpack.c.b16 %v2624, %v2623
        %v2846 = vpack.c.b16 %v2626, %v2625
        %v2847 = vpack.c.b16 %v2628, %v2627
        %v2848 = vpack.c.b16 %v2630, %v2629
        %v2849 = vpack.c.b16 %v2632, %v2631
        %v2850 = vpack.c.b16 %v2634, %v2633
        %v2851 = vpack.c.b16 %v2636, %v2635
        %v2852 = vpack.c.b16 %v2638, %v2637
        %v2853 = vpack.c.b16 %v2640, %v2639
        %v2854 = vpack.c.b16 %v2642, %v2641
        %v2855 = vpack.c.b16 %v2644, %v2643
        %v2856 = vpack.c.b16 %v2646, %v2645
        %v2857 = vpack.c.b16 %v2648, %v2647
        %v2858 = vpack.c.b16 %v2650, %v2649
        %v2859 = vpack.c.b16 %v2652, %v2651
        %v2860 = vpack.c.b16 %v2654, %v2653
        %v2861 = vpack.c.b16 %v2656, %v2655
        %v2862 = vpack.c.b16 %v2658, %v2657
        %v2863 = vpack.c.b16 %v2660, %v2659
        %v2864 = vpack.c.b16 %v2662, %v2661
        %v2865 = vpack.c.b16 %v2664, %v2663
        %v2866 = vpack.c.b16 %v2666, %v2665
        %v2867 = vpack.c.b16 %v2668, %v2667
        %v2868 = vpack.c.b16 %v2670, %v2669
        %v2869 = vpack.c.b16 %v2672, %v2671
        %v2870 = vpack.c.b16 %v2674, %v2673
        %v2871 = vpack.c.b16 %v2676, %v2675
        %v2872 = vpack.c.b16 %v2678, %v2677
        %v2873 = vpack.c.b16 %v2680, %v2679
        %v2874 = vpack.c.b16 %v2682, %v2681
        %v2875 = vpack.c.b16 %v2684, %v2683
        %v2876 = vpack.c.b16 %v2686, %v2685
        %v2877 = vpack.c.b16 %v2688, %v2687
        %v2878 = vpack.c.b16 %v2690, %v2689
        %v2879 = vpack.c.b16 %v2692, %v2691
        %v2880 = vpack.c.b16 %v2694, %v2693
        %v2881 = vpack.c.b16 %v2696, %v2695
        %v2882 = vpack.c.b16 %v2698, %v2697
        %v2883 = vpack.c.b16 %v2700, %v2699
        %v2884 = vpack.c.b16 %v2702, %v2701
        %v2885 = vpack.c.b16 %v2704, %v2703
        %v2886 = vpack.c.b16 %v2706, %v2705
        %v2887 = vpack.c.b16 %v2708, %v2707
        %v2888 = vpack.c.b16 %v2710, %v2709
        %v2889 = vpack.c.b16 %v2712, %v2711
        %v2890 = vpack.c.b16 %v2714, %v2713
        %v2891 = vpack.c.b16 %v2716, %v2715
        %v2892 = vpack.c.b16 %v2718, %v2717
        %v2893 = vpack.c.b16 %v2720, %v2719
        %v2894 = vpack.c.b16 %v2722, %v2721
        %v2895 = vpack.c.b16 %v2724, %v2723
        %v2896 = vpack.c.b16 %v2726, %v2725
        %v2897 = vpack.c.b16 %v2728, %v2727
        %v2898 = vpack.c.b16 %v2730, %v2729
        %v2899 = vpack.c.b16 %v2732, %v2731
        %v2900 = vpack.c.b16 %v2734, %v2733
        %v2901 = vpack.c.b16 %v2736, %v2735
        %v2902 = vpack.c.b16 %v2738, %v2737
        %v2903 = vpack.c.b16 %v2740, %v2739
        %v2904 = vpack.c.b16 %v2742, %v2741
        %v2905 = vpack.c.b16 %v2744, %v2743
        %v2906 = vpack.c.b16 %v2746, %v2745
        %v2907 = vpack.c.b16 %v2748, %v2747
        %v2908 = vpack.c.b16 %v2750, %v2749
        %v2909 = vpack.c.b16 %v2752, %v2751
        %v2910 = vpack.c.b16 %v2754, %v2753
        %v2911 = vpack.c.b16 %v2756, %v2755
        %v2912 = vpack.c.b16 %v2758, %v2757
        %v2913 = vpack.c.b16 %v2760, %v2759
        %v2914 = vpack.c.b16 %v2762, %v2761
        %v2915 = vpack.c.b16 %v2764, %v2763
        %v2916 = vpack.c.b16 %v2766, %v2765
        %v2917 = vpack.c.b16 %v2768, %v2767
        %v2918 = vpack.c.b16 %v2770, %v2769
        %v2919 = vpack.c.b16 %v2772, %v2771
        %v2920 = vpack.c.b16 %v2774, %v2773
        %v2921 = vpack.c.b16 %v2776, %v2775
        %v2922 = vpack.c.b16 %v2778, %v2777
        %v2923 = vpack.c.b16 %v2780, %v2779
        %v2924 = vpack.c.b16 %v2782, %v2781
        %v2925 = vpack.c.b16 %v2784, %v2783
        %v2926 = vpack.c.b16 %v2786, %v2785
        %v2927 = vpack.c.b16 %v2788, %v2787
        %v2928 = vpack.c.b16 %v2790, %v2789
        %v2929 = vpack.c.b16 %v2792, %v2791
        %v2930 = vpack.c.b16 %v2794, %v2793
        %v2931 = vpack.c.b16 %v2796, %v2795
        %v2932 = vpack.c.b16 %v2798, %v2797
        %v2933 = vpack.c.b16 %v2800, %v2799
        %v2934 = vpack.c.b16 %v2802, %v2801
        %v2935 = vpack.c.b16 %v2804, %v2803
        %v2936 = vpack.c.b16 %v2806, %v2805
        %v2937 = vpack.c.b16 %v2808, %v2807
        %v2938 = vpack.c.b16 %v2810, %v2809
        %3067 = vmatprep.subr.bf16.mxu0 0
        %3068 = vmatpush1.bf16.msra.mxu0 %v2818
        %3069 = vmatprep.subr.bf16.mxu0 0
        %3070 = vmatpush1.bf16.msra.mxu0 %v2817
        %3071 = vmatprep.subr.bf16.mxu0 0
        %3072 = vmatpush1.bf16.msra.mxu0 %v2816
        %3073 = vmatprep.subr.bf16.mxu0 0
        %3074 = vmatpush1.bf16.msra.mxu0 %v2815
        %3075 = vmatprep.subr.bf16.mxu0 0
        %3076 = vmatpush1.bf16.msra.mxu0 %v2814
        %3077 = vmatprep.subr.bf16.mxu0 0
        %3078 = vmatpush1.bf16.msra.mxu0 %v2813
        %3079 = vmatprep.subr.bf16.mxu0 0
        %3080 = vmatpush1.bf16.msra.mxu0 %v2812
        %3081 = vmatprep.subr.bf16.mxu0 0
        %3082 = vmatpush1.bf16.msra.mxu0 %v2811
        %3083 = vmatprep.subr.bf16.mxu0 0
        %3084 = vmatpush2.bf16.msra.mxu0 %v2826
        %3085 = vmatprep.subr.bf16.mxu0 0
        %3086 = vmatpush2.bf16.msra.mxu0 %v2825
        %3087 = vmatprep.subr.bf16.mxu0 0
        %3088 = vmatpush2.bf16.msra.mxu0 %v2824
        %3089 = vmatprep.subr.bf16.mxu0 0
        %3090 = vmatpush2.bf16.msra.mxu0 %v2823
        %3091 = vmatprep.subr.bf16.mxu0 0
        %3092 = vmatpush2.bf16.msra.mxu0 %v2822
        %3093 = vmatprep.subr.bf16.mxu0 0
        %3094 = vmatpush2.bf16.msra.mxu0 %v2821
        %3095 = vmatprep.subr.bf16.mxu0 0
        %3096 = vmatpush2.bf16.msra.mxu0 %v2820
        %3097 = vmatprep.subr.bf16.mxu0 0
        %3098 = vmatpush2.bf16.msra.mxu0 %v2819
        %3099 = vmatprep.mubr.bf16.mxu0 %v2021
        %3100 = vmatmul.mubr.bf16.gmra.mxu0 %v2020
        %v3101 = vpop.f32.mrf.mxu0
        %v3102 = vadd.f32 %v2297, %v3101
        %v3103 = vpop.f32.mrf.mxu0
        %v3104 = vpop.f32.mrf.mxu0
        %v3105 = vadd.f32 %v2297, %v3104
        %v3106 = vpop.f32.mrf.mxu0
        %3107 = vdwg.mxu0
        %3108 = vmatprep.subr.bf16.mxu0 0
        %3109 = vmatpush1.bf16.msra.mxu0 %v2834
        %3110 = vmatprep.subr.bf16.mxu0 0
        %3111 = vmatpush1.bf16.msra.mxu0 %v2833
        %3112 = vmatprep.subr.bf16.mxu0 0
        %3113 = vmatpush1.bf16.msra.mxu0 %v2832
        %3114 = vmatprep.subr.bf16.mxu0 0
        %3115 = vmatpush1.bf16.msra.mxu0 %v2831
        %3116 = vmatprep.subr.bf16.mxu0 0
        %3117 = vmatpush1.bf16.msra.mxu0 %v2830
        %3118 = vmatprep.subr.bf16.mxu0 0
        %3119 = vmatpush1.bf16.msra.mxu0 %v2829
        %3120 = vmatprep.subr.bf16.mxu0 0
        %3121 = vmatpush1.bf16.msra.mxu0 %v2828
        %3122 = vmatprep.subr.bf16.mxu0 0
        %3123 = vmatpush1.bf16.msra.mxu0 %v2827
        %3124 = vmatprep.subr.bf16.mxu0 0
        %3125 = vmatpush2.bf16.msra.mxu0 %v2842
        %3126 = vmatprep.subr.bf16.mxu0 0
        %3127 = vmatpush2.bf16.msra.mxu0 %v2841
        %3128 = vmatprep.subr.bf16.mxu0 0
        %3129 = vmatpush2.bf16.msra.mxu0 %v2840
        %3130 = vmatprep.subr.bf16.mxu0 0
        %3131 = vmatpush2.bf16.msra.mxu0 %v2839
        %3132 = vmatprep.subr.bf16.mxu0 0
        %3133 = vmatpush2.bf16.msra.mxu0 %v2838
        %3134 = vmatprep.subr.bf16.mxu0 0
        %3135 = vmatpush2.bf16.msra.mxu0 %v2837
        %3136 = vmatprep.subr.bf16.mxu0 0
        %3137 = vmatpush2.bf16.msra.mxu0 %v2836
        %3138 = vmatprep.subr.bf16.mxu0 0
        %3139 = vmatpush2.bf16.msra.mxu0 %v2835
        %3140 = vmatprep.mubr.bf16.mxu0 %v2023
        %3141 = vmatmul.mubr.bf16.gmra.mxu0 %v2022
        %v3142 = vpop.f32.mrf.mxu0
        %v3143 = vadd.f32 %v3102, %v3142
        %v3144 = vpop.f32.mrf.mxu0
        %v3145 = vpop.f32.mrf.mxu0
        %v3146 = vadd.f32 %v3105, %v3145
        %v3147 = vpop.f32.mrf.mxu0
        %3148 = vdwg.mxu0
        %3149 = vmatprep.subr.bf16.mxu0 0
        %3150 = vmatpush1.bf16.msra.mxu0 %v2850
        %3151 = vmatprep.subr.bf16.mxu0 0
        %3152 = vmatpush1.bf16.msra.mxu0 %v2849
        %3153 = vmatprep.subr.bf16.mxu0 0
        %3154 = vmatpush1.bf16.msra.mxu0 %v2848
        %3155 = vmatprep.subr.bf16.mxu0 0
        %3156 = vmatpush1.bf16.msra.mxu0 %v2847
        %3157 = vmatprep.subr.bf16.mxu0 0
        %3158 = vmatpush1.bf16.msra.mxu0 %v2846
        %3159 = vmatprep.subr.bf16.mxu0 0
        %3160 = vmatpush1.bf16.msra.mxu0 %v2845
        %3161 = vmatprep.subr.bf16.mxu0 0
        %3162 = vmatpush1.bf16.msra.mxu0 %v2844
        %3163 = vmatprep.subr.bf16.mxu0 0
        %3164 = vmatpush1.bf16.msra.mxu0 %v2843
        %3165 = vmatprep.subr.bf16.mxu0 0
        %3166 = vmatpush2.bf16.msra.mxu0 %v2858
        %3167 = vmatprep.subr.bf16.mxu0 0
        %3168 = vmatpush2.bf16.msra.mxu0 %v2857
        %3169 = vmatprep.subr.bf16.mxu0 0
        %3170 = vmatpush2.bf16.msra.mxu0 %v2856
        %3171 = vmatprep.subr.bf16.mxu0 0
        %3172 = vmatpush2.bf16.msra.mxu0 %v2855
        %3173 = vmatprep.subr.bf16.mxu0 0
        %3174 = vmatpush2.bf16.msra.mxu0 %v2854
        %3175 = vmatprep.subr.bf16.mxu0 0
        %3176 = vmatpush2.bf16.msra.mxu0 %v2853
        %3177 = vmatprep.subr.bf16.mxu0 0
        %3178 = vmatpush2.bf16.msra.mxu0 %v2852
        %3179 = vmatprep.subr.bf16.mxu0 0
        %3180 = vmatpush2.bf16.msra.mxu0 %v2851
        %3181 = vmatprep.mubr.bf16.mxu0 %v2025
        %3182 = vmatmul.mubr.bf16.gmra.mxu0 %v2024
        %v3183 = vpop.f32.mrf.mxu0
        %v3184 = vadd.f32 %v3143, %v3183
        %v3185 = vpop.f32.mrf.mxu0
        %v3186 = vpop.f32.mrf.mxu0
        %v3187 = vadd.f32 %v3146, %v3186
        %v3188 = vpop.f32.mrf.mxu0
        %3189 = vdwg.mxu0
        %3190 = vmatprep.subr.bf16.mxu0 0
        %3191 = vmatpush1.bf16.msra.mxu0 %v2866
        %3192 = vmatprep.subr.bf16.mxu0 0
        %3193 = vmatpush1.bf16.msra.mxu0 %v2865
        %3194 = vmatprep.subr.bf16.mxu0 0
        %3195 = vmatpush1.bf16.msra.mxu0 %v2864
        %3196 = vmatprep.subr.bf16.mxu0 0
        %3197 = vmatpush1.bf16.msra.mxu0 %v2863
        %3198 = vmatprep.subr.bf16.mxu0 0
        %3199 = vmatpush1.bf16.msra.mxu0 %v2862
        %3200 = vmatprep.subr.bf16.mxu0 0
        %3201 = vmatpush1.bf16.msra.mxu0 %v2861
        %3202 = vmatprep.subr.bf16.mxu0 0
        %3203 = vmatpush1.bf16.msra.mxu0 %v2860
        %3204 = vmatprep.subr.bf16.mxu0 0
        %3205 = vmatpush1.bf16.msra.mxu0 %v2859
        %3206 = vmatprep.subr.bf16.mxu0 0
        %3207 = vmatpush2.bf16.msra.mxu0 %v2874
        %3208 = vmatprep.subr.bf16.mxu0 0
        %3209 = vmatpush2.bf16.msra.mxu0 %v2873
        %3210 = vmatprep.subr.bf16.mxu0 0
        %3211 = vmatpush2.bf16.msra.mxu0 %v2872
        %3212 = vmatprep.subr.bf16.mxu0 0
        %3213 = vmatpush2.bf16.msra.mxu0 %v2871
        %3214 = vmatprep.subr.bf16.mxu0 0
        %3215 = vmatpush2.bf16.msra.mxu0 %v2870
        %3216 = vmatprep.subr.bf16.mxu0 0
        %3217 = vmatpush2.bf16.msra.mxu0 %v2869
        %3218 = vmatprep.subr.bf16.mxu0 0
        %3219 = vmatpush2.bf16.msra.mxu0 %v2868
        %3220 = vmatprep.subr.bf16.mxu0 0
        %3221 = vmatpush2.bf16.msra.mxu0 %v2867
        %3222 = vmatprep.mubr.bf16.mxu0 %v2027
        %3223 = vmatmul.mubr.bf16.gmra.mxu0 %v2026
        %v3224 = vpop.f32.mrf.mxu0
        %v3225 = vadd.f32 %v3184, %v3224
        %v3226 = vpop.f32.mrf.mxu0
        %v3227 = vpop.f32.mrf.mxu0
        %v3228 = vadd.f32 %v3187, %v3227
        %v3229 = vpop.f32.mrf.mxu0
        %3230 = vdwg.mxu0
        %3231 = vmatprep.subr.bf16.mxu0 0
        %3232 = vmatpush1.bf16.msra.mxu0 %v2882
        %3233 = vmatprep.subr.bf16.mxu0 0
        %3234 = vmatpush1.bf16.msra.mxu0 %v2881
        %3235 = vmatprep.subr.bf16.mxu0 0
        %3236 = vmatpush1.bf16.msra.mxu0 %v2880
        %3237 = vmatprep.subr.bf16.mxu0 0
        %3238 = vmatpush1.bf16.msra.mxu0 %v2879
        %3239 = vmatprep.subr.bf16.mxu0 0
        %3240 = vmatpush1.bf16.msra.mxu0 %v2878
        %3241 = vmatprep.subr.bf16.mxu0 0
        %3242 = vmatpush1.bf16.msra.mxu0 %v2877
        %3243 = vmatprep.subr.bf16.mxu0 0
        %3244 = vmatpush1.bf16.msra.mxu0 %v2876
        %3245 = vmatprep.subr.bf16.mxu0 0
        %3246 = vmatpush1.bf16.msra.mxu0 %v2875
        %3247 = vmatprep.subr.bf16.mxu0 0
        %3248 = vmatpush2.bf16.msra.mxu0 %v2890
        %3249 = vmatprep.subr.bf16.mxu0 0
        %3250 = vmatpush2.bf16.msra.mxu0 %v2889
        %3251 = vmatprep.subr.bf16.mxu0 0
        %3252 = vmatpush2.bf16.msra.mxu0 %v2888
        %3253 = vmatprep.subr.bf16.mxu0 0
        %3254 = vmatpush2.bf16.msra.mxu0 %v2887
        %3255 = vmatprep.subr.bf16.mxu0 0
        %3256 = vmatpush2.bf16.msra.mxu0 %v2886
        %3257 = vmatprep.subr.bf16.mxu0 0
        %3258 = vmatpush2.bf16.msra.mxu0 %v2885
        %3259 = vmatprep.subr.bf16.mxu0 0
        %3260 = vmatpush2.bf16.msra.mxu0 %v2884
        %3261 = vmatprep.subr.bf16.mxu0 0
        %3262 = vmatpush2.bf16.msra.mxu0 %v2883
        %3263 = vmatprep.mubr.bf16.mxu0 %v2029
        %3264 = vmatmul.mubr.bf16.gmra.mxu0 %v2028
        %v3265 = vpop.f32.mrf.mxu0
        %v3266 = vadd.f32 %v3225, %v3265
        %v3267 = vpop.f32.mrf.mxu0
        %v3268 = vpop.f32.mrf.mxu0
        %v3269 = vadd.f32 %v3228, %v3268
        %v3270 = vpop.f32.mrf.mxu0
        %3271 = vdwg.mxu0
        %3272 = vmatprep.subr.bf16.mxu0 0
        %3273 = vmatpush1.bf16.msra.mxu0 %v2898
        %3274 = vmatprep.subr.bf16.mxu0 0
        %3275 = vmatpush1.bf16.msra.mxu0 %v2897
        %3276 = vmatprep.subr.bf16.mxu0 0
        %3277 = vmatpush1.bf16.msra.mxu0 %v2896
        %3278 = vmatprep.subr.bf16.mxu0 0
        %3279 = vmatpush1.bf16.msra.mxu0 %v2895
        %3280 = vmatprep.subr.bf16.mxu0 0
        %3281 = vmatpush1.bf16.msra.mxu0 %v2894
        %3282 = vmatprep.subr.bf16.mxu0 0
        %3283 = vmatpush1.bf16.msra.mxu0 %v2893
        %3284 = vmatprep.subr.bf16.mxu0 0
        %3285 = vmatpush1.bf16.msra.mxu0 %v2892
        %3286 = vmatprep.subr.bf16.mxu0 0
        %3287 = vmatpush1.bf16.msra.mxu0 %v2891
        %3288 = vmatprep.subr.bf16.mxu0 0
        %3289 = vmatpush2.bf16.msra.mxu0 %v2906
        %3290 = vmatprep.subr.bf16.mxu0 0
        %3291 = vmatpush2.bf16.msra.mxu0 %v2905
        %3292 = vmatprep.subr.bf16.mxu0 0
        %3293 = vmatpush2.bf16.msra.mxu0 %v2904
        %3294 = vmatprep.subr.bf16.mxu0 0
        %3295 = vmatpush2.bf16.msra.mxu0 %v2903
        %3296 = vmatprep.subr.bf16.mxu0 0
        %3297 = vmatpush2.bf16.msra.mxu0 %v2902
        %3298 = vmatprep.subr.bf16.mxu0 0
        %3299 = vmatpush2.bf16.msra.mxu0 %v2901
        %3300 = vmatprep.subr.bf16.mxu0 0
        %3301 = vmatpush2.bf16.msra.mxu0 %v2900
        %3302 = vmatprep.subr.bf16.mxu0 0
        %3303 = vmatpush2.bf16.msra.mxu0 %v2899
        %3304 = vmatprep.mubr.bf16.mxu0 %v2031
        %3305 = vmatmul.mubr.bf16.gmra.mxu0 %v2030
        %v3306 = vpop.f32.mrf.mxu0
        %v3307 = vadd.f32 %v3266, %v3306
        %v3308 = vpop.f32.mrf.mxu0
        %v3309 = vpop.f32.mrf.mxu0
        %v3310 = vadd.f32 %v3269, %v3309
        %v3311 = vpop.f32.mrf.mxu0
        %3312 = vdwg.mxu0
        %3313 = vmatprep.subr.bf16.mxu0 0
        %3314 = vmatpush1.bf16.msra.mxu0 %v2914
        %3315 = vmatprep.subr.bf16.mxu0 0
        %3316 = vmatpush1.bf16.msra.mxu0 %v2913
        %3317 = vmatprep.subr.bf16.mxu0 0
        %3318 = vmatpush1.bf16.msra.mxu0 %v2912
        %3319 = vmatprep.subr.bf16.mxu0 0
        %3320 = vmatpush1.bf16.msra.mxu0 %v2911
        %3321 = vmatprep.subr.bf16.mxu0 0
        %3322 = vmatpush1.bf16.msra.mxu0 %v2910
        %3323 = vmatprep.subr.bf16.mxu0 0
        %3324 = vmatpush1.bf16.msra.mxu0 %v2909
        %3325 = vmatprep.subr.bf16.mxu0 0
        %3326 = vmatpush1.bf16.msra.mxu0 %v2908
        %3327 = vmatprep.subr.bf16.mxu0 0
        %3328 = vmatpush1.bf16.msra.mxu0 %v2907
        %3329 = vmatprep.subr.bf16.mxu0 0
        %3330 = vmatpush2.bf16.msra.mxu0 %v2922
        %3331 = vmatprep.subr.bf16.mxu0 0
        %3332 = vmatpush2.bf16.msra.mxu0 %v2921
        %3333 = vmatprep.subr.bf16.mxu0 0
        %3334 = vmatpush2.bf16.msra.mxu0 %v2920
        %3335 = vmatprep.subr.bf16.mxu0 0
        %3336 = vmatpush2.bf16.msra.mxu0 %v2919
        %3337 = vmatprep.subr.bf16.mxu0 0
        %3338 = vmatpush2.bf16.msra.mxu0 %v2918
        %3339 = vmatprep.subr.bf16.mxu0 0
        %3340 = vmatpush2.bf16.msra.mxu0 %v2917
        %3341 = vmatprep.subr.bf16.mxu0 0
        %3342 = vmatpush2.bf16.msra.mxu0 %v2916
        %3343 = vmatprep.subr.bf16.mxu0 0
        %3344 = vmatpush2.bf16.msra.mxu0 %v2915
        %3345 = vmatprep.mubr.bf16.mxu0 %v2033
        %3346 = vmatmul.mubr.bf16.gmra.mxu0 %v2032
        %v3347 = vpop.f32.mrf.mxu0
        %v3348 = vadd.f32 %v3307, %v3347
        %v3349 = vpop.f32.mrf.mxu0
        %v3350 = vpop.f32.mrf.mxu0
        %v3351 = vadd.f32 %v3310, %v3350
        %v3352 = vpop.f32.mrf.mxu0
        %3353 = vdwg.mxu0
        %3354 = vmatprep.subr.bf16.mxu0 0
        %3355 = vmatpush1.bf16.msra.mxu0 %v2930
        %3356 = vmatprep.subr.bf16.mxu0 0
        %3357 = vmatpush1.bf16.msra.mxu0 %v2929
        %3358 = vmatprep.subr.bf16.mxu0 0
        %3359 = vmatpush1.bf16.msra.mxu0 %v2928
        %3360 = vmatprep.subr.bf16.mxu0 0
        %3361 = vmatpush1.bf16.msra.mxu0 %v2927
        %3362 = vmatprep.subr.bf16.mxu0 0
        %3363 = vmatpush1.bf16.msra.mxu0 %v2926
        %3364 = vmatprep.subr.bf16.mxu0 0
        %3365 = vmatpush1.bf16.msra.mxu0 %v2925
        %3366 = vmatprep.subr.bf16.mxu0 0
        %3367 = vmatpush1.bf16.msra.mxu0 %v2924
        %3368 = vmatprep.subr.bf16.mxu0 0
        %3369 = vmatpush1.bf16.msra.mxu0 %v2923
        %3370 = vmatprep.subr.bf16.mxu0 0
        %3371 = vmatpush2.bf16.msra.mxu0 %v2938
        %3372 = vmatprep.subr.bf16.mxu0 0
        %3373 = vmatpush2.bf16.msra.mxu0 %v2937
        %3374 = vmatprep.subr.bf16.mxu0 0
        %3375 = vmatpush2.bf16.msra.mxu0 %v2936
        %3376 = vmatprep.subr.bf16.mxu0 0
        %3377 = vmatpush2.bf16.msra.mxu0 %v2935
        %3378 = vmatprep.subr.bf16.mxu0 0
        %3379 = vmatpush2.bf16.msra.mxu0 %v2934
        %3380 = vmatprep.subr.bf16.mxu0 0
        %3381 = vmatpush2.bf16.msra.mxu0 %v2933
        %3382 = vmatprep.subr.bf16.mxu0 0
        %3383 = vmatpush2.bf16.msra.mxu0 %v2932
        %3384 = vmatprep.subr.bf16.mxu0 0
        %3385 = vmatpush2.bf16.msra.mxu0 %v2931
        %3386 = vmatprep.mubr.bf16.mxu0 %v2035
        %3387 = vmatmul.mubr.bf16.gmra.mxu0 %v2034
        %v3388 = vpop.f32.mrf.mxu0
        %v3389 = vadd.f32 %v3348, %v3388
        %v3390 = vpop.f32.mrf.mxu0
        %v3391 = vpop.f32.mrf.mxu0
        %v3392 = vadd.f32 %v3351, %v3391
        %v3393 = vpop.f32.mrf.mxu0
        %3394 = vdwg.mxu0
        %v3395 = vadd.f32 %v1362, %v3389
        %v3396 = vadd.f32 %v1363, %v3392
        %v3397 = vld [vmem:[%s965] sm:$0x1]
        %v3398 = vld [vmem:[%s972] sm:$0x1]
        %v3399 = vsel %vm1073, %v3395, 0.0
        %3400 = vadd.xlane.f32.xlu0 %v3399
        %v3401 = vpop.xlane.xlu0 %3400
        %v3402 = vsel %vm1073, %v3396, 0.0
        %3403 = vadd.xlane.f32.xlu0 %v3402
        %v3404 = vpop.xlane.xlu0 %3403
        %v3405 = vmul.f32 %v3401, %v1327
        %v3406 = vmul.f32 %v3404, %v1327
        %v3407 = vsub.f32 %v3395, %v3405
        %v3408 = vsub.f32 %v3396, %v3406
        %v3409 = vmul.f32 %v3407, %v3407
        %v3410 = vmul.f32 %v3408, %v3408
        %v3411 = vsel %vm1073, %v3409, 0.0
        %3412 = vadd.xlane.f32.xlu0 %v3411
        %v3413 = vpop.xlane.xlu0 %3412
        %v3414 = vsel %vm1073, %v3410, 0.0
        %3415 = vadd.xlane.f32.xlu0 %v3414
        %v3416 = vpop.xlane.xlu0 %3415
        %v3417 = vmul.f32 %v3413, %v1327
        %v3418 = vmul.f32 %v3416, %v1327
        %v3419 = vadd.f32 %v3417, 1e-05
        %v3420 = vadd.f32 %v3418, 1e-05
        %v3421 = vrsqrt.pop %v3419
        %v3422 = vrsqrt.pop %v3420
        %v3423 = vmul.f32 %v3407, %v3421
        %v3424 = vmul.f32 %v3408, %v3422
        %v3426 = vlaneseq
        %v3427 = vshrl.u32 %v3426, 7
        %v3428 = vsub.s32 0, %v3427
        %v3429 = vrot.slane %v3397, %v3428
        %v3431 = vmul.f32 %v3423, %v3429
        %v3432 = vmul.f32 %v3424, %v3429
        %v3434 = vlaneseq
        %v3435 = vshrl.u32 %v3434, 7
        %v3436 = vsub.s32 0, %v3435
        %v3437 = vrot.slane %v3398, %v3436
        %v3439 = vadd.f32 %v3431, %v3437
        %v3440 = vadd.f32 %v3432, %v3437
        %3441 = vst.msk [vmem:[%s862] sm:$0xff] %vm1073, %v3439
        %3442 = vst.msk [vmem:[%s862 + $0x8] sm:$0xff] %vm1073, %v3440
        %s3443 = sand.u32 %s512, 1
        %s3444 = scalar_lea.sflag [#allocation3], %s3443
        %s3445 = sand.u32 %s512, 1
        %s3446 = smul.addr %s3445, 16
        %s3447 = scalar_lea.vmem [#allocation2], %s3446
        // Predicated region
        $region93: #{tpu_custom_call.1} parent=87 // pred_check
          %p3448 = pneg %p522
        $region94: #{tpu_custom_call.1} parent=87 // pred_check_branch
          %3450 = sbr.rel (%p3448) target = $region96
        $region95: #{tpu_custom_call.1} parent=87 // pred_region
          %s3452 = ssub.s32 256, 256
          %3453 = vsyncadd %s3444, %s3452
          %s3454 = smul.addr %s35, 2
          %s3455 = smul.addr %s3454, 128
          %s3456 = scalar_lea.hbm %s17, %s3455
          %s3457 = sshll.u32 %s3447, 4
          %s3458 = int_to_ptr.vmem [resolvable:$true] %s3457
          %3463 = dma.vmem_to_hbm [thread:$0]  %s3458, 256, %s3456, %s3444, 128, 128, 8
        $region96: #{tpu_custom_call.1} parent=87 // pred_fallthru
          _
      $region88: #{tpu_custom_call.1} parent=5 // pred_fallthru
        _
      %p3464 = scmp.le.s32.totalorder 2, %s26
      // Predicated region
      $region97: #{tpu_custom_call.1} parent=5 // pred_check
        %p3465 = pneg %p3464
      $region98: #{tpu_custom_call.1} parent=5 // pred_check_branch
        %3467 = sbr.rel (%p3465) target = $region100
      $region99: #{tpu_custom_call.1} parent=5 // pred_region
        %s3468 = ssub.s32 %s26, 2
        // Predicated region
        $region101: #{tpu_custom_call.1} parent=99 // pred_check
          %p3469 = pneg %p528
        $region102: #{tpu_custom_call.1} parent=99 // pred_check_branch
          %3471 = sbr.rel (%p3469) target = $region104
        $region103: #{tpu_custom_call.1} parent=99 // pred_region
          %s3472 = sand.u32 %s513, 1
          %s3473 = scalar_lea.sflag [#allocation3], %s3472
          %s3474 = sand.u32 %s513, 1
          %s3475 = smul.addr %s3474, 16
          %s3476 = scalar_lea.vmem [#allocation2], %s3475
          %3477 = dma.done %s3473, 256
        $region104: #{tpu_custom_call.1} parent=99 // pred_fallthru
          _
      $region100: #{tpu_custom_call.1} parent=5 // pred_fallthru
        _
    $region6: #{tpu_custom_call.1} parent=1 // loop_footer
      %s30 = sadd.s32 1, %s26
    $region7: #{tpu_custom_call.1} parent=1 // loop_footer_branch
      %25 = sbr.rel target = $region3
    $region8: #{tpu_custom_call.1} parent=1 // loop_exit
      _
    %3478 = vsyncpa [#allocation3], 1
    %s3479 = scalar_lea.sflag [#allocation3], 1
    %3480 = vsyncpa %s3479, 1

</llo_original>
